<compile_context>
chip_gen: v6e
topology: v6e:2x2x1
jax: 0.10.0
libtpu: 0.0.40
codegen_flags: <defaults>
</compile_context>

<pallas_src>
import functools

import numpy as np
import jax
import jax.numpy as jnp
from jax import lax
from jax.experimental import pallas as pl
from jax.experimental.pallas import tpu as pltpu

NEG_INF = -1e30  # finite "masked" value; exp underflows to exactly 0 (bf16-representable)


# ----------------------------------------------------------------------------
# NATTEN window / rpb index helpers (same formulas as the natten reference).
# ----------------------------------------------------------------------------
def _win_start(index, length, kernel_size, neighborhood_size, dilation):
    if dilation <= 1:
        start = max(index - neighborhood_size, 0)
        if index + neighborhood_size >= length:
            start += length - index - neighborhood_size - 1
        return start
    ni = index - neighborhood_size * dilation
    if ni < 0:
        return index % dilation
    if index + neighborhood_size * dilation >= length:
        imodd = index % dilation
        a = (length // dilation) * dilation
        b = length - a
        if imodd < b:
            return length - b + imodd - 2 * neighborhood_size * dilation
        return a + imodd - kernel_size * dilation
    return ni


def _pb_start(index, length, kernel_size, neighborhood_size, dilation):
    if dilation <= 1:
        start = neighborhood_size
        if index < neighborhood_size:
            start += neighborhood_size - index
        if index + neighborhood_size >= length:
            start += length - index - 1 - neighborhood_size
        return start
    if index - neighborhood_size * dilation < 0:
        return kernel_size - 1 - (index // dilation)
    if index + neighborhood_size * dilation >= length:
        return (length - index - 1) // dilation
    return neighborhood_size


@functools.lru_cache(maxsize=16)
def _axis_tables(length, kernel_size, dilation):
    """Per-axis tables: rpb index (L, L) and validity mask (L, L) for (query, key)."""
    ns = kernel_size // 2
    si = np.array([_win_start(i, length, kernel_size, ns, dilation) for i in range(length)])
    pi = np.array([_pb_start(i, length, kernel_size, ns, dilation) for i in range(length)])
    keys = np.arange(length)
    delta = keys[None, :] - si[:, None]                        # (L, L)
    valid = (delta >= 0) & (delta < kernel_size * dilation) & (delta % dilation == 0)
    idx = np.where(valid, pi[:, None] + delta // dilation, 0)
    return idx.astype(np.int64), valid


# TODO(synk): the bias/index tables are built host-side with numpy, so this path is
# not jit-traceable / differentiable w.r.t. rpb (fine for forward/eval semantics).
@functools.lru_cache(maxsize=16)
def _cached_tile_bias(rpb_bytes, num_heads, rpb_side, H, W, kernel_size, dilation,
                      TR, nb, nslots, full_band):
    """Per-query-row-tile, per-band-slot additive bias (bf16), shape (T, heads, TQ, S)."""
    rpb = np.frombuffer(rpb_bytes, dtype=np.float32).reshape(num_heads, rpb_side, rpb_side)
    T = H // TR
    TQ = TR * W
    ridx, rval = _axis_tables(H, kernel_size, dilation)
    cidx, cval = _axis_tables(W, kernel_size, dilation)
    bias = np.full((T, num_heads, TQ, nslots * TQ), NEG_INF, dtype=np.float32)
    for qt in range(T):
        qrows = np.arange(qt * TR, (qt + 1) * TR)
        for s in range(nslots):
            if full_band:
                kb = s
            else:
                raw = qt - nb + s
                if raw < 0 or raw >= T:
                    continue                       # dead (clamped duplicate) slot: all -inf
                kb = raw
            krows = np.arange(kb * TR, (kb + 1) * TR)
            ri = ridx[np.ix_(qrows, krows)]                                 # (TR, TR)
            rv = rval[np.ix_(qrows, krows)]
            vals = rpb[:, ri[:, None, :, None], cidx[None, :, None, :]]     # (h, TR, W, TR, W)
            ok = rv[:, None, :, None] & cval[None, :, None, :]              # (TR, W, TR, W)
            blk = np.where(ok[None], vals, NEG_INF)
            bias[qt, :, :, s * TQ:(s + 1) * TQ] = blk.reshape(num_heads, TQ, TQ)
    return jnp.asarray(bias, dtype=jnp.bfloat16)


def _choose_tr(H, W):
    """Row-tile size: a divisor of H whose token tile (TR*W) is sublane-aligned
    and moderately sized.  (If H is awkward, falls back to TR=H => full rows.)"""
    N = H * W
    target = min(128, max(8, N // 2))
    feasible = [tr for tr in range(1, H + 1)
                if H % tr == 0 and ((tr * W) % 8 == 0 or tr == H)]
    for tr in sorted(feasible):
        if tr * W >= target:
            return tr
    return max(feasible)


def _make_key_index_map(s, nb, T, full_band):
    if full_band:
        def imap(b, qt):
            return (b, s, 0)
    else:
        def imap(b, qt):
            kb = jnp.minimum(jnp.maximum(qt + (s - nb), 0), T - 1)
            return (b, kb, 0)
    return imap


# ----------------------------------------------------------------------------
# Pallas kernel: fused QKV projection + banded neighborhood attention + out proj.
# Grid = (B, num_row_tiles); one (batch, query-row-tile) per step.
# ----------------------------------------------------------------------------
def _na2d_kernel(num_heads, nslots, *refs):
    xq_ref = refs[0]
    xk_refs = refs[1:1 + nslots]
    (bias_ref, wq_ref, bq_ref, wk_ref, bk_ref, wv_ref, bv_ref,
     wp_ref, bp_ref, o_ref) = refs[1 + nslots:]

    xq = xq_ref[0]                                               # (TQ, C) bf16
    if nslots == 1:
        xk = xk_refs[0][0]                                       # (S, C)  bf16
    else:
        xk = jnp.concatenate([r[0] for r in xk_refs], axis=0)    # sublane concat (TQ%8==0)

    acc = None
    for h in range(num_heads):                                   # static small head loop
        # per-head weight slabs (leading-dim indexing -> no lane-dim activation slicing)
        q = (jnp.dot(xq, wq_ref[h], preferred_element_type=jnp.float32)
             + bq_ref[h]).astype(jnp.bfloat16)                   # (TQ, d)  (scale folded)
        k = (jnp.dot(xk, wk_ref[h], preferred_element_type=jnp.float32)
             + bk_ref[h]).astype(jnp.bfloat16)                   # (S, d)
        v = (jnp.dot(xk, wv_ref[h], preferred_element_type=jnp.float32)
             + bv_ref[h]).astype(jnp.bfloat16)                   # (S, d)

        s = lax.dot_general(q, k, (((1,), (1,)), ((), ())),
                            preferred_element_type=jnp.float32)  # (TQ, S)  f32
        s = s + bias_ref[0, h]                                   # bf16 bias -> f32 add
        s = s - jnp.max(s, axis=-1, keepdims=True)
        p = jnp.exp(s)
        p = p * pl.reciprocal(jnp.sum(p, axis=-1, keepdims=True), approx=True)

        o_h = jnp.dot(p.astype(jnp.bfloat16), v,
                      preferred_element_type=jnp.float32)        # (TQ, d)
        contrib = jnp.dot(o_h.astype(jnp.bfloat16), wp_ref[h],
                          preferred_element_type=jnp.float32)    # (TQ, C)
        acc = contrib if acc is None else acc + contrib          # replaces concat of heads

    o_ref[0] = (acc + bp_ref[...]).astype(o_ref.dtype)


def wintome_na2d_forward(x, params, *, num_heads, kernel_size,
                         dilation=1, qk_scale=None):
    B, Hp, Wp, C = x.shape
    head_dim = C // num_heads
    scale = qk_scale if qk_scale is not None else head_dim ** (-0.5)
    window = kernel_size * dilation

    pad_b = max(0, window - Hp)
    pad_r = max(0, window - Wp)
    if pad_b or pad_r:
        x = jnp.pad(x, ((0, 0), (0, pad_b), (0, pad_r), (0, 0)))
    H, W = int(x.shape[1]), int(x.shape[2])
    N = H * W

    # ---- query tiling / key band geometry ------------------------------------
    TR = _choose_tr(H, W)                 # query rows per tile
    T = H // TR                           # number of query tiles
    TQ = TR * W                           # tokens per query tile
    nb = -(-(kernel_size * dilation - 1) // TR)   # halo in row-blocks (ceil)
    full_band = (2 * nb + 1) >= T
    nslots = T if full_band else 2 * nb + 1
    S = nslots * TQ                       # keys visible to one query tile

    # ---- host-side parameter prep (scale folded, per-head slabs, bf16 weights) -
    wqkv = np.asarray(params["wqkv"], np.float32)     # (3C, C)  torch Linear (out, in)
    bqkv = np.asarray(params["bqkv"], np.float32)     # (3C,)
    wproj = np.asarray(params["wproj"], np.float32)   # (C, C)
    bproj = np.asarray(params["bproj"], np.float32)   # (C,)
    rpb = np.asarray(params["rpb"], np.float32)       # (heads, 2K-1, 2K-1)

    def per_head(w_rows, b_rows, sc=1.0):
        w = (w_rows * sc).reshape(num_heads, head_dim, C).transpose(0, 2, 1)  # (h, C, d)
        b = (b_rows * sc).reshape(num_heads, 1, head_dim)                     # (h, 1, d)
        return jnp.asarray(w, jnp.bfloat16), jnp.asarray(b, jnp.float32)

    wq, bq = per_head(wqkv[0:C], bqkv[0:C], scale)            # scale folded into Wq, bq
    wk, bk = per_head(wqkv[C:2 * C], bqkv[C:2 * C])
    wv, bv = per_head(wqkv[2 * C:3 * C], bqkv[2 * C:3 * C])
    wp = jnp.asarray(wproj.T.reshape(num_heads, head_dim, C), jnp.bfloat16)   # (h, d, C)
    bp = jnp.asarray(bproj.reshape(1, C), jnp.float32)

    bias = _cached_tile_bias(rpb.tobytes(), num_heads, 2 * kernel_size - 1,
                             H, W, kernel_size, dilation, TR, nb, nslots, full_band)

    x_flat = x.reshape(B, N, C).astype(jnp.bfloat16)

    # NOTE: for production dims keep C (and TQ) multiples of 128/8 so output stores
    # are lane-dense unmasked vst; with the tiny demo C=32/64 stores are masked.
    def build(single_buffer_consts):
        def const_spec(shape):
            imap = lambda *_: (0,) * len(shape)
            if single_buffer_consts:
                # constant-index blocks don't need double buffering
                return pl.BlockSpec(shape, imap, pipeline_mode=pl.Buffered(1))
            return pl.BlockSpec(shape, imap)

        tok_spec = lambda imap: pl.BlockSpec((1, TQ, C), imap)
        in_specs = (
            [tok_spec(lambda b, qt: (b, qt, 0))] +                                  # query tile
            [tok_spec(_make_key_index_map(s, nb, T, full_band))                      # key band
             for s in range(nslots)] +
            [pl.BlockSpec((1, num_heads, TQ, S), lambda b, qt: (qt, 0, 0, 0)),       # bias tile
             const_spec((num_heads, C, head_dim)), const_spec((num_heads, 1, head_dim)),
             const_spec((num_heads, C, head_dim)), const_spec((num_heads, 1, head_dim)),
             const_spec((num_heads, C, head_dim)), const_spec((num_heads, 1, head_dim)),
             const_spec((num_heads, head_dim, C)), const_spec((1, C))])

        return pl.pallas_call(
            functools.partial(_na2d_kernel, num_heads, nslots),
            out_shape=jax.ShapeDtypeStruct((B, N, C), jnp.float32),
            grid_spec=pltpu.PrefetchScalarGridSpec(
                num_scalar_prefetch=0,
                grid=(B, T),
                in_specs=in_specs,
                out_specs=pl.BlockSpec((1, TQ, C), lambda b, qt: (b, qt, 0)),
            ),
            compiler_params=pltpu.CompilerParams(
                dimension_semantics=("parallel", "parallel"),
                vmem_limit_bytes=48 * 1024 * 1024,
            ),
        )

    args = (x_flat, *([x_flat] * nslots), bias, wq, bq, wk, bk, wv, bv, wp, bp)
    try:
        out_flat = jax.block_until_ready(build(True)(*args))
    except Exception:
        # fallback if single-buffered pipeline_mode is not supported by this jax build
        out_flat = jax.block_until_ready(build(False)(*args))

    out = out_flat.reshape(B, H, W, C)
    if pad_b or pad_r:
        out = out[:, :Hp, :Wp, :]
    return out


# ----------------------------------------------------------------------------
# Independent numpy reference: direct NATTEN gather implementation (f32).
# ----------------------------------------------------------------------------
def reference_forward(x, params, *, num_heads, kernel_size, dilation=1, qk_scale=None):
    x = np.asarray(x, np.float32)
    B, Hp, Wp, C = x.shape
    head_dim = C // num_heads
    scale = qk_scale if qk_scale is not None else head_dim ** (-0.5)
    window = kernel_size * dilation
    pad_b = max(0, window - Hp)
    pad_r = max(0, window - Wp)
    if pad_b or pad_r:
        x = np.pad(x, ((0, 0), (0, pad_b), (0, pad_r), (0, 0)))
    B, H, W, _ = x.shape
    ns = kernel_size // 2
    K = kernel_size

    wqkv = np.asarray(params["wqkv"], np.float32)
    bqkv = np.asarray(params["bqkv"], np.float32)
    rpb = np.asarray(params["rpb"], np.float32)
    wproj = np.asarray(params["wproj"], np.float32)
    bproj = np.asarray(params["bproj"], np.float32)

    qkv = x.reshape(B, H * W, C) @ wqkv.T + bqkv
    qkv = qkv.reshape(B, H, W, 3, num_heads, head_dim)
    q = qkv[..., 0, :, :] * scale
    k = qkv[..., 1, :, :]
    v = qkv[..., 2, :, :]

    out = np.zeros((B, H, W, num_heads, head_dim), np.float32)
    for qi in range(H):
        si = _win_start(qi, H, K, ns, dilation)
        pi = _pb_start(qi, H, K, ns, dilation)
        for qj in range(W):
            sj = _win_start(qj, W, K, ns, dilation)
            pj = _pb_start(qj, W, K, ns, dilation)
            ii = si + np.arange(K) * dilation
            jj = sj + np.arange(K) * dilation
            kk = k[:, ii][:, :, jj]                       # (B, K, K, h, d)
            vv = v[:, ii][:, :, jj]
            qq = q[:, qi, qj]                             # (B, h, d)
            logits = np.einsum('bhd,bijhd->bhij', qq, kk)
            logits = logits + rpb[None, :, pi:pi + K, pj:pj + K]
            logits = logits.reshape(B, num_heads, K * K)
            logits = logits - logits.max(-1, keepdims=True)
            p = np.exp(logits)
            p = p / p.sum(-1, keepdims=True)
            o = np.einsum('bhn,bnhd->bhd', p,
                          vv.reshape(B, K * K, num_heads, head_dim))
            out[:, qi, qj] = o
    out = out.reshape(B, H, W, C)
    if pad_b or pad_r:
        out = out[:, :Hp, :Wp, :]
    out = out.reshape(B, Hp * Wp, C) @ wproj.T + bproj
    return out.reshape(B, Hp, Wp, C)


if __name__ == "__main__":
    def run_case(case_id, B, H, W, C, num_heads, kernel_size, dilation):
        key = jax.random.fold_in(jax.random.PRNGKey(0), case_id)
        kx, kw1, kb1, kr, kw2, kb2 = jax.random.split(key, 6)
        x = jax.random.normal(kx, (B, H, W, C), jnp.float32)
        params = {
            "wqkv": jax.random.normal(kw1, (3 * C, C), jnp.float32) * 0.05,
            "bqkv": jax.random.normal(kb1, (3 * C,), jnp.float32) * 0.02,
            "rpb": jnp.clip(jax.random.normal(
                kr, (num_heads, 2 * kernel_size - 1, 2 * kernel_size - 1),
                jnp.float32) * 0.02, -2.0, 2.0),
            "wproj": jax.random.normal(kw2, (C, C), jnp.float32) * 0.05,
            "bproj": jax.random.normal(kb2, (C,), jnp.float32) * 0.02,
        }
        out = wintome_na2d_forward(x, params, num_heads=num_heads,
                                   kernel_size=kernel_size, dilation=dilation)
        out = jax.block_until_ready(out)
        ref = reference_forward(x, params, num_heads=num_heads,
                                kernel_size=kernel_size, dilation=dilation)
        np.testing.assert_allclose(np.asarray(out), ref, rtol=5e-2, atol=5e-2)

    # small case (key band degenerates to all row-blocks)
    run_case(0, B=2, H=8, W=8, C=32, num_heads=2, kernel_size=3, dilation=1)
    # dilated case exercising the halo-banded key path (4 query row-tiles, 3 band slots)
    run_case(1, B=1, H=24, W=24, C=64, num_heads=4, kernel_size=3, dilation=2)
    # input smaller than the attention window (exercises the module's padding path)
    run_case(2, B=2, H=2, W=2, C=32, num_heads=2, kernel_size=3, dilation=1)

    print("KERNEL_OK")
</pallas_src>

<mosaic_0001>
module attributes {stable_mosaic.version = 11 : i64} {
  func.func @_na2d_kernel(%arg0: i32, %arg1: i32, %arg2: memref<1x32x32xbf16, #tpu.memory_space<vmem>>, %arg3: memref<1x32x32xbf16, #tpu.memory_space<vmem>>, %arg4: memref<1x32x32xbf16, #tpu.memory_space<vmem>>, %arg5: memref<1x2x32x64xbf16, #tpu.memory_space<vmem>>, %arg6: memref<2x32x16xbf16, #tpu.memory_space<vmem>>, %arg7: memref<2x1x16xf32, #tpu.memory_space<vmem>>, %arg8: memref<2x32x16xbf16, #tpu.memory_space<vmem>>, %arg9: memref<2x1x16xf32, #tpu.memory_space<vmem>>, %arg10: memref<2x32x16xbf16, #tpu.memory_space<vmem>>, %arg11: memref<2x1x16xf32, #tpu.memory_space<vmem>>, %arg12: memref<2x16x32xbf16, #tpu.memory_space<vmem>>, %arg13: memref<1x32xf32, #tpu.memory_space<vmem>>, %arg14: memref<1x32x32xf32, #tpu.memory_space<vmem>>) attributes {dimension_semantics = [#tpu.dimension_semantics<parallel>, #tpu.dimension_semantics<parallel>], iteration_bounds = array<i64: 2, 2>, scalar_prefetch = 0 : i64, scratch_operands = 0 : i64, tpu.core_type = #tpu.core_type<tc>, window_params = [{transform_indices = @transform_0, window_bounds = array<i64: 1, 32, 32>}, {transform_indices = @transform_1, window_bounds = array<i64: 1, 32, 32>}, {transform_indices = @transform_2, window_bounds = array<i64: 1, 32, 32>}, {transform_indices = @transform_3, window_bounds = array<i64: 1, 2, 32, 64>}, {pipeline_mode = #tpu.pipeline_mode<synchronous>, transform_indices = @transform_4, window_bounds = array<i64: 2, 32, 16>}, {pipeline_mode = #tpu.pipeline_mode<synchronous>, transform_indices = @transform_5, window_bounds = array<i64: 2, 1, 16>}, {pipeline_mode = #tpu.pipeline_mode<synchronous>, transform_indices = @transform_6, window_bounds = array<i64: 2, 32, 16>}, {pipeline_mode = #tpu.pipeline_mode<synchronous>, transform_indices = @transform_7, window_bounds = array<i64: 2, 1, 16>}, {pipeline_mode = #tpu.pipeline_mode<synchronous>, transform_indices = @transform_8, window_bounds = array<i64: 2, 32, 16>}, {pipeline_mode = #tpu.pipeline_mode<synchronous>, transform_indices = @transform_9, window_bounds = array<i64: 2, 1, 16>}, {pipeline_mode = #tpu.pipeline_mode<synchronous>, transform_indices = @transform_10, window_bounds = array<i64: 2, 16, 32>}, {pipeline_mode = #tpu.pipeline_mode<synchronous>, transform_indices = @transform_11, window_bounds = array<i64: 1, 32>}, {transform_indices = @transform_12, window_bounds = array<i64: 1, 32, 32>}]} {
    %c0 = arith.constant 0 : index
    %c0_0 = arith.constant 0 : index
    %c0_1 = arith.constant 0 : index
    %0 = vector.load %arg2[%c0, %c0_0, %c0_1] : memref<1x32x32xbf16, #tpu.memory_space<vmem>>, vector<1x32x32xbf16>
    %1 = vector.shape_cast %0 : vector<1x32x32xbf16> to vector<32x32xbf16>
    %c0_2 = arith.constant 0 : index
    %c0_3 = arith.constant 0 : index
    %c0_4 = arith.constant 0 : index
    %2 = vector.load %arg3[%c0_2, %c0_3, %c0_4] : memref<1x32x32xbf16, #tpu.memory_space<vmem>>, vector<1x32x32xbf16>
    %3 = vector.shape_cast %2 : vector<1x32x32xbf16> to vector<32x32xbf16>
    %c0_5 = arith.constant 0 : index
    %c0_6 = arith.constant 0 : index
    %c0_7 = arith.constant 0 : index
    %4 = vector.load %arg4[%c0_5, %c0_6, %c0_7] : memref<1x32x32xbf16, #tpu.memory_space<vmem>>, vector<1x32x32xbf16>
    %5 = vector.shape_cast %4 : vector<1x32x32xbf16> to vector<32x32xbf16>
    %6 = tpu.concatenate %3, %5 in 0 : vector<32x32xbf16>, vector<32x32xbf16> -> vector<64x32xbf16>
    %c0_8 = arith.constant 0 : index
    %c0_9 = arith.constant 0 : index
    %c0_10 = arith.constant 0 : index
    %7 = vector.load %arg6[%c0_8, %c0_9, %c0_10] : memref<2x32x16xbf16, #tpu.memory_space<vmem>>, vector<1x32x16xbf16>
    %8 = vector.shape_cast %7 : vector<1x32x16xbf16> to vector<32x16xbf16>
    %cst = arith.constant dense<0.000000e+00> : vector<32x16xf32>
    %9 = tpu.matmul %1, %8, %cst {dimension_numbers = #tpu.dot_dimension_numbers<[1], [0], [0], [1], [0, 0, 1, 1], [], []>} : vector<32x32xbf16>, vector<32x16xbf16>, vector<32x16xf32> -> vector<32x16xf32>
    %c0_11 = arith.constant 0 : index
    %c0_12 = arith.constant 0 : index
    %c0_13 = arith.constant 0 : index
    %10 = vector.load %arg7[%c0_11, %c0_12, %c0_13] : memref<2x1x16xf32, #tpu.memory_space<vmem>>, vector<1x1x16xf32>
    %11 = vector.shape_cast %10 : vector<1x1x16xf32> to vector<1x16xf32>
    %12 = vector.broadcast %11 : vector<1x16xf32> to vector<32x16xf32>
    %13 = arith.addf %9, %12 : vector<32x16xf32>
    %14 = arith.truncf %13 : vector<32x16xf32> to vector<32x16xbf16>
    %c0_14 = arith.constant 0 : index
    %c0_15 = arith.constant 0 : index
    %c0_16 = arith.constant 0 : index
    %15 = vector.load %arg8[%c0_14, %c0_15, %c0_16] : memref<2x32x16xbf16, #tpu.memory_space<vmem>>, vector<1x32x16xbf16>
    %16 = vector.shape_cast %15 : vector<1x32x16xbf16> to vector<32x16xbf16>
    %cst_17 = arith.constant dense<0.000000e+00> : vector<64x16xf32>
    %17 = tpu.matmul %6, %16, %cst_17 {dimension_numbers = #tpu.dot_dimension_numbers<[1], [0], [0], [1], [0, 0, 1, 1], [], []>} : vector<64x32xbf16>, vector<32x16xbf16>, vector<64x16xf32> -> vector<64x16xf32>
    %c0_18 = arith.constant 0 : index
    %c0_19 = arith.constant 0 : index
    %c0_20 = arith.constant 0 : index
    %18 = vector.load %arg9[%c0_18, %c0_19, %c0_20] : memref<2x1x16xf32, #tpu.memory_space<vmem>>, vector<1x1x16xf32>
    %19 = vector.shape_cast %18 : vector<1x1x16xf32> to vector<1x16xf32>
    %20 = vector.broadcast %19 : vector<1x16xf32> to vector<64x16xf32>
    %21 = arith.addf %17, %20 : vector<64x16xf32>
    %22 = arith.truncf %21 : vector<64x16xf32> to vector<64x16xbf16>
    %c0_21 = arith.constant 0 : index
    %c0_22 = arith.constant 0 : index
    %c0_23 = arith.constant 0 : index
    %23 = vector.load %arg10[%c0_21, %c0_22, %c0_23] : memref<2x32x16xbf16, #tpu.memory_space<vmem>>, vector<1x32x16xbf16>
    %24 = vector.shape_cast %23 : vector<1x32x16xbf16> to vector<32x16xbf16>
    %cst_24 = arith.constant dense<0.000000e+00> : vector<64x16xf32>
    %25 = tpu.matmul %6, %24, %cst_24 {dimension_numbers = #tpu.dot_dimension_numbers<[1], [0], [0], [1], [0, 0, 1, 1], [], []>} : vector<64x32xbf16>, vector<32x16xbf16>, vector<64x16xf32> -> vector<64x16xf32>
    %c0_25 = arith.constant 0 : index
    %c0_26 = arith.constant 0 : index
    %c0_27 = arith.constant 0 : index
    %26 = vector.load %arg11[%c0_25, %c0_26, %c0_27] : memref<2x1x16xf32, #tpu.memory_space<vmem>>, vector<1x1x16xf32>
    %27 = vector.shape_cast %26 : vector<1x1x16xf32> to vector<1x16xf32>
    %28 = vector.broadcast %27 : vector<1x16xf32> to vector<64x16xf32>
    %29 = arith.addf %25, %28 : vector<64x16xf32>
    %30 = arith.truncf %29 : vector<64x16xf32> to vector<64x16xbf16>
    %cst_28 = arith.constant dense<0.000000e+00> : vector<32x64xf32>
    %31 = tpu.matmul %14, %22, %cst_28 {dimension_numbers = #tpu.dot_dimension_numbers<[1], [1], [0], [0], [0, 0, 1, 0], [], []>} : vector<32x16xbf16>, vector<64x16xbf16>, vector<32x64xf32> -> vector<32x64xf32>
    %c0_29 = arith.constant 0 : index
    %c0_30 = arith.constant 0 : index
    %c0_31 = arith.constant 0 : index
    %c0_32 = arith.constant 0 : index
    %32 = vector.load %arg5[%c0_29, %c0_30, %c0_31, %c0_32] : memref<1x2x32x64xbf16, #tpu.memory_space<vmem>>, vector<1x1x32x64xbf16>
    %33 = vector.shape_cast %32 : vector<1x1x32x64xbf16> to vector<32x64xbf16>
    %34 = arith.extf %33 : vector<32x64xbf16> to vector<32x64xf32>
    %35 = arith.addf %31, %34 : vector<32x64xf32>
    %cst_33 = arith.constant dense<0xFF800000> : vector<32xf32>
    %36 = vector.multi_reduction <maximumf>, %35, %cst_33 [1] : vector<32x64xf32> to vector<32xf32>
    %37 = vector.shape_cast %36 : vector<32xf32> to vector<32x1xf32>
    %38 = vector.broadcast %37 : vector<32x1xf32> to vector<32x64xf32>
    %39 = arith.subf %35, %38 : vector<32x64xf32>
    %40 = math.exp %39 : vector<32x64xf32>
    %cst_34 = arith.constant dense<0.000000e+00> : vector<32xf32>
    %41 = vector.multi_reduction <add>, %40, %cst_34 [1] : vector<32x64xf32> to vector<32xf32>
    %42 = vector.shape_cast %41 : vector<32xf32> to vector<32x1xf32>
    %43 = tpu.reciprocal %42 {approx = true} : vector<32x1xf32> -> vector<32x1xf32>
    %44 = vector.broadcast %43 : vector<32x1xf32> to vector<32x64xf32>
    %45 = arith.mulf %40, %44 : vector<32x64xf32>
    %46 = arith.truncf %45 : vector<32x64xf32> to vector<32x64xbf16>
    %cst_35 = arith.constant dense<0.000000e+00> : vector<32x16xf32>
    %47 = tpu.matmul %46, %30, %cst_35 {dimension_numbers = #tpu.dot_dimension_numbers<[1], [0], [0], [1], [0, 0, 1, 1], [], []>} : vector<32x64xbf16>, vector<64x16xbf16>, vector<32x16xf32> -> vector<32x16xf32>
    %48 = arith.truncf %47 : vector<32x16xf32> to vector<32x16xbf16>
    %c0_36 = arith.constant 0 : index
    %c0_37 = arith.constant 0 : index
    %c0_38 = arith.constant 0 : index
    %49 = vector.load %arg12[%c0_36, %c0_37, %c0_38] : memref<2x16x32xbf16, #tpu.memory_space<vmem>>, vector<1x16x32xbf16>
    %50 = vector.shape_cast %49 : vector<1x16x32xbf16> to vector<16x32xbf16>
    %cst_39 = arith.constant dense<0.000000e+00> : vector<32x32xf32>
    %51 = tpu.matmul %48, %50, %cst_39 {dimension_numbers = #tpu.dot_dimension_numbers<[1], [0], [0], [1], [0, 0, 1, 1], [], []>} : vector<32x16xbf16>, vector<16x32xbf16>, vector<32x32xf32> -> vector<32x32xf32>
    %c1 = arith.constant 1 : index
    %c0_40 = arith.constant 0 : index
    %c0_41 = arith.constant 0 : index
    %52 = vector.load %arg6[%c1, %c0_40, %c0_41] : memref<2x32x16xbf16, #tpu.memory_space<vmem>>, vector<1x32x16xbf16>
    %53 = vector.shape_cast %52 : vector<1x32x16xbf16> to vector<32x16xbf16>
    %cst_42 = arith.constant dense<0.000000e+00> : vector<32x16xf32>
    %54 = tpu.matmul %1, %53, %cst_42 {dimension_numbers = #tpu.dot_dimension_numbers<[1], [0], [0], [1], [0, 0, 1, 1], [], []>} : vector<32x32xbf16>, vector<32x16xbf16>, vector<32x16xf32> -> vector<32x16xf32>
    %c1_43 = arith.constant 1 : index
    %c0_44 = arith.constant 0 : index
    %c0_45 = arith.constant 0 : index
    %55 = vector.load %arg7[%c1_43, %c0_44, %c0_45] : memref<2x1x16xf32, #tpu.memory_space<vmem>>, vector<1x1x16xf32>
    %56 = vector.shape_cast %55 : vector<1x1x16xf32> to vector<1x16xf32>
    %57 = vector.broadcast %56 : vector<1x16xf32> to vector<32x16xf32>
    %58 = arith.addf %54, %57 : vector<32x16xf32>
    %59 = arith.truncf %58 : vector<32x16xf32> to vector<32x16xbf16>
    %c1_46 = arith.constant 1 : index
    %c0_47 = arith.constant 0 : index
    %c0_48 = arith.constant 0 : index
    %60 = vector.load %arg8[%c1_46, %c0_47, %c0_48] : memref<2x32x16xbf16, #tpu.memory_space<vmem>>, vector<1x32x16xbf16>
    %61 = vector.shape_cast %60 : vector<1x32x16xbf16> to vector<32x16xbf16>
    %cst_49 = arith.constant dense<0.000000e+00> : vector<64x16xf32>
    %62 = tpu.matmul %6, %61, %cst_49 {dimension_numbers = #tpu.dot_dimension_numbers<[1], [0], [0], [1], [0, 0, 1, 1], [], []>} : vector<64x32xbf16>, vector<32x16xbf16>, vector<64x16xf32> -> vector<64x16xf32>
    %c1_50 = arith.constant 1 : index
    %c0_51 = arith.constant 0 : index
    %c0_52 = arith.constant 0 : index
    %63 = vector.load %arg9[%c1_50, %c0_51, %c0_52] : memref<2x1x16xf32, #tpu.memory_space<vmem>>, vector<1x1x16xf32>
    %64 = vector.shape_cast %63 : vector<1x1x16xf32> to vector<1x16xf32>
    %65 = vector.broadcast %64 : vector<1x16xf32> to vector<64x16xf32>
    %66 = arith.addf %62, %65 : vector<64x16xf32>
    %67 = arith.truncf %66 : vector<64x16xf32> to vector<64x16xbf16>
    %c1_53 = arith.constant 1 : index
    %c0_54 = arith.constant 0 : index
    %c0_55 = arith.constant 0 : index
    %68 = vector.load %arg10[%c1_53, %c0_54, %c0_55] : memref<2x32x16xbf16, #tpu.memory_space<vmem>>, vector<1x32x16xbf16>
    %69 = vector.shape_cast %68 : vector<1x32x16xbf16> to vector<32x16xbf16>
    %cst_56 = arith.constant dense<0.000000e+00> : vector<64x16xf32>
    %70 = tpu.matmul %6, %69, %cst_56 {dimension_numbers = #tpu.dot_dimension_numbers<[1], [0], [0], [1], [0, 0, 1, 1], [], []>} : vector<64x32xbf16>, vector<32x16xbf16>, vector<64x16xf32> -> vector<64x16xf32>
    %c1_57 = arith.constant 1 : index
    %c0_58 = arith.constant 0 : index
    %c0_59 = arith.constant 0 : index
    %71 = vector.load %arg11[%c1_57, %c0_58, %c0_59] : memref<2x1x16xf32, #tpu.memory_space<vmem>>, vector<1x1x16xf32>
    %72 = vector.shape_cast %71 : vector<1x1x16xf32> to vector<1x16xf32>
    %73 = vector.broadcast %72 : vector<1x16xf32> to vector<64x16xf32>
    %74 = arith.addf %70, %73 : vector<64x16xf32>
    %75 = arith.truncf %74 : vector<64x16xf32> to vector<64x16xbf16>
    %cst_60 = arith.constant dense<0.000000e+00> : vector<32x64xf32>
    %76 = tpu.matmul %59, %67, %cst_60 {dimension_numbers = #tpu.dot_dimension_numbers<[1], [1], [0], [0], [0, 0, 1, 0], [], []>} : vector<32x16xbf16>, vector<64x16xbf16>, vector<32x64xf32> -> vector<32x64xf32>
    %c0_61 = arith.constant 0 : index
    %c1_62 = arith.constant 1 : index
    %c0_63 = arith.constant 0 : index
    %c0_64 = arith.constant 0 : index
    %77 = vector.load %arg5[%c0_61, %c1_62, %c0_63, %c0_64] : memref<1x2x32x64xbf16, #tpu.memory_space<vmem>>, vector<1x1x32x64xbf16>
    %78 = vector.shape_cast %77 : vector<1x1x32x64xbf16> to vector<32x64xbf16>
    %79 = arith.extf %78 : vector<32x64xbf16> to vector<32x64xf32>
    %80 = arith.addf %76, %79 : vector<32x64xf32>
    %cst_65 = arith.constant dense<0xFF800000> : vector<32xf32>
    %81 = vector.multi_reduction <maximumf>, %80, %cst_65 [1] : vector<32x64xf32> to vector<32xf32>
    %82 = vector.shape_cast %81 : vector<32xf32> to vector<32x1xf32>
    %83 = vector.broadcast %82 : vector<32x1xf32> to vector<32x64xf32>
    %84 = arith.subf %80, %83 : vector<32x64xf32>
    %85 = math.exp %84 : vector<32x64xf32>
    %cst_66 = arith.constant dense<0.000000e+00> : vector<32xf32>
    %86 = vector.multi_reduction <add>, %85, %cst_66 [1] : vector<32x64xf32> to vector<32xf32>
    %87 = vector.shape_cast %86 : vector<32xf32> to vector<32x1xf32>
    %88 = tpu.reciprocal %87 {approx = true} : vector<32x1xf32> -> vector<32x1xf32>
    %89 = vector.broadcast %88 : vector<32x1xf32> to vector<32x64xf32>
    %90 = arith.mulf %85, %89 : vector<32x64xf32>
    %91 = arith.truncf %90 : vector<32x64xf32> to vector<32x64xbf16>
    %cst_67 = arith.constant dense<0.000000e+00> : vector<32x16xf32>
    %92 = tpu.matmul %91, %75, %cst_67 {dimension_numbers = #tpu.dot_dimension_numbers<[1], [0], [0], [1], [0, 0, 1, 1], [], []>} : vector<32x64xbf16>, vector<64x16xbf16>, vector<32x16xf32> -> vector<32x16xf32>
    %93 = arith.truncf %92 : vector<32x16xf32> to vector<32x16xbf16>
    %c1_68 = arith.constant 1 : index
    %c0_69 = arith.constant 0 : index
    %c0_70 = arith.constant 0 : index
    %94 = vector.load %arg12[%c1_68, %c0_69, %c0_70] : memref<2x16x32xbf16, #tpu.memory_space<vmem>>, vector<1x16x32xbf16>
    %95 = vector.shape_cast %94 : vector<1x16x32xbf16> to vector<16x32xbf16>
    %cst_71 = arith.constant dense<0.000000e+00> : vector<32x32xf32>
    %96 = tpu.matmul %93, %95, %cst_71 {dimension_numbers = #tpu.dot_dimension_numbers<[1], [0], [0], [1], [0, 0, 1, 1], [], []>} : vector<32x16xbf16>, vector<16x32xbf16>, vector<32x32xf32> -> vector<32x32xf32>
    %97 = arith.addf %51, %96 : vector<32x32xf32>
    %c0_72 = arith.constant 0 : index
    %c0_73 = arith.constant 0 : index
    %98 = vector.load %arg13[%c0_72, %c0_73] : memref<1x32xf32, #tpu.memory_space<vmem>>, vector<1x32xf32>
    %99 = vector.broadcast %98 : vector<1x32xf32> to vector<32x32xf32>
    %100 = arith.addf %97, %99 : vector<32x32xf32>
    %c0_74 = arith.constant 0 : index
    %c0_75 = arith.constant 0 : index
    %c0_76 = arith.constant 0 : index
    %101 = vector.load %arg14[%c0_74, %c0_75, %c0_76] : memref<1x32x32xf32, #tpu.memory_space<vmem>>, vector<1x32x32xf32>
    %102 = vector.shape_cast %101 : vector<1x32x32xf32> to vector<32x32xf32>
    %103 = vector.shape_cast %100 : vector<32x32xf32> to vector<1x32x32xf32>
    tpu.vector_store %arg14[%c0_74, %c0_75, %c0_76], %103 {strides = array<i32>} : memref<1x32x32xf32, #tpu.memory_space<vmem>>, vector<1x32x32xf32>,
    return
  }
  func.func @transform_0(%arg0: i32, %arg1: i32) -> (i32, i32, i32) {
    %c0_i32 = arith.constant 0 : i32
    %c0_i32_0 = arith.constant 0 : i32
    return %arg0, %arg1, %c0_i32 : i32, i32, i32
  }
  func.func @transform_1(%arg0: i32, %arg1: i32) -> (i32, i32, i32) {
    %c0_i32 = arith.constant 0 : i32
    %c0_i32_0 = arith.constant 0 : i32
    %c0_i32_1 = arith.constant 0 : i32
    return %arg0, %c0_i32, %c0_i32_0 : i32, i32, i32
  }
  func.func @transform_2(%arg0: i32, %arg1: i32) -> (i32, i32, i32) {
    %c1_i32 = arith.constant 1 : i32
    %c0_i32 = arith.constant 0 : i32
    %c0_i32_0 = arith.constant 0 : i32
    return %arg0, %c1_i32, %c0_i32 : i32, i32, i32
  }
  func.func @transform_3(%arg0: i32, %arg1: i32) -> (i32, i32, i32, i32) {
    %c0_i32 = arith.constant 0 : i32
    %c0_i32_0 = arith.constant 0 : i32
    %c0_i32_1 = arith.constant 0 : i32
    %c0_i32_2 = arith.constant 0 : i32
    return %arg1, %c0_i32, %c0_i32_0, %c0_i32_1 : i32, i32, i32, i32
  }
  func.func @transform_4(%arg0: i32, %arg1: i32) -> (i32, i32, i32) {
    %c0_i32 = arith.constant 0 : i32
    %c0_i32_0 = arith.constant 0 : i32
    %c0_i32_1 = arith.constant 0 : i32
    %c0_i32_2 = arith.constant 0 : i32
    return %c0_i32, %c0_i32_0, %c0_i32_1 : i32, i32, i32
  }
  func.func @transform_5(%arg0: i32, %arg1: i32) -> (i32, i32, i32) {
    %c0_i32 = arith.constant 0 : i32
    %c0_i32_0 = arith.constant 0 : i32
    %c0_i32_1 = arith.constant 0 : i32
    %c0_i32_2 = arith.constant 0 : i32
    return %c0_i32, %c0_i32_0, %c0_i32_1 : i32, i32, i32
  }
  func.func @transform_6(%arg0: i32, %arg1: i32) -> (i32, i32, i32) {
    %c0_i32 = arith.constant 0 : i32
    %c0_i32_0 = arith.constant 0 : i32
    %c0_i32_1 = arith.constant 0 : i32
    %c0_i32_2 = arith.constant 0 : i32
    return %c0_i32, %c0_i32_0, %c0_i32_1 : i32, i32, i32
  }
  func.func @transform_7(%arg0: i32, %arg1: i32) -> (i32, i32, i32) {
    %c0_i32 = arith.constant 0 : i32
    %c0_i32_0 = arith.constant 0 : i32
    %c0_i32_1 = arith.constant 0 : i32
    %c0_i32_2 = arith.constant 0 : i32
    return %c0_i32, %c0_i32_0, %c0_i32_1 : i32, i32, i32
  }
  func.func @transform_8(%arg0: i32, %arg1: i32) -> (i32, i32, i32) {
    %c0_i32 = arith.constant 0 : i32
    %c0_i32_0 = arith.constant 0 : i32
    %c0_i32_1 = arith.constant 0 : i32
    %c0_i32_2 = arith.constant 0 : i32
    return %c0_i32, %c0_i32_0, %c0_i32_1 : i32, i32, i32
  }
  func.func @transform_9(%arg0: i32, %arg1: i32) -> (i32, i32, i32) {
    %c0_i32 = arith.constant 0 : i32
    %c0_i32_0 = arith.constant 0 : i32
    %c0_i32_1 = arith.constant 0 : i32
    %c0_i32_2 = arith.constant 0 : i32
    return %c0_i32, %c0_i32_0, %c0_i32_1 : i32, i32, i32
  }
  func.func @transform_10(%arg0: i32, %arg1: i32) -> (i32, i32, i32) {
    %c0_i32 = arith.constant 0 : i32
    %c0_i32_0 = arith.constant 0 : i32
    %c0_i32_1 = arith.constant 0 : i32
    %c0_i32_2 = arith.constant 0 : i32
    return %c0_i32, %c0_i32_0, %c0_i32_1 : i32, i32, i32
  }
  func.func @transform_11(%arg0: i32, %arg1: i32) -> (i32, i32) {
    %c0_i32 = arith.constant 0 : i32
    %c0_i32_0 = arith.constant 0 : i32
    %c0_i32_1 = arith.constant 0 : i32
    return %c0_i32, %c0_i32_0 : i32, i32
  }
  func.func @transform_12(%arg0: i32, %arg1: i32) -> (i32, i32, i32) {
    %c0_i32 = arith.constant 0 : i32
    %c0_i32_0 = arith.constant 0 : i32
    return %arg0, %arg1, %c0_i32 : i32, i32, i32
  }
}

module attributes {stable_mosaic.version = 11 : i64} {
  func.func @_na2d_kernel(%arg0: i32, %arg1: i32, %arg2: memref<1x32x32xbf16, #tpu.memory_space<vmem>>, %arg3: memref<1x32x32xbf16, #tpu.memory_space<vmem>>, %arg4: memref<1x32x32xbf16, #tpu.memory_space<vmem>>, %arg5: memref<1x2x32x64xbf16, #tpu.memory_space<vmem>>, %arg6: memref<2x32x16xbf16, #tpu.memory_space<vmem>>, %arg7: memref<2x1x16xf32, #tpu.memory_space<vmem>>, %arg8: memref<2x32x16xbf16, #tpu.memory_space<vmem>>, %arg9: memref<2x1x16xf32, #tpu.memory_space<vmem>>, %arg10: memref<2x32x16xbf16, #tpu.memory_space<vmem>>, %arg11: memref<2x1x16xf32, #tpu.memory_space<vmem>>, %arg12: memref<2x16x32xbf16, #tpu.memory_space<vmem>>, %arg13: memref<1x32xf32, #tpu.memory_space<vmem>>, %arg14: memref<1x32x32xf32, #tpu.memory_space<vmem>>) attributes {dimension_semantics = [#tpu.dimension_semantics<parallel>, #tpu.dimension_semantics<parallel>], iteration_bounds = array<i64: 2, 2>, scalar_prefetch = 0 : i64, scratch_operands = 0 : i64, tpu.core_type = #tpu.core_type<tc>, window_params = [{transform_indices = @transform_0, window_bounds = array<i64: 1, 32, 32>}, {transform_indices = @transform_1, window_bounds = array<i64: 1, 32, 32>}, {transform_indices = @transform_2, window_bounds = array<i64: 1, 32, 32>}, {transform_indices = @transform_3, window_bounds = array<i64: 1, 2, 32, 64>}, {pipeline_mode = #tpu.pipeline_mode<synchronous>, transform_indices = @transform_4, window_bounds = array<i64: 2, 32, 16>}, {pipeline_mode = #tpu.pipeline_mode<synchronous>, transform_indices = @transform_5, window_bounds = array<i64: 2, 1, 16>}, {pipeline_mode = #tpu.pipeline_mode<synchronous>, transform_indices = @transform_6, window_bounds = array<i64: 2, 32, 16>}, {pipeline_mode = #tpu.pipeline_mode<synchronous>, transform_indices = @transform_7, window_bounds = array<i64: 2, 1, 16>}, {pipeline_mode = #tpu.pipeline_mode<synchronous>, transform_indices = @transform_8, window_bounds = array<i64: 2, 32, 16>}, {pipeline_mode = #tpu.pipeline_mode<synchronous>, transform_indices = @transform_9, window_bounds = array<i64: 2, 1, 16>}, {pipeline_mode = #tpu.pipeline_mode<synchronous>, transform_indices = @transform_10, window_bounds = array<i64: 2, 16, 32>}, {pipeline_mode = #tpu.pipeline_mode<synchronous>, transform_indices = @transform_11, window_bounds = array<i64: 1, 32>}, {transform_indices = @transform_12, window_bounds = array<i64: 1, 32, 32>}]} {
    %c0 = arith.constant 0 : index
    %c0_0 = arith.constant 0 : index
    %c0_1 = arith.constant 0 : index
    %0 = vector.load %arg2[%c0, %c0_0, %c0_1] : memref<1x32x32xbf16, #tpu.memory_space<vmem>>, vector<1x32x32xbf16>
    %1 = vector.shape_cast %0 : vector<1x32x32xbf16> to vector<32x32xbf16>
    %c0_2 = arith.constant 0 : index
    %c0_3 = arith.constant 0 : index
    %c0_4 = arith.constant 0 : index
    %2 = vector.load %arg3[%c0_2, %c0_3, %c0_4] : memref<1x32x32xbf16, #tpu.memory_space<vmem>>, vector<1x32x32xbf16>
    %3 = vector.shape_cast %2 : vector<1x32x32xbf16> to vector<32x32xbf16>
    %c0_5 = arith.constant 0 : index
    %c0_6 = arith.constant 0 : index
    %c0_7 = arith.constant 0 : index
    %4 = vector.load %arg4[%c0_5, %c0_6, %c0_7] : memref<1x32x32xbf16, #tpu.memory_space<vmem>>, vector<1x32x32xbf16>
    %5 = vector.shape_cast %4 : vector<1x32x32xbf16> to vector<32x32xbf16>
    %6 = tpu.concatenate %3, %5 in 0 : vector<32x32xbf16>, vector<32x32xbf16> -> vector<64x32xbf16>
    %c0_8 = arith.constant 0 : index
    %c0_9 = arith.constant 0 : index
    %c0_10 = arith.constant 0 : index
    %7 = vector.load %arg6[%c0_8, %c0_9, %c0_10] : memref<2x32x16xbf16, #tpu.memory_space<vmem>>, vector<1x32x16xbf16>
    %8 = vector.shape_cast %7 : vector<1x32x16xbf16> to vector<32x16xbf16>
    %cst = arith.constant dense<0.000000e+00> : vector<32x16xf32>
    %9 = tpu.matmul %1, %8, %cst {dimension_numbers = #tpu.dot_dimension_numbers<[1], [0], [0], [1], [0, 0, 1, 1], [], []>} : vector<32x32xbf16>, vector<32x16xbf16>, vector<32x16xf32> -> vector<32x16xf32>
    %c0_11 = arith.constant 0 : index
    %c0_12 = arith.constant 0 : index
    %c0_13 = arith.constant 0 : index
    %10 = vector.load %arg7[%c0_11, %c0_12, %c0_13] : memref<2x1x16xf32, #tpu.memory_space<vmem>>, vector<1x1x16xf32>
    %11 = vector.shape_cast %10 : vector<1x1x16xf32> to vector<1x16xf32>
    %12 = vector.broadcast %11 : vector<1x16xf32> to vector<32x16xf32>
    %13 = arith.addf %9, %12 : vector<32x16xf32>
    %14 = arith.truncf %13 : vector<32x16xf32> to vector<32x16xbf16>
    %c0_14 = arith.constant 0 : index
    %c0_15 = arith.constant 0 : index
    %c0_16 = arith.constant 0 : index
    %15 = vector.load %arg8[%c0_14, %c0_15, %c0_16] : memref<2x32x16xbf16, #tpu.memory_space<vmem>>, vector<1x32x16xbf16>
    %16 = vector.shape_cast %15 : vector<1x32x16xbf16> to vector<32x16xbf16>
    %cst_17 = arith.constant dense<0.000000e+00> : vector<64x16xf32>
    %17 = tpu.matmul %6, %16, %cst_17 {dimension_numbers = #tpu.dot_dimension_numbers<[1], [0], [0], [1], [0, 0, 1, 1], [], []>} : vector<64x32xbf16>, vector<32x16xbf16>, vector<64x16xf32> -> vector<64x16xf32>
    %c0_18 = arith.constant 0 : index
    %c0_19 = arith.constant 0 : index
    %c0_20 = arith.constant 0 : index
    %18 = vector.load %arg9[%c0_18, %c0_19, %c0_20] : memref<2x1x16xf32, #tpu.memory_space<vmem>>, vector<1x1x16xf32>
    %19 = vector.shape_cast %18 : vector<1x1x16xf32> to vector<1x16xf32>
    %20 = vector.broadcast %19 : vector<1x16xf32> to vector<64x16xf32>
    %21 = arith.addf %17, %20 : vector<64x16xf32>
    %22 = arith.truncf %21 : vector<64x16xf32> to vector<64x16xbf16>
    %c0_21 = arith.constant 0 : index
    %c0_22 = arith.constant 0 : index
    %c0_23 = arith.constant 0 : index
    %23 = vector.load %arg10[%c0_21, %c0_22, %c0_23] : memref<2x32x16xbf16, #tpu.memory_space<vmem>>, vector<1x32x16xbf16>
    %24 = vector.shape_cast %23 : vector<1x32x16xbf16> to vector<32x16xbf16>
    %cst_24 = arith.constant dense<0.000000e+00> : vector<64x16xf32>
    %25 = tpu.matmul %6, %24, %cst_24 {dimension_numbers = #tpu.dot_dimension_numbers<[1], [0], [0], [1], [0, 0, 1, 1], [], []>} : vector<64x32xbf16>, vector<32x16xbf16>, vector<64x16xf32> -> vector<64x16xf32>
    %c0_25 = arith.constant 0 : index
    %c0_26 = arith.constant 0 : index
    %c0_27 = arith.constant 0 : index
    %26 = vector.load %arg11[%c0_25, %c0_26, %c0_27] : memref<2x1x16xf32, #tpu.memory_space<vmem>>, vector<1x1x16xf32>
    %27 = vector.shape_cast %26 : vector<1x1x16xf32> to vector<1x16xf32>
    %28 = vector.broadcast %27 : vector<1x16xf32> to vector<64x16xf32>
    %29 = arith.addf %25, %28 : vector<64x16xf32>
    %30 = arith.truncf %29 : vector<64x16xf32> to vector<64x16xbf16>
    %cst_28 = arith.constant dense<0.000000e+00> : vector<32x64xf32>
    %31 = tpu.matmul %14, %22, %cst_28 {dimension_numbers = #tpu.dot_dimension_numbers<[1], [1], [0], [0], [0, 0, 1, 0], [], []>} : vector<32x16xbf16>, vector<64x16xbf16>, vector<32x64xf32> -> vector<32x64xf32>
    %c0_29 = arith.constant 0 : index
    %c0_30 = arith.constant 0 : index
    %c0_31 = arith.constant 0 : index
    %c0_32 = arith.constant 0 : index
    %32 = vector.load %arg5[%c0_29, %c0_30, %c0_31, %c0_32] : memref<1x2x32x64xbf16, #tpu.memory_space<vmem>>, vector<1x1x32x64xbf16>
    %33 = vector.shape_cast %32 : vector<1x1x32x64xbf16> to vector<32x64xbf16>
    %34 = arith.extf %33 : vector<32x64xbf16> to vector<32x64xf32>
    %35 = arith.addf %31, %34 : vector<32x64xf32>
    %cst_33 = arith.constant dense<0xFF800000> : vector<32xf32>
    %36 = vector.multi_reduction <maximumf>, %35, %cst_33 [1] : vector<32x64xf32> to vector<32xf32>
    %37 = vector.shape_cast %36 : vector<32xf32> to vector<32x1xf32>
    %38 = vector.broadcast %37 : vector<32x1xf32> to vector<32x64xf32>
    %39 = arith.subf %35, %38 : vector<32x64xf32>
    %40 = math.exp %39 : vector<32x64xf32>
    %cst_34 = arith.constant dense<0.000000e+00> : vector<32xf32>
    %41 = vector.multi_reduction <add>, %40, %cst_34 [1] : vector<32x64xf32> to vector<32xf32>
    %42 = vector.shape_cast %41 : vector<32xf32> to vector<32x1xf32>
    %43 = tpu.reciprocal %42 {approx = true} : vector<32x1xf32> -> vector<32x1xf32>
    %44 = vector.broadcast %43 : vector<32x1xf32> to vector<32x64xf32>
    %45 = arith.mulf %40, %44 : vector<32x64xf32>
    %46 = arith.truncf %45 : vector<32x64xf32> to vector<32x64xbf16>
    %cst_35 = arith.constant dense<0.000000e+00> : vector<32x16xf32>
    %47 = tpu.matmul %46, %30, %cst_35 {dimension_numbers = #tpu.dot_dimension_numbers<[1], [0], [0], [1], [0, 0, 1, 1], [], []>} : vector<32x64xbf16>, vector<64x16xbf16>, vector<32x16xf32> -> vector<32x16xf32>
    %48 = arith.truncf %47 : vector<32x16xf32> to vector<32x16xbf16>
    %c0_36 = arith.constant 0 : index
    %c0_37 = arith.constant 0 : index
    %c0_38 = arith.constant 0 : index
    %49 = vector.load %arg12[%c0_36, %c0_37, %c0_38] : memref<2x16x32xbf16, #tpu.memory_space<vmem>>, vector<1x16x32xbf16>
    %50 = vector.shape_cast %49 : vector<1x16x32xbf16> to vector<16x32xbf16>
    %cst_39 = arith.constant dense<0.000000e+00> : vector<32x32xf32>
    %51 = tpu.matmul %48, %50, %cst_39 {dimension_numbers = #tpu.dot_dimension_numbers<[1], [0], [0], [1], [0, 0, 1, 1], [], []>} : vector<32x16xbf16>, vector<16x32xbf16>, vector<32x32xf32> -> vector<32x32xf32>
    %c1 = arith.constant 1 : index
    %c0_40 = arith.constant 0 : index
    %c0_41 = arith.constant 0 : index
    %52 = vector.load %arg6[%c1, %c0_40, %c0_41] : memref<2x32x16xbf16, #tpu.memory_space<vmem>>, vector<1x32x16xbf16>
    %53 = vector.shape_cast %52 : vector<1x32x16xbf16> to vector<32x16xbf16>
    %cst_42 = arith.constant dense<0.000000e+00> : vector<32x16xf32>
    %54 = tpu.matmul %1, %53, %cst_42 {dimension_numbers = #tpu.dot_dimension_numbers<[1], [0], [0], [1], [0, 0, 1, 1], [], []>} : vector<32x32xbf16>, vector<32x16xbf16>, vector<32x16xf32> -> vector<32x16xf32>
    %c1_43 = arith.constant 1 : index
    %c0_44 = arith.constant 0 : index
    %c0_45 = arith.constant 0 : index
    %55 = vector.load %arg7[%c1_43, %c0_44, %c0_45] : memref<2x1x16xf32, #tpu.memory_space<vmem>>, vector<1x1x16xf32>
    %56 = vector.shape_cast %55 : vector<1x1x16xf32> to vector<1x16xf32>
    %57 = vector.broadcast %56 : vector<1x16xf32> to vector<32x16xf32>
    %58 = arith.addf %54, %57 : vector<32x16xf32>
    %59 = arith.truncf %58 : vector<32x16xf32> to vector<32x16xbf16>
    %c1_46 = arith.constant 1 : index
    %c0_47 = arith.constant 0 : index
    %c0_48 = arith.constant 0 : index
    %60 = vector.load %arg8[%c1_46, %c0_47, %c0_48] : memref<2x32x16xbf16, #tpu.memory_space<vmem>>, vector<1x32x16xbf16>
    %61 = vector.shape_cast %60 : vector<1x32x16xbf16> to vector<32x16xbf16>
    %cst_49 = arith.constant dense<0.000000e+00> : vector<64x16xf32>
    %62 = tpu.matmul %6, %61, %cst_49 {dimension_numbers = #tpu.dot_dimension_numbers<[1], [0], [0], [1], [0, 0, 1, 1], [], []>} : vector<64x32xbf16>, vector<32x16xbf16>, vector<64x16xf32> -> vector<64x16xf32>
    %c1_50 = arith.constant 1 : index
    %c0_51 = arith.constant 0 : index
    %c0_52 = arith.constant 0 : index
    %63 = vector.load %arg9[%c1_50, %c0_51, %c0_52] : memref<2x1x16xf32, #tpu.memory_space<vmem>>, vector<1x1x16xf32>
    %64 = vector.shape_cast %63 : vector<1x1x16xf32> to vector<1x16xf32>
    %65 = vector.broadcast %64 : vector<1x16xf32> to vector<64x16xf32>
    %66 = arith.addf %62, %65 : vector<64x16xf32>
    %67 = arith.truncf %66 : vector<64x16xf32> to vector<64x16xbf16>
    %c1_53 = arith.constant 1 : index
    %c0_54 = arith.constant 0 : index
    %c0_55 = arith.constant 0 : index
    %68 = vector.load %arg10[%c1_53, %c0_54, %c0_55] : memref<2x32x16xbf16, #tpu.memory_space<vmem>>, vector<1x32x16xbf16>
    %69 = vector.shape_cast %68 : vector<1x32x16xbf16> to vector<32x16xbf16>
    %cst_56 = arith.constant dense<0.000000e+00> : vector<64x16xf32>
    %70 = tpu.matmul %6, %69, %cst_56 {dimension_numbers = #tpu.dot_dimension_numbers<[1], [0], [0], [1], [0, 0, 1, 1], [], []>} : vector<64x32xbf16>, vector<32x16xbf16>, vector<64x16xf32> -> vector<64x16xf32>
    %c1_57 = arith.constant 1 : index
    %c0_58 = arith.constant 0 : index
    %c0_59 = arith.constant 0 : index
    %71 = vector.load %arg11[%c1_57, %c0_58, %c0_59] : memref<2x1x16xf32, #tpu.memory_space<vmem>>, vector<1x1x16xf32>
    %72 = vector.shape_cast %71 : vector<1x1x16xf32> to vector<1x16xf32>
    %73 = vector.broadcast %72 : vector<1x16xf32> to vector<64x16xf32>
    %74 = arith.addf %70, %73 : vector<64x16xf32>
    %75 = arith.truncf %74 : vector<64x16xf32> to vector<64x16xbf16>
    %cst_60 = arith.constant dense<0.000000e+00> : vector<32x64xf32>
    %76 = tpu.matmul %59, %67, %cst_60 {dimension_numbers = #tpu.dot_dimension_numbers<[1], [1], [0], [0], [0, 0, 1, 0], [], []>} : vector<32x16xbf16>, vector<64x16xbf16>, vector<32x64xf32> -> vector<32x64xf32>
    %c0_61 = arith.constant 0 : index
    %c1_62 = arith.constant 1 : index
    %c0_63 = arith.constant 0 : index
    %c0_64 = arith.constant 0 : index
    %77 = vector.load %arg5[%c0_61, %c1_62, %c0_63, %c0_64] : memref<1x2x32x64xbf16, #tpu.memory_space<vmem>>, vector<1x1x32x64xbf16>
    %78 = vector.shape_cast %77 : vector<1x1x32x64xbf16> to vector<32x64xbf16>
    %79 = arith.extf %78 : vector<32x64xbf16> to vector<32x64xf32>
    %80 = arith.addf %76, %79 : vector<32x64xf32>
    %cst_65 = arith.constant dense<0xFF800000> : vector<32xf32>
    %81 = vector.multi_reduction <maximumf>, %80, %cst_65 [1] : vector<32x64xf32> to vector<32xf32>
    %82 = vector.shape_cast %81 : vector<32xf32> to vector<32x1xf32>
    %83 = vector.broadcast %82 : vector<32x1xf32> to vector<32x64xf32>
    %84 = arith.subf %80, %83 : vector<32x64xf32>
    %85 = math.exp %84 : vector<32x64xf32>
    %cst_66 = arith.constant dense<0.000000e+00> : vector<32xf32>
    %86 = vector.multi_reduction <add>, %85, %cst_66 [1] : vector<32x64xf32> to vector<32xf32>
    %87 = vector.shape_cast %86 : vector<32xf32> to vector<32x1xf32>
    %88 = tpu.reciprocal %87 {approx = true} : vector<32x1xf32> -> vector<32x1xf32>
    %89 = vector.broadcast %88 : vector<32x1xf32> to vector<32x64xf32>
    %90 = arith.mulf %85, %89 : vector<32x64xf32>
    %91 = arith.truncf %90 : vector<32x64xf32> to vector<32x64xbf16>
    %cst_67 = arith.constant dense<0.000000e+00> : vector<32x16xf32>
    %92 = tpu.matmul %91, %75, %cst_67 {dimension_numbers = #tpu.dot_dimension_numbers<[1], [0], [0], [1], [0, 0, 1, 1], [], []>} : vector<32x64xbf16>, vector<64x16xbf16>, vector<32x16xf32> -> vector<32x16xf32>
    %93 = arith.truncf %92 : vector<32x16xf32> to vector<32x16xbf16>
    %c1_68 = arith.constant 1 : index
    %c0_69 = arith.constant 0 : index
    %c0_70 = arith.constant 0 : index
    %94 = vector.load %arg12[%c1_68, %c0_69, %c0_70] : memref<2x16x32xbf16, #tpu.memory_space<vmem>>, vector<1x16x32xbf16>
    %95 = vector.shape_cast %94 : vector<1x16x32xbf16> to vector<16x32xbf16>
    %cst_71 = arith.constant dense<0.000000e+00> : vector<32x32xf32>
    %96 = tpu.matmul %93, %95, %cst_71 {dimension_numbers = #tpu.dot_dimension_numbers<[1], [0], [0], [1], [0, 0, 1, 1], [], []>} : vector<32x16xbf16>, vector<16x32xbf16>, vector<32x32xf32> -> vector<32x32xf32>
    %97 = arith.addf %51, %96 : vector<32x32xf32>
    %c0_72 = arith.constant 0 : index
    %c0_73 = arith.constant 0 : index
    %98 = vector.load %arg13[%c0_72, %c0_73] : memref<1x32xf32, #tpu.memory_space<vmem>>, vector<1x32xf32>
    %99 = vector.broadcast %98 : vector<1x32xf32> to vector<32x32xf32>
    %100 = arith.addf %97, %99 : vector<32x32xf32>
    %c0_74 = arith.constant 0 : index
    %c0_75 = arith.constant 0 : index
    %c0_76 = arith.constant 0 : index
    %101 = vector.load %arg14[%c0_74, %c0_75, %c0_76] : memref<1x32x32xf32, #tpu.memory_space<vmem>>, vector<1x32x32xf32>
    %102 = vector.shape_cast %101 : vector<1x32x32xf32> to vector<32x32xf32>
    %103 = vector.shape_cast %100 : vector<32x32xf32> to vector<1x32x32xf32>
    tpu.vector_store %arg14[%c0_74, %c0_75, %c0_76], %103 {strides = array<i32>} : memref<1x32x32xf32, #tpu.memory_space<vmem>>, vector<1x32x32xf32>,
    return
  }
  func.func @transform_0(%arg0: i32, %arg1: i32) -> (i32, i32, i32) {
    %c0_i32 = arith.constant 0 : i32
    %c0_i32_0 = arith.constant 0 : i32
    return %arg0, %arg1, %c0_i32 : i32, i32, i32
  }
  func.func @transform_1(%arg0: i32, %arg1: i32) -> (i32, i32, i32) {
    %c0_i32 = arith.constant 0 : i32
    %c0_i32_0 = arith.constant 0 : i32
    %c0_i32_1 = arith.constant 0 : i32
    return %arg0, %c0_i32, %c0_i32_0 : i32, i32, i32
  }
  func.func @transform_2(%arg0: i32, %arg1: i32) -> (i32, i32, i32) {
    %c1_i32 = arith.constant 1 : i32
    %c0_i32 = arith.constant 0 : i32
    %c0_i32_0 = arith.constant 0 : i32
    return %arg0, %c1_i32, %c0_i32 : i32, i32, i32
  }
  func.func @transform_3(%arg0: i32, %arg1: i32) -> (i32, i32, i32, i32) {
    %c0_i32 = arith.constant 0 : i32
    %c0_i32_0 = arith.constant 0 : i32
    %c0_i32_1 = arith.constant 0 : i32
    %c0_i32_2 = arith.constant 0 : i32
    return %arg1, %c0_i32, %c0_i32_0, %c0_i32_1 : i32, i32, i32, i32
  }
  func.func @transform_4(%arg0: i32, %arg1: i32) -> (i32, i32, i32) {
    %c0_i32 = arith.constant 0 : i32
    %c0_i32_0 = arith.constant 0 : i32
    %c0_i32_1 = arith.constant 0 : i32
    %c0_i32_2 = arith.constant 0 : i32
    return %c0_i32, %c0_i32_0, %c0_i32_1 : i32, i32, i32
  }
  func.func @transform_5(%arg0: i32, %arg1: i32) -> (i32, i32, i32) {
    %c0_i32 = arith.constant 0 : i32
    %c0_i32_0 = arith.constant 0 : i32
    %c0_i32_1 = arith.constant 0 : i32
    %c0_i32_2 = arith.constant 0 : i32
    return %c0_i32, %c0_i32_0, %c0_i32_1 : i32, i32, i32
  }
  func.func @transform_6(%arg0: i32, %arg1: i32) -> (i32, i32, i32) {
    %c0_i32 = arith.constant 0 : i32
    %c0_i32_0 = arith.constant 0 : i32
    %c0_i32_1 = arith.constant 0 : i32
    %c0_i32_2 = arith.constant 0 : i32
    return %c0_i32, %c0_i32_0, %c0_i32_1 : i32, i32, i32
  }
  func.func @transform_7(%arg0: i32, %arg1: i32) -> (i32, i32, i32) {
    %c0_i32 = arith.constant 0 : i32
    %c0_i32_0 = arith.constant 0 : i32
    %c0_i32_1 = arith.constant 0 : i32
    %c0_i32_2 = arith.constant 0 : i32
    return %c0_i32, %c0_i32_0, %c0_i32_1 : i32, i32, i32
  }
  func.func @transform_8(%arg0: i32, %arg1: i32) -> (i32, i32, i32) {
    %c0_i32 = arith.constant 0 : i32
    %c0_i32_0 = arith.constant 0 : i32
    %c0_i32_1 = arith.constant 0 : i32
    %c0_i32_2 = arith.constant 0 : i32
    return %c0_i32, %c0_i32_0, %c0_i32_1 : i32, i32, i32
  }
  func.func @transform_9(%arg0: i32, %arg1: i32) -> (i32, i32, i32) {
    %c0_i32 = arith.constant 0 : i32
    %c0_i32_0 = arith.constant 0 : i32
    %c0_i32_1 = arith.constant 0 : i32
    %c0_i32_2 = arith.constant 0 : i32
    return %c0_i32, %c0_i32_0, %c0_i32_1 : i32, i32, i32
  }
  func.func @transform_10(%arg0: i32, %arg1: i32) -> (i32, i32, i32) {
    %c0_i32 = arith.constant 0 : i32
    %c0_i32_0 = arith.constant 0 : i32
    %c0_i32_1 = arith.constant 0 : i32
    %c0_i32_2 = arith.constant 0 : i32
    return %c0_i32, %c0_i32_0, %c0_i32_1 : i32, i32, i32
  }
  func.func @transform_11(%arg0: i32, %arg1: i32) -> (i32, i32) {
    %c0_i32 = arith.constant 0 : i32
    %c0_i32_0 = arith.constant 0 : i32
    %c0_i32_1 = arith.constant 0 : i32
    return %c0_i32, %c0_i32_0 : i32, i32
  }
  func.func @transform_12(%arg0: i32, %arg1: i32) -> (i32, i32, i32) {
    %c0_i32 = arith.constant 0 : i32
    %c0_i32_0 = arith.constant 0 : i32
    return %arg0, %arg1, %c0_i32 : i32, i32, i32
  }
}

</mosaic_0001>

<llo_original>
// kernel: tpu_custom_call.1
$region0: #{tpu_custom_call.1}
  #allocation0 [shape = 'u32[]', space=smem, size = 0x4, offset = 0x4, fixed_abs, tag = 'smem constant byte address 0x4 - core index']
  #allocation1 [shape = 'u32[144,128]{1,0:T(1,128)}', space=vmem, size = 0x12000, scoped, tag = 'internal scratch']
  %s0 = inlined_call_operand.vmem [shape: bf16[2,64,32], index: 0, kind: input, shape index: {}]
  %s1 = inlined_call_operand.vmem [shape: bf16[2,64,32], index: 1, kind: input, shape index: {}]
  %s2 = inlined_call_operand.vmem [shape: bf16[2,64,32], index: 2, kind: input, shape index: {}]
  %s3 = inlined_call_operand.vmem [shape: bf16[2,2,32,64], index: 3, kind: input, shape index: {}]
  %s4 = inlined_call_operand.vmem [shape: bf16[2,32,16], index: 4, kind: input, shape index: {}]
  %s5 = inlined_call_operand.vmem [shape: f32[2,1,16], index: 5, kind: input, shape index: {}]
  %s6 = inlined_call_operand.vmem [shape: bf16[2,32,16], index: 6, kind: input, shape index: {}]
  %s7 = inlined_call_operand.vmem [shape: f32[2,1,16], index: 7, kind: input, shape index: {}]
  %s8 = inlined_call_operand.vmem [shape: bf16[2,32,16], index: 8, kind: input, shape index: {}]
  %s9 = inlined_call_operand.vmem [shape: f32[2,1,16], index: 9, kind: input, shape index: {}]
  %s10 = inlined_call_operand.vmem [shape: bf16[2,16,32], index: 10, kind: input, shape index: {}]
  %s11 = inlined_call_operand.vmem [shape: f32[1,32], index: 11, kind: input, shape index: {}]
  %s12 = inlined_call_operand.vmem [shape: f32[2,64,32], index: 12, kind: output, shape index: {}]
  %s13 = sld [smem:[#allocation0]]
  $region81: #{tpu_custom_call.1} parent=0
    _
  %s15 = ssub.s32 1, %s13
  %s16 = scalar_select 0, %s15, %s13
  loop: start=0, step=1, limit=6
  $region2: #{tpu_custom_call.1} parent=0 // loop_pre_header
    _
  $region3: #{tpu_custom_call.1} parent=0 // loop_header
    %s18 = sphi 0, %s22
    %p19 = scmp.ge.s32.totalorder %s18, 6
    %s25 = sphi 0, %s37
    %s26 = sphi 0, %s33
    %s27 = sphi 0, %s25
    %s28 = sphi 0, %s26
    %s29 = sphi 0, %s27
    %s30 = sphi 0, %s28
    %s42 = sphi 0, %s44
    %s45 = sphi 0, %s42
    %s46 = sphi 0, %s45
    %s62 = sphi 0, %s46
    %s68 = sphi 0, %s70
    %s71 = sphi 0, %s68
    %s72 = sphi 0, %s71
    %s88 = sphi 0, %s72
    %s94 = sphi 0, %s96
    %s97 = sphi 0, %s94
    %s98 = sphi 0, %s97
    %s114 = sphi 0, %s98
    %s120 = sphi 0, %s122
    %s123 = sphi 0, %s120
    %s124 = sphi 0, %s123
    %s140 = sphi 0, %s124
    %s144 = sphi 0, %s144
    %s146 = sphi 0, %s144
    %s147 = sphi 0, %s146
    %s161 = sphi 0, %s147
    %s165 = sphi 0, %s165
    %s167 = sphi 0, %s165
    %s168 = sphi 0, %s167
    %s182 = sphi 0, %s168
    %s186 = sphi 0, %s186
    %s188 = sphi 0, %s186
    %s189 = sphi 0, %s188
    %s203 = sphi 0, %s189
    %s207 = sphi 0, %s207
    %s209 = sphi 0, %s207
    %s210 = sphi 0, %s209
    %s224 = sphi 0, %s210
    %s228 = sphi 0, %s228
    %s230 = sphi 0, %s228
    %s231 = sphi 0, %s230
    %s245 = sphi 0, %s231
    %s249 = sphi 0, %s249
    %s251 = sphi 0, %s249
    %s252 = sphi 0, %s251
    %s266 = sphi 0, %s252
    %s270 = sphi 0, %s270
    %s272 = sphi 0, %s270
    %s273 = sphi 0, %s272
    %s287 = sphi 0, %s273
    %s291 = sphi 0, %s291
    %s293 = sphi 0, %s291
    %s294 = sphi 0, %s293
    %s308 = sphi 0, %s294
    %s316 = sphi 0, %s318
    %s319 = sphi 0, %s316
    %s320 = sphi 0, %s319
    %s336 = sphi 0, %s320
  $region4: #{tpu_custom_call.1} parent=0 // loop_header_branch
    %21 = sbr.rel (%p19) target = $region8
  $region5: #{tpu_custom_call.1} parent=0 // loop_body
    %s23 = ssub.s32 %s18, 1
    %s24 = ssub.s32 %s18, 2
    %s31 = sadd.s32 1, %s26
    %p32 = scmp.ge.s32.totalorder %s31, 2
    %s33 = scalar_select %p32, 0, %s31
    %s34 = sadd.s32 1, %s25
    %s35 = scalar_select %p32, %s34, %s25
    %p36 = scmp.ge.s32.totalorder %s35, 2
    %s37 = scalar_select %p36, 0, %s35
    %s38 = ssub.s32 %s25, %s37
    %s39 = ssub.s32 %s26, %s33
    %s40 = sor.u32 %s38, %s39
    %p41 = scmp.eq.s32.totalorder %s40, 0
    %s43 = sadd.s32 %s42, 1
    %s44 = scalar_select %p41, %s42, %s43
    %p47 = pneg %p41
    %p48 = scmp.eq.s32.totalorder %s18, 3
    %p49 = por %p47, %p48
    %p50 = scmp.ne.s32.totalorder %s42, %s45
    %p51 = scmp.eq.s32.totalorder %s18, 0
    %p52 = por %p50, %p51
    %p53 = scmp.ne.s32.totalorder %s42, %s45
    %p54 = scmp.eq.s32.totalorder %s23, 3
    %p55 = por %p53, %p54
    %p56 = scmp.ne.s32.totalorder %s45, %s46
    %p57 = scmp.eq.s32.totalorder %s23, 0
    %p58 = por %p56, %p57
    %p59 = scmp.ne.s32.totalorder %s45, %s46
    %p60 = scmp.eq.s32.totalorder %s24, 3
    %p61 = por %p59, %p60
    %p63 = scmp.ne.s32.totalorder %s46, %s62
    %p64 = scmp.eq.s32.totalorder %s24, 0
    %p65 = por %p63, %p64
    %s66 = ssub.s32 %s25, %s37
    %p67 = scmp.eq.s32.totalorder %s66, 0
    %s69 = sadd.s32 %s68, 1
    %s70 = scalar_select %p67, %s68, %s69
    %p73 = pneg %p67
    %p74 = scmp.eq.s32.totalorder %s18, 3
    %p75 = por %p73, %p74
    %p76 = scmp.ne.s32.totalorder %s68, %s71
    %p77 = scmp.eq.s32.totalorder %s18, 0
    %p78 = por %p76, %p77
    %p79 = scmp.ne.s32.totalorder %s68, %s71
    %p80 = scmp.eq.s32.totalorder %s23, 3
    %p81 = por %p79, %p80
    %p82 = scmp.ne.s32.totalorder %s71, %s72
    %p83 = scmp.eq.s32.totalorder %s23, 0
    %p84 = por %p82, %p83
    %p85 = scmp.ne.s32.totalorder %s71, %s72
    %p86 = scmp.eq.s32.totalorder %s24, 3
    %p87 = por %p85, %p86
    %p89 = scmp.ne.s32.totalorder %s72, %s88
    %p90 = scmp.eq.s32.totalorder %s24, 0
    %p91 = por %p89, %p90
    %s92 = ssub.s32 %s25, %s37
    %p93 = scmp.eq.s32.totalorder %s92, 0
    %s95 = sadd.s32 %s94, 1
    %s96 = scalar_select %p93, %s94, %s95
    %p99 = pneg %p93
    %p100 = scmp.eq.s32.totalorder %s18, 3
    %p101 = por %p99, %p100
    %p102 = scmp.ne.s32.totalorder %s94, %s97
    %p103 = scmp.eq.s32.totalorder %s18, 0
    %p104 = por %p102, %p103
    %p105 = scmp.ne.s32.totalorder %s94, %s97
    %p106 = scmp.eq.s32.totalorder %s23, 3
    %p107 = por %p105, %p106
    %p108 = scmp.ne.s32.totalorder %s97, %s98
    %p109 = scmp.eq.s32.totalorder %s23, 0
    %p110 = por %p108, %p109
    %p111 = scmp.ne.s32.totalorder %s97, %s98
    %p112 = scmp.eq.s32.totalorder %s24, 3
    %p113 = por %p111, %p112
    %p115 = scmp.ne.s32.totalorder %s98, %s114
    %p116 = scmp.eq.s32.totalorder %s24, 0
    %p117 = por %p115, %p116
    %s118 = ssub.s32 %s26, %s33
    %p119 = scmp.eq.s32.totalorder %s118, 0
    %s121 = sadd.s32 %s120, 1
    %s122 = scalar_select %p119, %s120, %s121
    %p125 = pneg %p119
    %p126 = scmp.eq.s32.totalorder %s18, 3
    %p127 = por %p125, %p126
    %p128 = scmp.ne.s32.totalorder %s120, %s123
    %p129 = scmp.eq.s32.totalorder %s18, 0
    %p130 = por %p128, %p129
    %p131 = scmp.ne.s32.totalorder %s120, %s123
    %p132 = scmp.eq.s32.totalorder %s23, 3
    %p133 = por %p131, %p132
    %p134 = scmp.ne.s32.totalorder %s123, %s124
    %p135 = scmp.eq.s32.totalorder %s23, 0
    %p136 = por %p134, %p135
    %p137 = scmp.ne.s32.totalorder %s123, %s124
    %p138 = scmp.eq.s32.totalorder %s24, 3
    %p139 = por %p137, %p138
    %p141 = scmp.ne.s32.totalorder %s124, %s140
    %p142 = scmp.eq.s32.totalorder %s24, 0
    %p143 = por %p141, %p142
    %s145 = sadd.s32 %s144, 1
    %p148 = scmp.eq.s32.totalorder %s18, 3
    %p149 = scmp.ne.s32.totalorder %s144, %s146
    %p150 = scmp.eq.s32.totalorder %s18, 0
    %p151 = por %p149, %p150
    %p152 = scmp.ne.s32.totalorder %s144, %s146
    %p153 = scmp.eq.s32.totalorder %s23, 3
    %p154 = por %p152, %p153
    %p155 = scmp.ne.s32.totalorder %s146, %s147
    %p156 = scmp.eq.s32.totalorder %s23, 0
    %p157 = por %p155, %p156
    %p158 = scmp.ne.s32.totalorder %s146, %s147
    %p159 = scmp.eq.s32.totalorder %s24, 3
    %p160 = por %p158, %p159
    %p162 = scmp.ne.s32.totalorder %s147, %s161
    %p163 = scmp.eq.s32.totalorder %s24, 0
    %p164 = por %p162, %p163
    %s166 = sadd.s32 %s165, 1
    %p169 = scmp.eq.s32.totalorder %s18, 3
    %p170 = scmp.ne.s32.totalorder %s165, %s167
    %p171 = scmp.eq.s32.totalorder %s18, 0
    %p172 = por %p170, %p171
    %p173 = scmp.ne.s32.totalorder %s165, %s167
    %p174 = scmp.eq.s32.totalorder %s23, 3
    %p175 = por %p173, %p174
    %p176 = scmp.ne.s32.totalorder %s167, %s168
    %p177 = scmp.eq.s32.totalorder %s23, 0
    %p178 = por %p176, %p177
    %p179 = scmp.ne.s32.totalorder %s167, %s168
    %p180 = scmp.eq.s32.totalorder %s24, 3
    %p181 = por %p179, %p180
    %p183 = scmp.ne.s32.totalorder %s168, %s182
    %p184 = scmp.eq.s32.totalorder %s24, 0
    %p185 = por %p183, %p184
    %s187 = sadd.s32 %s186, 1
    %p190 = scmp.eq.s32.totalorder %s18, 3
    %p191 = scmp.ne.s32.totalorder %s186, %s188
    %p192 = scmp.eq.s32.totalorder %s18, 0
    %p193 = por %p191, %p192
    %p194 = scmp.ne.s32.totalorder %s186, %s188
    %p195 = scmp.eq.s32.totalorder %s23, 3
    %p196 = por %p194, %p195
    %p197 = scmp.ne.s32.totalorder %s188, %s189
    %p198 = scmp.eq.s32.totalorder %s23, 0
    %p199 = por %p197, %p198
    %p200 = scmp.ne.s32.totalorder %s188, %s189
    %p201 = scmp.eq.s32.totalorder %s24, 3
    %p202 = por %p200, %p201
    %p204 = scmp.ne.s32.totalorder %s189, %s203
    %p205 = scmp.eq.s32.totalorder %s24, 0
    %p206 = por %p204, %p205
    %s208 = sadd.s32 %s207, 1
    %p211 = scmp.eq.s32.totalorder %s18, 3
    %p212 = scmp.ne.s32.totalorder %s207, %s209
    %p213 = scmp.eq.s32.totalorder %s18, 0
    %p214 = por %p212, %p213
    %p215 = scmp.ne.s32.totalorder %s207, %s209
    %p216 = scmp.eq.s32.totalorder %s23, 3
    %p217 = por %p215, %p216
    %p218 = scmp.ne.s32.totalorder %s209, %s210
    %p219 = scmp.eq.s32.totalorder %s23, 0
    %p220 = por %p218, %p219
    %p221 = scmp.ne.s32.totalorder %s209, %s210
    %p222 = scmp.eq.s32.totalorder %s24, 3
    %p223 = por %p221, %p222
    %p225 = scmp.ne.s32.totalorder %s210, %s224
    %p226 = scmp.eq.s32.totalorder %s24, 0
    %p227 = por %p225, %p226
    %s229 = sadd.s32 %s228, 1
    %p232 = scmp.eq.s32.totalorder %s18, 3
    %p233 = scmp.ne.s32.totalorder %s228, %s230
    %p234 = scmp.eq.s32.totalorder %s18, 0
    %p235 = por %p233, %p234
    %p236 = scmp.ne.s32.totalorder %s228, %s230
    %p237 = scmp.eq.s32.totalorder %s23, 3
    %p238 = por %p236, %p237
    %p239 = scmp.ne.s32.totalorder %s230, %s231
    %p240 = scmp.eq.s32.totalorder %s23, 0
    %p241 = por %p239, %p240
    %p242 = scmp.ne.s32.totalorder %s230, %s231
    %p243 = scmp.eq.s32.totalorder %s24, 3
    %p244 = por %p242, %p243
    %p246 = scmp.ne.s32.totalorder %s231, %s245
    %p247 = scmp.eq.s32.totalorder %s24, 0
    %p248 = por %p246, %p247
    %s250 = sadd.s32 %s249, 1
    %p253 = scmp.eq.s32.totalorder %s18, 3
    %p254 = scmp.ne.s32.totalorder %s249, %s251
    %p255 = scmp.eq.s32.totalorder %s18, 0
    %p256 = por %p254, %p255
    %p257 = scmp.ne.s32.totalorder %s249, %s251
    %p258 = scmp.eq.s32.totalorder %s23, 3
    %p259 = por %p257, %p258
    %p260 = scmp.ne.s32.totalorder %s251, %s252
    %p261 = scmp.eq.s32.totalorder %s23, 0
    %p262 = por %p260, %p261
    %p263 = scmp.ne.s32.totalorder %s251, %s252
    %p264 = scmp.eq.s32.totalorder %s24, 3
    %p265 = por %p263, %p264
    %p267 = scmp.ne.s32.totalorder %s252, %s266
    %p268 = scmp.eq.s32.totalorder %s24, 0
    %p269 = por %p267, %p268
    %s271 = sadd.s32 %s270, 1
    %p274 = scmp.eq.s32.totalorder %s18, 3
    %p275 = scmp.ne.s32.totalorder %s270, %s272
    %p276 = scmp.eq.s32.totalorder %s18, 0
    %p277 = por %p275, %p276
    %p278 = scmp.ne.s32.totalorder %s270, %s272
    %p279 = scmp.eq.s32.totalorder %s23, 3
    %p280 = por %p278, %p279
    %p281 = scmp.ne.s32.totalorder %s272, %s273
    %p282 = scmp.eq.s32.totalorder %s23, 0
    %p283 = por %p281, %p282
    %p284 = scmp.ne.s32.totalorder %s272, %s273
    %p285 = scmp.eq.s32.totalorder %s24, 3
    %p286 = por %p284, %p285
    %p288 = scmp.ne.s32.totalorder %s273, %s287
    %p289 = scmp.eq.s32.totalorder %s24, 0
    %p290 = por %p288, %p289
    %s292 = sadd.s32 %s291, 1
    %p295 = scmp.eq.s32.totalorder %s18, 3
    %p296 = scmp.ne.s32.totalorder %s291, %s293
    %p297 = scmp.eq.s32.totalorder %s18, 0
    %p298 = por %p296, %p297
    %p299 = scmp.ne.s32.totalorder %s291, %s293
    %p300 = scmp.eq.s32.totalorder %s23, 3
    %p301 = por %p299, %p300
    %p302 = scmp.ne.s32.totalorder %s293, %s294
    %p303 = scmp.eq.s32.totalorder %s23, 0
    %p304 = por %p302, %p303
    %p305 = scmp.ne.s32.totalorder %s293, %s294
    %p306 = scmp.eq.s32.totalorder %s24, 3
    %p307 = por %p305, %p306
    %p309 = scmp.ne.s32.totalorder %s294, %s308
    %p310 = scmp.eq.s32.totalorder %s24, 0
    %p311 = por %p309, %p310
    %s312 = ssub.s32 %s25, %s37
    %s313 = ssub.s32 %s26, %s33
    %s314 = sor.u32 %s312, %s313
    %p315 = scmp.eq.s32.totalorder %s314, 0
    %s317 = sadd.s32 %s316, 1
    %s318 = scalar_select %p315, %s316, %s317
    %p321 = pneg %p315
    %p322 = scmp.eq.s32.totalorder %s18, 3
    %p323 = por %p321, %p322
    %p324 = scmp.ne.s32.totalorder %s316, %s319
    %p325 = scmp.eq.s32.totalorder %s18, 0
    %p326 = por %p324, %p325
    %p327 = scmp.ne.s32.totalorder %s316, %s319
    %p328 = scmp.eq.s32.totalorder %s23, 3
    %p329 = por %p327, %p328
    %p330 = scmp.ne.s32.totalorder %s319, %s320
    %p331 = scmp.eq.s32.totalorder %s23, 0
    %p332 = por %p330, %p331
    %p333 = scmp.ne.s32.totalorder %s319, %s320
    %p334 = scmp.eq.s32.totalorder %s24, 3
    %p335 = por %p333, %p334
    %p337 = scmp.ne.s32.totalorder %s320, %s336
    %p338 = scmp.eq.s32.totalorder %s24, 0
    %p339 = por %p337, %p338
    %p340 = scmp.le.s32.totalorder 1, %s18
    %p341 = scmp.lt.s32.totalorder %s18, 5
    %p342 = pnand %p340, %p341
    %p343 = pneg %p342
    // Predicated region
    $region9: #{tpu_custom_call.1} parent=5 // pred_check
      _
    $region10: #{tpu_custom_call.1} parent=5 // pred_check_branch
      %345 = sbr.rel (%p342) target = $region12
    $region11: #{tpu_custom_call.1} parent=5 // pred_region
      %s346 = ssub.s32 %s18, 1
      // Predicated region
      $region13: #{tpu_custom_call.1} parent=11 // pred_check
        %p347 = pneg %p157
      $region14: #{tpu_custom_call.1} parent=11 // pred_check_branch
        %349 = sbr.rel (%p347) target = $region16
      $region15: #{tpu_custom_call.1} parent=11 // pred_region
        _
      $region16: #{tpu_custom_call.1} parent=11 // pred_fallthru
        _
      // Predicated region
      $region17: #{tpu_custom_call.1} parent=11 // pred_check
        %p350 = pneg %p178
      $region18: #{tpu_custom_call.1} parent=11 // pred_check_branch
        %352 = sbr.rel (%p350) target = $region20
      $region19: #{tpu_custom_call.1} parent=11 // pred_region
        _
      $region20: #{tpu_custom_call.1} parent=11 // pred_fallthru
        _
      // Predicated region
      $region21: #{tpu_custom_call.1} parent=11 // pred_check
        %p353 = pneg %p199
      $region22: #{tpu_custom_call.1} parent=11 // pred_check_branch
        %355 = sbr.rel (%p353) target = $region24
      $region23: #{tpu_custom_call.1} parent=11 // pred_region
        _
      $region24: #{tpu_custom_call.1} parent=11 // pred_fallthru
        _
      // Predicated region
      $region25: #{tpu_custom_call.1} parent=11 // pred_check
        %p356 = pneg %p220
      $region26: #{tpu_custom_call.1} parent=11 // pred_check_branch
        %358 = sbr.rel (%p356) target = $region28
      $region27: #{tpu_custom_call.1} parent=11 // pred_region
        _
      $region28: #{tpu_custom_call.1} parent=11 // pred_fallthru
        _
      // Predicated region
      $region29: #{tpu_custom_call.1} parent=11 // pred_check
        %p359 = pneg %p241
      $region30: #{tpu_custom_call.1} parent=11 // pred_check_branch
        %361 = sbr.rel (%p359) target = $region32
      $region31: #{tpu_custom_call.1} parent=11 // pred_region
        _
      $region32: #{tpu_custom_call.1} parent=11 // pred_fallthru
        _
      // Predicated region
      $region33: #{tpu_custom_call.1} parent=11 // pred_check
        %p362 = pneg %p262
      $region34: #{tpu_custom_call.1} parent=11 // pred_check_branch
        %364 = sbr.rel (%p362) target = $region36
      $region35: #{tpu_custom_call.1} parent=11 // pred_region
        _
      $region36: #{tpu_custom_call.1} parent=11 // pred_fallthru
        _
      // Predicated region
      $region37: #{tpu_custom_call.1} parent=11 // pred_check
        %p365 = pneg %p283
      $region38: #{tpu_custom_call.1} parent=11 // pred_check_branch
        %367 = sbr.rel (%p365) target = $region40
      $region39: #{tpu_custom_call.1} parent=11 // pred_region
        _
      $region40: #{tpu_custom_call.1} parent=11 // pred_fallthru
        _
      // Predicated region
      $region41: #{tpu_custom_call.1} parent=11 // pred_check
        %p368 = pneg %p304
      $region42: #{tpu_custom_call.1} parent=11 // pred_check_branch
        %370 = sbr.rel (%p368) target = $region44
      $region43: #{tpu_custom_call.1} parent=11 // pred_region
        _
      $region44: #{tpu_custom_call.1} parent=11 // pred_fallthru
        _
    $region12: #{tpu_custom_call.1} parent=5 // pred_fallthru
      _
    %p371 = scmp.lt.s32.totalorder %s18, 4
    // Predicated region
    $region45: #{tpu_custom_call.1} parent=5 // pred_check
      %p372 = pneg %p371
    $region46: #{tpu_custom_call.1} parent=5 // pred_check_branch
      %374 = sbr.rel (%p372) target = $region48
    $region47: #{tpu_custom_call.1} parent=5 // pred_region
      // Predicated region
      $region49: #{tpu_custom_call.1} parent=47 // pred_check
        %p375 = pneg %p52
      $region50: #{tpu_custom_call.1} parent=47 // pred_check_branch
        %377 = sbr.rel (%p375) target = $region52
      $region51: #{tpu_custom_call.1} parent=47 // pred_region
        %s378 = smul.u32 4, %s26
        %p379 = scmp.lt.s32.totalorder %s25, 1
        %s380 = scalar_select %p379, %s25, 1
        %p381 = scmp.lt.s32.totalorder %s378, 7
        %s382 = scalar_select %p381, %s378, 7
        %s383 = smul.addr %s380, 8
        %s384 = sadd.s32 %s382, %s383
        %s385 = smul.addr %s384, 4
        %s386 = scalar_lea.vmem %s0, %s385
        %s387 = smul.u32 4, %s26
      $region52: #{tpu_custom_call.1} parent=47 // pred_fallthru
        _
      // Predicated region
      $region53: #{tpu_custom_call.1} parent=47 // pred_check
        %p388 = pneg %p78
      $region54: #{tpu_custom_call.1} parent=47 // pred_check_branch
        %390 = sbr.rel (%p388) target = $region56
      $region55: #{tpu_custom_call.1} parent=47 // pred_region
        %p391 = scmp.lt.s32.totalorder %s25, 1
        %s392 = scalar_select %p391, %s25, 1
        %s393 = smul.addr %s392, 8
        %s394 = smul.addr %s393, 4
        %s395 = scalar_lea.vmem %s1, %s394
      $region56: #{tpu_custom_call.1} parent=47 // pred_fallthru
        _
      // Predicated region
      $region57: #{tpu_custom_call.1} parent=47 // pred_check
        %p396 = pneg %p104
      $region58: #{tpu_custom_call.1} parent=47 // pred_check_branch
        %398 = sbr.rel (%p396) target = $region60
      $region59: #{tpu_custom_call.1} parent=47 // pred_region
        %p399 = scmp.lt.s32.totalorder %s25, 1
        %s400 = scalar_select %p399, %s25, 1
        %s401 = smul.addr %s400, 8
        %s402 = sadd.s32 4, %s401
        %s403 = smul.addr %s402, 4
        %s404 = scalar_lea.vmem %s2, %s403
      $region60: #{tpu_custom_call.1} parent=47 // pred_fallthru
        _
      // Predicated region
      $region61: #{tpu_custom_call.1} parent=47 // pred_check
        %p405 = pneg %p130
      $region62: #{tpu_custom_call.1} parent=47 // pred_check_branch
        %407 = sbr.rel (%p405) target = $region64
      $region63: #{tpu_custom_call.1} parent=47 // pred_region
        %p408 = scmp.lt.s32.totalorder %s26, 1
        %s409 = scalar_select %p408, %s26, 1
        %s410 = smul.addr %s409, 8
        %s411 = smul.addr %s410, 4
        %s412 = scalar_lea.vmem %s3, %s411
      $region64: #{tpu_custom_call.1} parent=47 // pred_fallthru
        _
    $region48: #{tpu_custom_call.1} parent=5 // pred_fallthru
      _
    %p413 = scmp.le.s32.totalorder 1, %s18
    %p414 = scmp.lt.s32.totalorder %s18, 5
    %p415 = pnand %p413, %p414
    %p416 = pneg %p415
    // Predicated region
    $region65: #{tpu_custom_call.1} parent=5 // pred_check
      _
    $region66: #{tpu_custom_call.1} parent=5 // pred_check_branch
      %418 = sbr.rel (%p415) target = $region68
    $region67: #{tpu_custom_call.1} parent=5 // pred_region
      %s419 = ssub.s32 %s18, 1
      %s420 = smul.u32 4, %s28
      %p421 = scmp.lt.s32.totalorder %s27, 1
      %s422 = scalar_select %p421, %s27, 1
      %p423 = scmp.lt.s32.totalorder %s420, 7
      %s424 = scalar_select %p423, %s420, 7
      %s425 = smul.addr %s422, 8
      %s426 = sadd.s32 %s424, %s425
      %s427 = smul.addr %s426, 4
      %s428 = scalar_lea.vmem %s0, %s427
      %p429 = pneg %p58
      %p430 = pneg %p55
      %p431 = scmp.lt.s32.totalorder %s27, 1
      %s432 = scalar_select %p431, %s27, 1
      %s433 = smul.addr %s432, 8
      %s434 = smul.addr %s433, 4
      %s435 = scalar_lea.vmem %s1, %s434
      %p436 = pneg %p84
      %p437 = pneg %p81
      %p438 = scmp.lt.s32.totalorder %s27, 1
      %s439 = scalar_select %p438, %s27, 1
      %s440 = smul.addr %s439, 8
      %s441 = sadd.s32 4, %s440
      %s442 = smul.addr %s441, 4
      %s443 = scalar_lea.vmem %s2, %s442
      %p444 = pneg %p110
      %p445 = pneg %p107
      %p446 = scmp.lt.s32.totalorder %s28, 1
      %s447 = scalar_select %p446, %s28, 1
      %s448 = smul.addr %s447, 8
      %s449 = smul.addr %s448, 4
      %s450 = scalar_lea.vmem %s3, %s449
      %p451 = pneg %p136
      %p452 = pneg %p133
      %p453 = pneg %p157
      %p454 = pneg %p154
      %p455 = pneg %p178
      %p456 = pneg %p175
      %p457 = pneg %p199
      %p458 = pneg %p196
      %p459 = pneg %p220
      %p460 = pneg %p217
      %p461 = pneg %p241
      %p462 = pneg %p238
      %p463 = pneg %p262
      %p464 = pneg %p259
      %p465 = pneg %p283
      %p466 = pneg %p280
      %p467 = pneg %p304
      %p468 = pneg %p301
      %p469 = pneg %p332
      %p470 = pneg %p329
      %s471 = smul.u32 4, %s28
      %p472 = scmp.lt.s32.totalorder %s27, 1
      %s473 = scalar_select %p472, %s27, 1
      %p474 = scmp.lt.s32.totalorder %s471, 7
      %s475 = scalar_select %p474, %s471, 7
      %s476 = smul.addr %s473, 8
      %s477 = sadd.s32 %s475, %s476
      %s478 = smul.addr %s477, 8
      %s479 = scalar_lea.vmem %s12, %s478
      %s480 = smul.u32 4, %s28
      %p481 = scmp.lt.s32.totalorder %s27, 1
      %s482 = scalar_select %p481, %s27, 1
      %p483 = scmp.lt.s32.totalorder %s480, 7
      %s484 = scalar_select %p483, %s480, 7
      %s485 = smul.addr %s482, 8
      %s486 = sadd.s32 %s484, %s485
      %s487 = smul.addr %s486, 4
      %s488 = scalar_lea.vmem %s0, %s487
      %s489 = smul.u32 4, %s28
      %p490 = scmp.lt.s32.totalorder %s27, 1
      %s491 = scalar_select %p490, %s27, 1
      %s492 = smul.addr %s491, 8
      %s493 = smul.addr %s492, 4
      %s494 = scalar_lea.vmem %s1, %s493
      %p495 = scmp.lt.s32.totalorder %s27, 1
      %s496 = scalar_select %p495, %s27, 1
      %s497 = smul.addr %s496, 8
      %s498 = sadd.s32 4, %s497
      %s499 = smul.addr %s498, 4
      %s500 = scalar_lea.vmem %s2, %s499
      %p501 = scmp.lt.s32.totalorder %s28, 1
      %s502 = scalar_select %p501, %s28, 1
      %s503 = smul.addr %s502, 8
      %s504 = smul.addr %s503, 4
      %s505 = scalar_lea.vmem %s3, %s504
      %s506 = smul.u32 4, %s28
      %p507 = scmp.lt.s32.totalorder %s27, 1
      %s508 = scalar_select %p507, %s27, 1
      %p509 = scmp.lt.s32.totalorder %s506, 7
      %s510 = scalar_select %p509, %s506, 7
      %s511 = smul.addr %s508, 8
      %s512 = sadd.s32 %s510, %s511
      %s513 = smul.addr %s512, 8
      %s514 = scalar_lea.vmem %s12, %s513
      %s515 = smul.u32 4, %s28
      %v517 = vld [vmem:[%s488] sm:$0xf]
      %v518 = vld [vmem:[%s488 + $0x4] sm:$0xf]
      %v519 = vld [vmem:[%s488 + $0x8] sm:$0xf]
      %v520 = vld [vmem:[%s488 + $0xc] sm:$0xf]
      %v521 = vld [vmem:[%s494] sm:$0xf]
      %v522 = vld [vmem:[%s494 + $0x4] sm:$0xf]
      %v523 = vld [vmem:[%s494 + $0x8] sm:$0xf]
      %v524 = vld [vmem:[%s494 + $0xc] sm:$0xf]
      %v525 = vld [vmem:[%s500] sm:$0xf]
      %v526 = vld [vmem:[%s500 + $0x4] sm:$0xf]
      %v527 = vld [vmem:[%s500 + $0x8] sm:$0xf]
      %v528 = vld [vmem:[%s500 + $0xc] sm:$0xf]
      %v533 = vunpack.c.l.b16 %v521
      %v534 = vunpack.c.l.b16 %v522
      %v535 = vunpack.c.l.b16 %v523
      %v536 = vunpack.c.l.b16 %v524
      %v537 = vpack.c.b16 %v534, %v533
      %v538 = vpack.c.b16 %v536, %v535
      %v543 = vunpack.c.l.b16 %v525
      %v544 = vunpack.c.l.b16 %v526
      %v545 = vunpack.c.l.b16 %v527
      %v546 = vunpack.c.l.b16 %v528
      %v547 = vpack.c.b16 %v544, %v543
      %v548 = vpack.c.b16 %v546, %v545
      %v549 = vld [vmem:[%s4] sm:$0xf]
      %v550 = vld [vmem:[%s4 + $0x4] sm:$0xf]
      %v551 = vld [vmem:[%s4 + $0x8] sm:$0xf]
      %v552 = vld [vmem:[%s4 + $0xc] sm:$0xf]
      %v553 = vld [vmem:[%s5] sm:$0x1]
      %v555 = vlaneseq
      %v556 = vshrl.u32 %v555, 7
      %v557 = vsub.s32 0, %v556
      %v558 = vrot.slane %v553, %v557
      %v564 = vunpack.c.l.b16 %v517
      %v565 = vunpack.c.l.b16 %v518
      %v566 = vunpack.c.l.b16 %v519
      %v567 = vunpack.c.l.b16 %v520
      %v568 = vpack.c.b16 %v565, %v564
      %v569 = vpack.c.b16 %v567, %v566
      %v574 = vunpack.c.l.b16 %v549
      %v575 = vunpack.c.l.b16 %v550
      %v576 = vunpack.c.l.b16 %v551
      %v577 = vunpack.c.l.b16 %v552
      %v578 = vpack.c.b16 %v575, %v574
      %v579 = vpack.c.b16 %v577, %v576
      %vm582 = vcmask 261120
      %v584 = vsel %vm582, %v568, 0
      %v587 = vsel %vm582, %v569, 0
      %589 = vmatprep.subr.bf16.mxu0 0
      %590 = vmatpush1.bf16.msra.mxu0 0
      %591 = vmatprep.subr.bf16.mxu0 0
      %592 = vmatpush1.bf16.msra.mxu0 0
      %593 = vmatprep.subr.bf16.mxu0 0
      %594 = vmatpush1.bf16.msra.mxu0 0
      %595 = vmatprep.subr.bf16.mxu0 0
      %596 = vmatpush1.bf16.msra.mxu0 0
      %597 = vmatprep.subr.bf16.mxu0 0
      %598 = vmatpush1.bf16.msra.mxu0 0
      %599 = vmatprep.subr.bf16.mxu0 0
      %600 = vmatpush1.bf16.msra.mxu0 0
      %601 = vmatprep.subr.bf16.mxu0 0
      %602 = vmatpush1.bf16.msra.mxu0 %v579
      %603 = vmatprep.subr.bf16.mxu0 0
      %604 = vmatpush1.bf16.msra.mxu0 %v578
      %605 = vmatprep.subr.bf16.mxu0 0
      %606 = vmatpush2.bf16.msra.mxu0 0
      %607 = vmatprep.subr.bf16.mxu0 0
      %608 = vmatpush2.bf16.msra.mxu0 0
      %609 = vmatprep.subr.bf16.mxu0 0
      %610 = vmatpush2.bf16.msra.mxu0 0
      %611 = vmatprep.subr.bf16.mxu0 0
      %612 = vmatpush2.bf16.msra.mxu0 0
      %613 = vmatprep.subr.bf16.mxu0 0
      %614 = vmatpush2.bf16.msra.mxu0 0
      %615 = vmatprep.subr.bf16.mxu0 0
      %616 = vmatpush2.bf16.msra.mxu0 0
      %617 = vmatprep.subr.bf16.mxu0 0
      %618 = vmatpush2.bf16.msra.mxu0 0
      %619 = vmatprep.subr.bf16.mxu0 0
      %620 = vmatpush2.bf16.msra.mxu0 0
      %621 = vmatprep.mubr.bf16.mxu0 0
      %622 = vmatmul.mubr.bf16.gmra.mxu0 %v584
      %v623 = vpop.f32.mrf.mxu0
      %v624 = vadd.f32 %v558, %v623
      %v625 = vpop.f32.mrf.mxu0
      %v626 = vpop.f32.mrf.mxu0
      %v627 = vadd.f32 %v558, %v626
      %v628 = vpop.f32.mrf.mxu0
      %629 = vmatprep.mubr.bf16.mxu0 0
      %630 = vmatmul.mubr.bf16.gmra.mxu0 %v587
      %v631 = vpop.f32.mrf.mxu0
      %v632 = vadd.f32 %v558, %v631
      %v633 = vpop.f32.mrf.mxu0
      %v634 = vpop.f32.mrf.mxu0
      %v635 = vadd.f32 %v558, %v634
      %v636 = vpop.f32.mrf.mxu0
      %637 = vdwg.mxu0
      %v638 = vpack.c.bf16 %v627, %v624
      %v639 = vpack.c.bf16 %v635, %v632
      %v640 = vld [vmem:[%s6] sm:$0xf]
      %v641 = vld [vmem:[%s6 + $0x4] sm:$0xf]
      %v642 = vld [vmem:[%s6 + $0x8] sm:$0xf]
      %v643 = vld [vmem:[%s6 + $0xc] sm:$0xf]
      %v644 = vld [vmem:[%s7] sm:$0x1]
      %v646 = vlaneseq
      %v647 = vshrl.u32 %v646, 7
      %v648 = vsub.s32 0, %v647
      %v649 = vrot.slane %v644, %v648
      %v655 = vunpack.c.l.b16 %v640
      %v656 = vunpack.c.l.b16 %v641
      %v657 = vunpack.c.l.b16 %v642
      %v658 = vunpack.c.l.b16 %v643
      %v659 = vpack.c.b16 %v656, %v655
      %v660 = vpack.c.b16 %v658, %v657
      %v664 = vsel %vm582, %v537, 0
      %v667 = vsel %vm582, %v538, 0
      %v670 = vsel %vm582, %v547, 0
      %v673 = vsel %vm582, %v548, 0
      %675 = vmatprep.subr.bf16.mxu0 0
      %676 = vmatpush1.bf16.msra.mxu0 0
      %677 = vmatprep.subr.bf16.mxu0 0
      %678 = vmatpush1.bf16.msra.mxu0 0
      %679 = vmatprep.subr.bf16.mxu0 0
      %680 = vmatpush1.bf16.msra.mxu0 0
      %681 = vmatprep.subr.bf16.mxu0 0
      %682 = vmatpush1.bf16.msra.mxu0 0
      %683 = vmatprep.subr.bf16.mxu0 0
      %684 = vmatpush1.bf16.msra.mxu0 0
      %685 = vmatprep.subr.bf16.mxu0 0
      %686 = vmatpush1.bf16.msra.mxu0 0
      %687 = vmatprep.subr.bf16.mxu0 0
      %688 = vmatpush1.bf16.msra.mxu0 %v660
      %689 = vmatprep.subr.bf16.mxu0 0
      %690 = vmatpush1.bf16.msra.mxu0 %v659
      %691 = vmatprep.subr.bf16.mxu0 0
      %692 = vmatpush2.bf16.msra.mxu0 0
      %693 = vmatprep.subr.bf16.mxu0 0
      %694 = vmatpush2.bf16.msra.mxu0 0
      %695 = vmatprep.subr.bf16.mxu0 0
      %696 = vmatpush2.bf16.msra.mxu0 0
      %697 = vmatprep.subr.bf16.mxu0 0
      %698 = vmatpush2.bf16.msra.mxu0 0
      %699 = vmatprep.subr.bf16.mxu0 0
      %700 = vmatpush2.bf16.msra.mxu0 0
      %701 = vmatprep.subr.bf16.mxu0 0
      %702 = vmatpush2.bf16.msra.mxu0 0
      %703 = vmatprep.subr.bf16.mxu0 0
      %704 = vmatpush2.bf16.msra.mxu0 0
      %705 = vmatprep.subr.bf16.mxu0 0
      %706 = vmatpush2.bf16.msra.mxu0 0
      %707 = vmatprep.mubr.bf16.mxu0 0
      %708 = vmatmul.mubr.bf16.gmra.mxu0 %v664
      %v709 = vpop.f32.mrf.mxu0
      %v710 = vadd.f32 %v649, %v709
      %v711 = vpop.f32.mrf.mxu0
      %v712 = vpop.f32.mrf.mxu0
      %v713 = vadd.f32 %v649, %v712
      %v714 = vpop.f32.mrf.mxu0
      %715 = vmatprep.mubr.bf16.mxu0 0
      %716 = vmatmul.mubr.bf16.gmra.mxu0 %v667
      %v717 = vpop.f32.mrf.mxu0
      %v718 = vadd.f32 %v649, %v717
      %v719 = vpop.f32.mrf.mxu0
      %v720 = vpop.f32.mrf.mxu0
      %v721 = vadd.f32 %v649, %v720
      %v722 = vpop.f32.mrf.mxu0
      %723 = vmatprep.mubr.bf16.mxu0 0
      %724 = vmatmul.mubr.bf16.gmra.mxu0 %v670
      %v725 = vpop.f32.mrf.mxu0
      %v726 = vadd.f32 %v649, %v725
      %v727 = vpop.f32.mrf.mxu0
      %v728 = vpop.f32.mrf.mxu0
      %v729 = vadd.f32 %v649, %v728
      %v730 = vpop.f32.mrf.mxu0
      %731 = vmatprep.mubr.bf16.mxu0 0
      %732 = vmatmul.mubr.bf16.gmra.mxu0 %v673
      %v733 = vpop.f32.mrf.mxu0
      %v734 = vadd.f32 %v649, %v733
      %v735 = vpop.f32.mrf.mxu0
      %v736 = vpop.f32.mrf.mxu0
      %v737 = vadd.f32 %v649, %v736
      %v738 = vpop.f32.mrf.mxu0
      %739 = vdwg.mxu0
      %v740 = vpack.c.bf16 %v713, %v710
      %v741 = vpack.c.bf16 %v721, %v718
      %v742 = vpack.c.bf16 %v729, %v726
      %v743 = vpack.c.bf16 %v737, %v734
      %v744 = vld [vmem:[%s8] sm:$0xf]
      %v745 = vld [vmem:[%s8 + $0x4] sm:$0xf]
      %v746 = vld [vmem:[%s8 + $0x8] sm:$0xf]
      %v747 = vld [vmem:[%s8 + $0xc] sm:$0xf]
      %v748 = vld [vmem:[%s9] sm:$0x1]
      %v750 = vlaneseq
      %v751 = vshrl.u32 %v750, 7
      %v752 = vsub.s32 0, %v751
      %v753 = vrot.slane %v748, %v752
      %v759 = vunpack.c.l.b16 %v744
      %v760 = vunpack.c.l.b16 %v745
      %v761 = vunpack.c.l.b16 %v746
      %v762 = vunpack.c.l.b16 %v747
      %v763 = vpack.c.b16 %v760, %v759
      %v764 = vpack.c.b16 %v762, %v761
      %767 = vmatprep.subr.bf16.mxu0 0
      %768 = vmatpush1.bf16.msra.mxu0 0
      %769 = vmatprep.subr.bf16.mxu0 0
      %770 = vmatpush1.bf16.msra.mxu0 0
      %771 = vmatprep.subr.bf16.mxu0 0
      %772 = vmatpush1.bf16.msra.mxu0 0
      %773 = vmatprep.subr.bf16.mxu0 0
      %774 = vmatpush1.bf16.msra.mxu0 0
      %775 = vmatprep.subr.bf16.mxu0 0
      %776 = vmatpush1.bf16.msra.mxu0 0
      %777 = vmatprep.subr.bf16.mxu0 0
      %778 = vmatpush1.bf16.msra.mxu0 0
      %779 = vmatprep.subr.bf16.mxu0 0
      %780 = vmatpush1.bf16.msra.mxu0 %v764
      %781 = vmatprep.subr.bf16.mxu0 0
      %782 = vmatpush1.bf16.msra.mxu0 %v763
      %783 = vmatprep.subr.bf16.mxu0 0
      %784 = vmatpush2.bf16.msra.mxu0 0
      %785 = vmatprep.subr.bf16.mxu0 0
      %786 = vmatpush2.bf16.msra.mxu0 0
      %787 = vmatprep.subr.bf16.mxu0 0
      %788 = vmatpush2.bf16.msra.mxu0 0
      %789 = vmatprep.subr.bf16.mxu0 0
      %790 = vmatpush2.bf16.msra.mxu0 0
      %791 = vmatprep.subr.bf16.mxu0 0
      %792 = vmatpush2.bf16.msra.mxu0 0
      %793 = vmatprep.subr.bf16.mxu0 0
      %794 = vmatpush2.bf16.msra.mxu0 0
      %795 = vmatprep.subr.bf16.mxu0 0
      %796 = vmatpush2.bf16.msra.mxu0 0
      %797 = vmatprep.subr.bf16.mxu0 0
      %798 = vmatpush2.bf16.msra.mxu0 0
      %799 = vmatprep.mubr.bf16.mxu0 0
      %800 = vmatmul.mubr.bf16.gmra.mxu0 %v664
      %v801 = vpop.f32.mrf.mxu0
      %v802 = vadd.f32 %v753, %v801
      %v803 = vpop.f32.mrf.mxu0
      %v804 = vpop.f32.mrf.mxu0
      %v805 = vadd.f32 %v753, %v804
      %v806 = vpop.f32.mrf.mxu0
      %807 = vmatprep.mubr.bf16.mxu0 0
      %808 = vmatmul.mubr.bf16.gmra.mxu0 %v667
      %v809 = vpop.f32.mrf.mxu0
      %v810 = vadd.f32 %v753, %v809
      %v811 = vpop.f32.mrf.mxu0
      %v812 = vpop.f32.mrf.mxu0
      %v813 = vadd.f32 %v753, %v812
      %v814 = vpop.f32.mrf.mxu0
      %815 = vmatprep.mubr.bf16.mxu0 0
      %816 = vmatmul.mubr.bf16.gmra.mxu0 %v670
      %v817 = vpop.f32.mrf.mxu0
      %v818 = vadd.f32 %v753, %v817
      %v819 = vpop.f32.mrf.mxu0
      %v820 = vpop.f32.mrf.mxu0
      %v821 = vadd.f32 %v753, %v820
      %v822 = vpop.f32.mrf.mxu0
      %823 = vmatprep.mubr.bf16.mxu0 0
      %824 = vmatmul.mubr.bf16.gmra.mxu0 %v673
      %v825 = vpop.f32.mrf.mxu0
      %v826 = vadd.f32 %v753, %v825
      %v827 = vpop.f32.mrf.mxu0
      %v828 = vpop.f32.mrf.mxu0
      %v829 = vadd.f32 %v753, %v828
      %v830 = vpop.f32.mrf.mxu0
      %831 = vdwg.mxu0
      %v832 = vpack.c.bf16 %v805, %v802
      %v833 = vpack.c.bf16 %v813, %v810
      %v834 = vpack.c.bf16 %v821, %v818
      %v835 = vpack.c.bf16 %v829, %v826
      %v836 = vld [vmem:[%s505] sm:$0xf]
      %v837 = vld [vmem:[%s505 + $0x4] sm:$0xf]
      %v838 = vld [vmem:[%s505 + $0x8] sm:$0xf]
      %v839 = vld [vmem:[%s505 + $0xc] sm:$0xf]
      %v840 = vunpack.c.l.bf16 %v836
      %v841 = vunpack.c.l.bf16 %v837
      %v842 = vunpack.c.l.bf16 %v838
      %v843 = vunpack.c.l.bf16 %v839
      %vm844 = vcmask 130048
      %v846 = vsel %vm844, %v638, 0
      %v849 = vsel %vm844, %v639, 0
      %v852 = vsel %vm844, %v740, 0
      %v855 = vsel %vm844, %v741, 0
      %v858 = vsel %vm844, %v742, 0
      %v861 = vsel %vm844, %v743, 0
      %863 = vmatprep.subr.bf16.mxu0 0
      %864 = vmatpush1.bf16.xpose.msra.mxu0 0
      %865 = vmatprep.subr.bf16.mxu0 0
      %866 = vmatpush1.bf16.xpose.msra.mxu0 0
      %867 = vmatprep.subr.bf16.mxu0 0
      %868 = vmatpush1.bf16.xpose.msra.mxu0 0
      %869 = vmatprep.subr.bf16.mxu0 0
      %870 = vmatpush1.bf16.xpose.msra.mxu0 0
      %871 = vmatprep.subr.bf16.mxu0 0
      %872 = vmatpush1.bf16.xpose.msra.mxu0 %v861
      %873 = vmatprep.subr.bf16.mxu0 0
      %874 = vmatpush1.bf16.xpose.msra.mxu0 %v858
      %875 = vmatprep.subr.bf16.mxu0 0
      %876 = vmatpush1.bf16.xpose.msra.mxu0 %v855
      %877 = vmatprep.subr.bf16.mxu0 0
      %878 = vmatpush1.bf16.xpose.msra.mxu0 %v852
      %879 = vmatprep.subr.bf16.mxu0 0
      %880 = vmatpush2.bf16.xpose.msra.mxu0 0
      %881 = vmatprep.subr.bf16.mxu0 0
      %882 = vmatpush2.bf16.xpose.msra.mxu0 0
      %883 = vmatprep.subr.bf16.mxu0 0
      %884 = vmatpush2.bf16.xpose.msra.mxu0 0
      %885 = vmatprep.subr.bf16.mxu0 0
      %886 = vmatpush2.bf16.xpose.msra.mxu0 0
      %887 = vmatprep.subr.bf16.mxu0 0
      %888 = vmatpush2.bf16.xpose.msra.mxu0 0
      %889 = vmatprep.subr.bf16.mxu0 0
      %890 = vmatpush2.bf16.xpose.msra.mxu0 0
      %891 = vmatprep.subr.bf16.mxu0 0
      %892 = vmatpush2.bf16.xpose.msra.mxu0 0
      %893 = vmatprep.subr.bf16.mxu0 0
      %894 = vmatpush2.bf16.xpose.msra.mxu0 0
      %895 = vmatprep.mubr.bf16.mxu0 0
      %896 = vmatmul.mubr.bf16.gmra.mxu0 %v846
      %v897 = vpop.f32.mrf.mxu0
      %v898 = vadd.f32 %v840, %v897
      %v899 = vpop.f32.mrf.mxu0
      %v900 = vpop.f32.mrf.mxu0
      %v901 = vadd.f32 %v841, %v900
      %v902 = vpop.f32.mrf.mxu0
      %903 = vmatprep.mubr.bf16.mxu0 0
      %904 = vmatmul.mubr.bf16.gmra.mxu0 %v849
      %v905 = vpop.f32.mrf.mxu0
      %v906 = vadd.f32 %v842, %v905
      %v907 = vpop.f32.mrf.mxu0
      %v908 = vpop.f32.mrf.mxu0
      %v909 = vadd.f32 %v843, %v908
      %v910 = vpop.f32.mrf.mxu0
      %911 = vdwg.mxu0
      %vm912 = vcmask 523264
      %v913 = vsel %vm912, %v898, -inf
      %914 = vmax.xlane.f32.xlu0 %v913
      %v915 = vpop.xlane.xlu0 %914
      %v916 = vsel %vm912, %v901, -inf
      %917 = vmax.xlane.f32.xlu0 %v916
      %v918 = vpop.xlane.xlu0 %917
      %v919 = vsel %vm912, %v906, -inf
      %920 = vmax.xlane.f32.xlu0 %v919
      %v921 = vpop.xlane.xlu0 %920
      %v922 = vsel %vm912, %v909, -inf
      %923 = vmax.xlane.f32.xlu0 %v922
      %v924 = vpop.xlane.xlu0 %923
      %v925 = vsub.f32 %v898, %v915
      %v926 = vsub.f32 %v901, %v918
      %v927 = vsub.f32 %v906, %v921
      %v928 = vsub.f32 %v909, %v924
      %v929 = vmul.f32 %v925, 1.442695
      %v930 = vpow.pop %v929
      %v931 = vmul.f32 %v926, 1.442695
      %v932 = vpow.pop %v931
      %v933 = vmul.f32 %v927, 1.442695
      %v934 = vpow.pop %v933
      %v935 = vmul.f32 %v928, 1.442695
      %v936 = vpow.pop %v935
      %v937 = vsel %vm912, %v930, 0.0
      %938 = vadd.xlane.f32.xlu0 %v937
      %v939 = vpop.xlane.xlu0 %938
      %v940 = vsel %vm912, %v932, 0.0
      %941 = vadd.xlane.f32.xlu0 %v940
      %v942 = vpop.xlane.xlu0 %941
      %v943 = vsel %vm912, %v934, 0.0
      %944 = vadd.xlane.f32.xlu0 %v943
      %v945 = vpop.xlane.xlu0 %944
      %v946 = vsel %vm912, %v936, 0.0
      %947 = vadd.xlane.f32.xlu0 %v946
      %v948 = vpop.xlane.xlu0 %947
      %v949 = vrcp.pop %v939
      %v950 = vrcp.pop %v942
      %v951 = vrcp.pop %v945
      %v952 = vrcp.pop %v948
      %v953 = vmul.f32 %v930, %v949
      %v954 = vmul.f32 %v932, %v950
      %v955 = vmul.f32 %v934, %v951
      %v956 = vmul.f32 %v936, %v952
      %v957 = vpack.c.bf16 %v954, %v953
      %v958 = vpack.c.bf16 %v956, %v955
      %v960 = vsel %vm912, %v957, 0
      %v963 = vsel %vm912, %v958, 0
      %965 = vmatprep.subr.bf16.mxu0 0
      %966 = vmatpush1.bf16.msra.mxu0 0
      %967 = vmatprep.subr.bf16.mxu0 0
      %968 = vmatpush1.bf16.msra.mxu0 0
      %969 = vmatprep.subr.bf16.mxu0 0
      %970 = vmatpush1.bf16.msra.mxu0 0
      %971 = vmatprep.subr.bf16.mxu0 0
      %972 = vmatpush1.bf16.msra.mxu0 0
      %973 = vmatprep.subr.bf16.mxu0 0
      %974 = vmatpush1.bf16.msra.mxu0 %v835
      %975 = vmatprep.subr.bf16.mxu0 0
      %976 = vmatpush1.bf16.msra.mxu0 %v834
      %977 = vmatprep.subr.bf16.mxu0 0
      %978 = vmatpush1.bf16.msra.mxu0 %v833
      %979 = vmatprep.subr.bf16.mxu0 0
      %980 = vmatpush1.bf16.msra.mxu0 %v832
      %981 = vmatprep.subr.bf16.mxu0 0
      %982 = vmatpush2.bf16.msra.mxu0 0
      %983 = vmatprep.subr.bf16.mxu0 0
      %984 = vmatpush2.bf16.msra.mxu0 0
      %985 = vmatprep.subr.bf16.mxu0 0
      %986 = vmatpush2.bf16.msra.mxu0 0
      %987 = vmatprep.subr.bf16.mxu0 0
      %988 = vmatpush2.bf16.msra.mxu0 0
      %989 = vmatprep.subr.bf16.mxu0 0
      %990 = vmatpush2.bf16.msra.mxu0 0
      %991 = vmatprep.subr.bf16.mxu0 0
      %992 = vmatpush2.bf16.msra.mxu0 0
      %993 = vmatprep.subr.bf16.mxu0 0
      %994 = vmatpush2.bf16.msra.mxu0 0
      %995 = vmatprep.subr.bf16.mxu0 0
      %996 = vmatpush2.bf16.msra.mxu0 0
      %997 = vmatprep.mubr.bf16.mxu0 0
      %998 = vmatmul.mubr.bf16.gmra.mxu0 %v960
      %v999 = vpop.f32.mrf.mxu0
      %v1000 = vadd.f32 0.0, %v999
      %v1001 = vpop.f32.mrf.mxu0
      %v1002 = vpop.f32.mrf.mxu0
      %v1003 = vadd.f32 0.0, %v1002
      %v1004 = vpop.f32.mrf.mxu0
      %1005 = vmatprep.mubr.bf16.mxu0 0
      %1006 = vmatmul.mubr.bf16.gmra.mxu0 %v963
      %v1007 = vpop.f32.mrf.mxu0
      %v1008 = vadd.f32 0.0, %v1007
      %v1009 = vpop.f32.mrf.mxu0
      %v1010 = vpop.f32.mrf.mxu0
      %v1011 = vadd.f32 0.0, %v1010
      %v1012 = vpop.f32.mrf.mxu0
      %1013 = vdwg.mxu0
      %v1014 = vpack.c.bf16 %v1003, %v1000
      %v1015 = vpack.c.bf16 %v1011, %v1008
      %v1016 = vld [vmem:[%s10] sm:$0xf]
      %v1017 = vld [vmem:[%s10 + $0x4] sm:$0xf]
      %s1018 = scalar_lea.vmem %s4, 16
      %v1019 = vld [vmem:[%s1018] sm:$0xf]
      %v1020 = vld [vmem:[%s1018 + $0x4] sm:$0xf]
      %v1021 = vld [vmem:[%s1018 + $0x8] sm:$0xf]
      %v1022 = vld [vmem:[%s1018 + $0xc] sm:$0xf]
      %s1023 = scalar_lea.vmem %s5, 1
      %v1024 = vld [vmem:[%s1023] sm:$0x1]
      %v1026 = vlaneseq
      %v1027 = vshrl.u32 %v1026, 7
      %v1028 = vsub.s32 0, %v1027
      %v1029 = vrot.slane %v1024, %v1028
      %v1035 = vunpack.c.l.b16 %v1019
      %v1036 = vunpack.c.l.b16 %v1020
      %v1037 = vunpack.c.l.b16 %v1021
      %v1038 = vunpack.c.l.b16 %v1022
      %v1039 = vpack.c.b16 %v1036, %v1035
      %v1040 = vpack.c.b16 %v1038, %v1037
      %1043 = vmatprep.subr.bf16.mxu0 0
      %1044 = vmatpush1.bf16.msra.mxu0 0
      %1045 = vmatprep.subr.bf16.mxu0 0
      %1046 = vmatpush1.bf16.msra.mxu0 0
      %1047 = vmatprep.subr.bf16.mxu0 0
      %1048 = vmatpush1.bf16.msra.mxu0 0
      %1049 = vmatprep.subr.bf16.mxu0 0
      %1050 = vmatpush1.bf16.msra.mxu0 0
      %1051 = vmatprep.subr.bf16.mxu0 0
      %1052 = vmatpush1.bf16.msra.mxu0 0
      %1053 = vmatprep.subr.bf16.mxu0 0
      %1054 = vmatpush1.bf16.msra.mxu0 0
      %1055 = vmatprep.subr.bf16.mxu0 0
      %1056 = vmatpush1.bf16.msra.mxu0 %v1040
      %1057 = vmatprep.subr.bf16.mxu0 0
      %1058 = vmatpush1.bf16.msra.mxu0 %v1039
      %1059 = vmatprep.subr.bf16.mxu0 0
      %1060 = vmatpush2.bf16.msra.mxu0 0
      %1061 = vmatprep.subr.bf16.mxu0 0
      %1062 = vmatpush2.bf16.msra.mxu0 0
      %1063 = vmatprep.subr.bf16.mxu0 0
      %1064 = vmatpush2.bf16.msra.mxu0 0
      %1065 = vmatprep.subr.bf16.mxu0 0
      %1066 = vmatpush2.bf16.msra.mxu0 0
      %1067 = vmatprep.subr.bf16.mxu0 0
      %1068 = vmatpush2.bf16.msra.mxu0 0
      %1069 = vmatprep.subr.bf16.mxu0 0
      %1070 = vmatpush2.bf16.msra.mxu0 0
      %1071 = vmatprep.subr.bf16.mxu0 0
      %1072 = vmatpush2.bf16.msra.mxu0 0
      %1073 = vmatprep.subr.bf16.mxu0 0
      %1074 = vmatpush2.bf16.msra.mxu0 0
      %1075 = vmatprep.mubr.bf16.mxu0 0
      %1076 = vmatmul.mubr.bf16.gmra.mxu0 %v584
      %v1077 = vpop.f32.mrf.mxu0
      %v1078 = vadd.f32 %v1029, %v1077
      %v1079 = vpop.f32.mrf.mxu0
      %v1080 = vpop.f32.mrf.mxu0
      %v1081 = vadd.f32 %v1029, %v1080
      %v1082 = vpop.f32.mrf.mxu0
      %1083 = vmatprep.mubr.bf16.mxu0 0
      %1084 = vmatmul.mubr.bf16.gmra.mxu0 %v587
      %v1085 = vpop.f32.mrf.mxu0
      %v1086 = vadd.f32 %v1029, %v1085
      %v1087 = vpop.f32.mrf.mxu0
      %v1088 = vpop.f32.mrf.mxu0
      %v1089 = vadd.f32 %v1029, %v1088
      %v1090 = vpop.f32.mrf.mxu0
      %1091 = vdwg.mxu0
      %v1092 = vpack.c.bf16 %v1081, %v1078
      %v1093 = vpack.c.bf16 %v1089, %v1086
      %s1094 = scalar_lea.vmem %s6, 16
      %v1095 = vld [vmem:[%s1094] sm:$0xf]
      %v1096 = vld [vmem:[%s1094 + $0x4] sm:$0xf]
      %v1097 = vld [vmem:[%s1094 + $0x8] sm:$0xf]
      %v1098 = vld [vmem:[%s1094 + $0xc] sm:$0xf]
      %s1099 = scalar_lea.vmem %s7, 1
      %v1100 = vld [vmem:[%s1099] sm:$0x1]
      %v1102 = vlaneseq
      %v1103 = vshrl.u32 %v1102, 7
      %v1104 = vsub.s32 0, %v1103
      %v1105 = vrot.slane %v1100, %v1104
      %v1111 = vunpack.c.l.b16 %v1095
      %v1112 = vunpack.c.l.b16 %v1096
      %v1113 = vunpack.c.l.b16 %v1097
      %v1114 = vunpack.c.l.b16 %v1098
      %v1115 = vpack.c.b16 %v1112, %v1111
      %v1116 = vpack.c.b16 %v1114, %v1113
      %1119 = vmatprep.subr.bf16.mxu0 0
      %1120 = vmatpush1.bf16.msra.mxu0 0
      %1121 = vmatprep.subr.bf16.mxu0 0
      %1122 = vmatpush1.bf16.msra.mxu0 0
      %1123 = vmatprep.subr.bf16.mxu0 0
      %1124 = vmatpush1.bf16.msra.mxu0 0
      %1125 = vmatprep.subr.bf16.mxu0 0
      %1126 = vmatpush1.bf16.msra.mxu0 0
      %1127 = vmatprep.subr.bf16.mxu0 0
      %1128 = vmatpush1.bf16.msra.mxu0 0
      %1129 = vmatprep.subr.bf16.mxu0 0
      %1130 = vmatpush1.bf16.msra.mxu0 0
      %1131 = vmatprep.subr.bf16.mxu0 0
      %1132 = vmatpush1.bf16.msra.mxu0 %v1116
      %1133 = vmatprep.subr.bf16.mxu0 0
      %1134 = vmatpush1.bf16.msra.mxu0 %v1115
      %1135 = vmatprep.subr.bf16.mxu0 0
      %1136 = vmatpush2.bf16.msra.mxu0 0
      %1137 = vmatprep.subr.bf16.mxu0 0
      %1138 = vmatpush2.bf16.msra.mxu0 0
      %1139 = vmatprep.subr.bf16.mxu0 0
      %1140 = vmatpush2.bf16.msra.mxu0 0
      %1141 = vmatprep.subr.bf16.mxu0 0
      %1142 = vmatpush2.bf16.msra.mxu0 0
      %1143 = vmatprep.subr.bf16.mxu0 0
      %1144 = vmatpush2.bf16.msra.mxu0 0
      %1145 = vmatprep.subr.bf16.mxu0 0
      %1146 = vmatpush2.bf16.msra.mxu0 0
      %1147 = vmatprep.subr.bf16.mxu0 0
      %1148 = vmatpush2.bf16.msra.mxu0 0
      %1149 = vmatprep.subr.bf16.mxu0 0
      %1150 = vmatpush2.bf16.msra.mxu0 0
      %1151 = vmatprep.mubr.bf16.mxu0 0
      %1152 = vmatmul.mubr.bf16.gmra.mxu0 %v664
      %v1153 = vpop.f32.mrf.mxu0
      %v1154 = vadd.f32 %v1105, %v1153
      %v1155 = vpop.f32.mrf.mxu0
      %v1156 = vpop.f32.mrf.mxu0
      %v1157 = vadd.f32 %v1105, %v1156
      %v1158 = vpop.f32.mrf.mxu0
      %1159 = vmatprep.mubr.bf16.mxu0 0
      %1160 = vmatmul.mubr.bf16.gmra.mxu0 %v667
      %v1161 = vpop.f32.mrf.mxu0
      %v1162 = vadd.f32 %v1105, %v1161
      %v1163 = vpop.f32.mrf.mxu0
      %v1164 = vpop.f32.mrf.mxu0
      %v1165 = vadd.f32 %v1105, %v1164
      %v1166 = vpop.f32.mrf.mxu0
      %1167 = vmatprep.mubr.bf16.mxu0 0
      %1168 = vmatmul.mubr.bf16.gmra.mxu0 %v670
      %v1169 = vpop.f32.mrf.mxu0
      %v1170 = vadd.f32 %v1105, %v1169
      %v1171 = vpop.f32.mrf.mxu0
      %v1172 = vpop.f32.mrf.mxu0
      %v1173 = vadd.f32 %v1105, %v1172
      %v1174 = vpop.f32.mrf.mxu0
      %1175 = vmatprep.mubr.bf16.mxu0 0
      %1176 = vmatmul.mubr.bf16.gmra.mxu0 %v673
      %v1177 = vpop.f32.mrf.mxu0
      %v1178 = vadd.f32 %v1105, %v1177
      %v1179 = vpop.f32.mrf.mxu0
      %v1180 = vpop.f32.mrf.mxu0
      %v1181 = vadd.f32 %v1105, %v1180
      %v1182 = vpop.f32.mrf.mxu0
      %1183 = vdwg.mxu0
      %v1184 = vpack.c.bf16 %v1157, %v1154
      %v1185 = vpack.c.bf16 %v1165, %v1162
      %v1186 = vpack.c.bf16 %v1173, %v1170
      %v1187 = vpack.c.bf16 %v1181, %v1178
      %s1188 = scalar_lea.vmem %s8, 16
      %v1189 = vld [vmem:[%s1188] sm:$0xf]
      %v1190 = vld [vmem:[%s1188 + $0x4] sm:$0xf]
      %v1191 = vld [vmem:[%s1188 + $0x8] sm:$0xf]
      %v1192 = vld [vmem:[%s1188 + $0xc] sm:$0xf]
      %s1193 = scalar_lea.vmem %s9, 1
      %v1194 = vld [vmem:[%s1193] sm:$0x1]
      %v1196 = vlaneseq
      %v1197 = vshrl.u32 %v1196, 7
      %v1198 = vsub.s32 0, %v1197
      %v1199 = vrot.slane %v1194, %v1198
      %v1205 = vunpack.c.l.b16 %v1189
      %v1206 = vunpack.c.l.b16 %v1190
      %v1207 = vunpack.c.l.b16 %v1191
      %v1208 = vunpack.c.l.b16 %v1192
      %v1209 = vpack.c.b16 %v1206, %v1205
      %v1210 = vpack.c.b16 %v1208, %v1207
      %1213 = vmatprep.subr.bf16.mxu0 0
      %1214 = vmatpush1.bf16.msra.mxu0 0
      %1215 = vmatprep.subr.bf16.mxu0 0
      %1216 = vmatpush1.bf16.msra.mxu0 0
      %1217 = vmatprep.subr.bf16.mxu0 0
      %1218 = vmatpush1.bf16.msra.mxu0 0
      %1219 = vmatprep.subr.bf16.mxu0 0
      %1220 = vmatpush1.bf16.msra.mxu0 0
      %1221 = vmatprep.subr.bf16.mxu0 0
      %1222 = vmatpush1.bf16.msra.mxu0 0
      %1223 = vmatprep.subr.bf16.mxu0 0
      %1224 = vmatpush1.bf16.msra.mxu0 0
      %1225 = vmatprep.subr.bf16.mxu0 0
      %1226 = vmatpush1.bf16.msra.mxu0 %v1210
      %1227 = vmatprep.subr.bf16.mxu0 0
      %1228 = vmatpush1.bf16.msra.mxu0 %v1209
      %1229 = vmatprep.subr.bf16.mxu0 0
      %1230 = vmatpush2.bf16.msra.mxu0 0
      %1231 = vmatprep.subr.bf16.mxu0 0
      %1232 = vmatpush2.bf16.msra.mxu0 0
      %1233 = vmatprep.subr.bf16.mxu0 0
      %1234 = vmatpush2.bf16.msra.mxu0 0
      %1235 = vmatprep.subr.bf16.mxu0 0
      %1236 = vmatpush2.bf16.msra.mxu0 0
      %1237 = vmatprep.subr.bf16.mxu0 0
      %1238 = vmatpush2.bf16.msra.mxu0 0
      %1239 = vmatprep.subr.bf16.mxu0 0
      %1240 = vmatpush2.bf16.msra.mxu0 0
      %1241 = vmatprep.subr.bf16.mxu0 0
      %1242 = vmatpush2.bf16.msra.mxu0 0
      %1243 = vmatprep.subr.bf16.mxu0 0
      %1244 = vmatpush2.bf16.msra.mxu0 0
      %1245 = vmatprep.mubr.bf16.mxu0 0
      %1246 = vmatmul.mubr.bf16.gmra.mxu0 %v664
      %v1247 = vpop.f32.mrf.mxu0
      %v1248 = vadd.f32 %v1199, %v1247
      %v1249 = vpop.f32.mrf.mxu0
      %v1250 = vpop.f32.mrf.mxu0
      %v1251 = vadd.f32 %v1199, %v1250
      %v1252 = vpop.f32.mrf.mxu0
      %1253 = vmatprep.mubr.bf16.mxu0 0
      %1254 = vmatmul.mubr.bf16.gmra.mxu0 %v667
      %v1255 = vpop.f32.mrf.mxu0
      %v1256 = vadd.f32 %v1199, %v1255
      %v1257 = vpop.f32.mrf.mxu0
      %v1258 = vpop.f32.mrf.mxu0
      %v1259 = vadd.f32 %v1199, %v1258
      %v1260 = vpop.f32.mrf.mxu0
      %1261 = vmatprep.mubr.bf16.mxu0 0
      %1262 = vmatmul.mubr.bf16.gmra.mxu0 %v670
      %v1263 = vpop.f32.mrf.mxu0
      %v1264 = vadd.f32 %v1199, %v1263
      %v1265 = vpop.f32.mrf.mxu0
      %v1266 = vpop.f32.mrf.mxu0
      %v1267 = vadd.f32 %v1199, %v1266
      %v1268 = vpop.f32.mrf.mxu0
      %1269 = vmatprep.mubr.bf16.mxu0 0
      %1270 = vmatmul.mubr.bf16.gmra.mxu0 %v673
      %v1271 = vpop.f32.mrf.mxu0
      %v1272 = vadd.f32 %v1199, %v1271
      %v1273 = vpop.f32.mrf.mxu0
      %v1274 = vpop.f32.mrf.mxu0
      %v1275 = vadd.f32 %v1199, %v1274
      %v1276 = vpop.f32.mrf.mxu0
      %1277 = vdwg.mxu0
      %v1278 = vpack.c.bf16 %v1251, %v1248
      %v1279 = vpack.c.bf16 %v1259, %v1256
      %v1280 = vpack.c.bf16 %v1267, %v1264
      %v1281 = vpack.c.bf16 %v1275, %v1272
      %s1282 = scalar_lea.vmem %s505, 16
      %v1283 = vld [vmem:[%s1282] sm:$0xf]
      %v1284 = vld [vmem:[%s1282 + $0x4] sm:$0xf]
      %v1285 = vld [vmem:[%s1282 + $0x8] sm:$0xf]
      %v1286 = vld [vmem:[%s1282 + $0xc] sm:$0xf]
      %v1287 = vunpack.c.l.bf16 %v1283
      %v1288 = vunpack.c.l.bf16 %v1284
      %v1289 = vunpack.c.l.bf16 %v1285
      %v1290 = vunpack.c.l.bf16 %v1286
      %v1292 = vsel %vm844, %v1092, 0
      %v1295 = vsel %vm844, %v1093, 0
      %v1298 = vsel %vm844, %v1184, 0
      %v1301 = vsel %vm844, %v1185, 0
      %v1304 = vsel %vm844, %v1186, 0
      %v1307 = vsel %vm844, %v1187, 0
      %1309 = vmatprep.subr.bf16.mxu0 0
      %1310 = vmatpush1.bf16.xpose.msra.mxu0 0
      %1311 = vmatprep.subr.bf16.mxu0 0
      %1312 = vmatpush1.bf16.xpose.msra.mxu0 0
      %1313 = vmatprep.subr.bf16.mxu0 0
      %1314 = vmatpush1.bf16.xpose.msra.mxu0 0
      %1315 = vmatprep.subr.bf16.mxu0 0
      %1316 = vmatpush1.bf16.xpose.msra.mxu0 0
      %1317 = vmatprep.subr.bf16.mxu0 0
      %1318 = vmatpush1.bf16.xpose.msra.mxu0 %v1307
      %1319 = vmatprep.subr.bf16.mxu0 0
      %1320 = vmatpush1.bf16.xpose.msra.mxu0 %v1304
      %1321 = vmatprep.subr.bf16.mxu0 0
      %1322 = vmatpush1.bf16.xpose.msra.mxu0 %v1301
      %1323 = vmatprep.subr.bf16.mxu0 0
      %1324 = vmatpush1.bf16.xpose.msra.mxu0 %v1298
      %1325 = vmatprep.subr.bf16.mxu0 0
      %1326 = vmatpush2.bf16.xpose.msra.mxu0 0
      %1327 = vmatprep.subr.bf16.mxu0 0
      %1328 = vmatpush2.bf16.xpose.msra.mxu0 0
      %1329 = vmatprep.subr.bf16.mxu0 0
      %1330 = vmatpush2.bf16.xpose.msra.mxu0 0
      %1331 = vmatprep.subr.bf16.mxu0 0
      %1332 = vmatpush2.bf16.xpose.msra.mxu0 0
      %1333 = vmatprep.subr.bf16.mxu0 0
      %1334 = vmatpush2.bf16.xpose.msra.mxu0 0
      %1335 = vmatprep.subr.bf16.mxu0 0
      %1336 = vmatpush2.bf16.xpose.msra.mxu0 0
      %1337 = vmatprep.subr.bf16.mxu0 0
      %1338 = vmatpush2.bf16.xpose.msra.mxu0 0
      %1339 = vmatprep.subr.bf16.mxu0 0
      %1340 = vmatpush2.bf16.xpose.msra.mxu0 0
      %1341 = vmatprep.mubr.bf16.mxu0 0
      %1342 = vmatmul.mubr.bf16.gmra.mxu0 %v1292
      %v1343 = vpop.f32.mrf.mxu0
      %v1344 = vadd.f32 %v1287, %v1343
      %v1345 = vpop.f32.mrf.mxu0
      %v1346 = vpop.f32.mrf.mxu0
      %v1347 = vadd.f32 %v1288, %v1346
      %v1348 = vpop.f32.mrf.mxu0
      %1349 = vmatprep.mubr.bf16.mxu0 0
      %1350 = vmatmul.mubr.bf16.gmra.mxu0 %v1295
      %v1351 = vpop.f32.mrf.mxu0
      %v1352 = vadd.f32 %v1289, %v1351
      %v1353 = vpop.f32.mrf.mxu0
      %v1354 = vpop.f32.mrf.mxu0
      %v1355 = vadd.f32 %v1290, %v1354
      %v1356 = vpop.f32.mrf.mxu0
      %1357 = vdwg.mxu0
      %v1358 = vsel %vm912, %v1344, -inf
      %1359 = vmax.xlane.f32.xlu0 %v1358
      %v1360 = vpop.xlane.xlu0 %1359
      %v1361 = vsel %vm912, %v1347, -inf
      %1362 = vmax.xlane.f32.xlu0 %v1361
      %v1363 = vpop.xlane.xlu0 %1362
      %v1364 = vsel %vm912, %v1352, -inf
      %1365 = vmax.xlane.f32.xlu0 %v1364
      %v1366 = vpop.xlane.xlu0 %1365
      %v1367 = vsel %vm912, %v1355, -inf
      %1368 = vmax.xlane.f32.xlu0 %v1367
      %v1369 = vpop.xlane.xlu0 %1368
      %v1370 = vsub.f32 %v1344, %v1360
      %v1371 = vsub.f32 %v1347, %v1363
      %v1372 = vsub.f32 %v1352, %v1366
      %v1373 = vsub.f32 %v1355, %v1369
      %v1374 = vmul.f32 %v1370, 1.442695
      %v1375 = vpow.pop %v1374
      %v1376 = vmul.f32 %v1371, 1.442695
      %v1377 = vpow.pop %v1376
      %v1378 = vmul.f32 %v1372, 1.442695
      %v1379 = vpow.pop %v1378
      %v1380 = vmul.f32 %v1373, 1.442695
      %v1381 = vpow.pop %v1380
      %v1382 = vsel %vm912, %v1375, 0.0
      %1383 = vadd.xlane.f32.xlu0 %v1382
      %v1384 = vpop.xlane.xlu0 %1383
      %v1385 = vsel %vm912, %v1377, 0.0
      %1386 = vadd.xlane.f32.xlu0 %v1385
      %v1387 = vpop.xlane.xlu0 %1386
      %v1388 = vsel %vm912, %v1379, 0.0
      %1389 = vadd.xlane.f32.xlu0 %v1388
      %v1390 = vpop.xlane.xlu0 %1389
      %v1391 = vsel %vm912, %v1381, 0.0
      %1392 = vadd.xlane.f32.xlu0 %v1391
      %v1393 = vpop.xlane.xlu0 %1392
      %v1394 = vrcp.pop %v1384
      %v1395 = vrcp.pop %v1387
      %v1396 = vrcp.pop %v1390
      %v1397 = vrcp.pop %v1393
      %v1398 = vmul.f32 %v1375, %v1394
      %v1399 = vmul.f32 %v1377, %v1395
      %v1400 = vmul.f32 %v1379, %v1396
      %v1401 = vmul.f32 %v1381, %v1397
      %v1402 = vpack.c.bf16 %v1399, %v1398
      %v1403 = vpack.c.bf16 %v1401, %v1400
      %v1405 = vsel %vm912, %v1402, 0
      %v1408 = vsel %vm912, %v1403, 0
      %1410 = vmatprep.subr.bf16.mxu0 0
      %1411 = vmatpush1.bf16.msra.mxu0 0
      %1412 = vmatprep.subr.bf16.mxu0 0
      %1413 = vmatpush1.bf16.msra.mxu0 0
      %1414 = vmatprep.subr.bf16.mxu0 0
      %1415 = vmatpush1.bf16.msra.mxu0 0
      %1416 = vmatprep.subr.bf16.mxu0 0
      %1417 = vmatpush1.bf16.msra.mxu0 0
      %1418 = vmatprep.subr.bf16.mxu0 0
      %1419 = vmatpush1.bf16.msra.mxu0 %v1281
      %1420 = vmatprep.subr.bf16.mxu0 0
      %1421 = vmatpush1.bf16.msra.mxu0 %v1280
      %1422 = vmatprep.subr.bf16.mxu0 0
      %1423 = vmatpush1.bf16.msra.mxu0 %v1279
      %1424 = vmatprep.subr.bf16.mxu0 0
      %1425 = vmatpush1.bf16.msra.mxu0 %v1278
      %1426 = vmatprep.subr.bf16.mxu0 0
      %1427 = vmatpush2.bf16.msra.mxu0 0
      %1428 = vmatprep.subr.bf16.mxu0 0
      %1429 = vmatpush2.bf16.msra.mxu0 0
      %1430 = vmatprep.subr.bf16.mxu0 0
      %1431 = vmatpush2.bf16.msra.mxu0 0
      %1432 = vmatprep.subr.bf16.mxu0 0
      %1433 = vmatpush2.bf16.msra.mxu0 0
      %1434 = vmatprep.subr.bf16.mxu0 0
      %1435 = vmatpush2.bf16.msra.mxu0 0
      %1436 = vmatprep.subr.bf16.mxu0 0
      %1437 = vmatpush2.bf16.msra.mxu0 0
      %1438 = vmatprep.subr.bf16.mxu0 0
      %1439 = vmatpush2.bf16.msra.mxu0 0
      %1440 = vmatprep.subr.bf16.mxu0 0
      %1441 = vmatpush2.bf16.msra.mxu0 0
      %1442 = vmatprep.mubr.bf16.mxu0 0
      %1443 = vmatmul.mubr.bf16.gmra.mxu0 %v1405
      %v1444 = vpop.f32.mrf.mxu0
      %v1445 = vadd.f32 0.0, %v1444
      %v1446 = vpop.f32.mrf.mxu0
      %v1447 = vpop.f32.mrf.mxu0
      %v1448 = vadd.f32 0.0, %v1447
      %v1449 = vpop.f32.mrf.mxu0
      %1450 = vmatprep.mubr.bf16.mxu0 0
      %1451 = vmatmul.mubr.bf16.gmra.mxu0 %v1408
      %v1452 = vpop.f32.mrf.mxu0
      %v1453 = vadd.f32 0.0, %v1452
      %v1454 = vpop.f32.mrf.mxu0
      %v1455 = vpop.f32.mrf.mxu0
      %v1456 = vadd.f32 0.0, %v1455
      %v1457 = vpop.f32.mrf.mxu0
      %1458 = vdwg.mxu0
      %v1459 = vpack.c.bf16 %v1448, %v1445
      %v1460 = vpack.c.bf16 %v1456, %v1453
      %s1461 = scalar_lea.vmem %s10, 8
      %v1462 = vld [vmem:[%s1461] sm:$0xf]
      %v1463 = vld [vmem:[%s1461 + $0x4] sm:$0xf]
      %v1466 = vunpack.c.l.b16 %v1462
      %v1467 = vunpack.c.l.b16 %v1463
      %v1468 = vpack.c.b16 %v1467, %v1466
      %v1471 = vsel %vm844, %v1459, 0
      %v1474 = vsel %vm844, %v1460, 0
      %1476 = vmatprep.subr.bf16.mxu0 0
      %1477 = vmatpush1.bf16.msra.mxu0 0
      %1478 = vmatprep.subr.bf16.mxu0 0
      %1479 = vmatpush1.bf16.msra.mxu0 0
      %1480 = vmatprep.subr.bf16.mxu0 0
      %1481 = vmatpush1.bf16.msra.mxu0 0
      %1482 = vmatprep.subr.bf16.mxu0 0
      %1483 = vmatpush1.bf16.msra.mxu0 0
      %1484 = vmatprep.subr.bf16.mxu0 0
      %1485 = vmatpush1.bf16.msra.mxu0 0
      %1486 = vmatprep.subr.bf16.mxu0 0
      %1487 = vmatpush1.bf16.msra.mxu0 0
      %1488 = vmatprep.subr.bf16.mxu0 0
      %1489 = vmatpush1.bf16.msra.mxu0 0
      %1490 = vmatprep.subr.bf16.mxu0 0
      %1491 = vmatpush1.bf16.msra.mxu0 %v1468
      %1492 = vmatprep.subr.bf16.mxu0 0
      %1493 = vmatpush2.bf16.msra.mxu0 0
      %1494 = vmatprep.subr.bf16.mxu0 0
      %1495 = vmatpush2.bf16.msra.mxu0 0
      %1496 = vmatprep.subr.bf16.mxu0 0
      %1497 = vmatpush2.bf16.msra.mxu0 0
      %1498 = vmatprep.subr.bf16.mxu0 0
      %1499 = vmatpush2.bf16.msra.mxu0 0
      %1500 = vmatprep.subr.bf16.mxu0 0
      %1501 = vmatpush2.bf16.msra.mxu0 0
      %1502 = vmatprep.subr.bf16.mxu0 0
      %1503 = vmatpush2.bf16.msra.mxu0 0
      %1504 = vmatprep.subr.bf16.mxu0 0
      %1505 = vmatpush2.bf16.msra.mxu0 0
      %1506 = vmatprep.subr.bf16.mxu0 0
      %1507 = vmatpush2.bf16.msra.mxu0 0
      %1508 = vmatprep.mubr.bf16.mxu0 0
      %1509 = vmatmul.mubr.bf16.gmra.mxu0 %v1471
      %v1510 = vpop.f32.mrf.mxu0
      %v1511 = vadd.f32 0.0, %v1510
      %v1512 = vpop.f32.mrf.mxu0
      %v1513 = vpop.f32.mrf.mxu0
      %v1514 = vadd.f32 0.0, %v1513
      %v1515 = vpop.f32.mrf.mxu0
      %1516 = vmatprep.mubr.bf16.mxu0 0
      %1517 = vmatmul.mubr.bf16.gmra.mxu0 %v1474
      %v1518 = vpop.f32.mrf.mxu0
      %v1519 = vadd.f32 0.0, %v1518
      %v1520 = vpop.f32.mrf.mxu0
      %v1521 = vpop.f32.mrf.mxu0
      %v1522 = vadd.f32 0.0, %v1521
      %v1523 = vpop.f32.mrf.mxu0
      %1524 = vdwg.mxu0
      %v1527 = vunpack.c.l.b16 %v1016
      %v1528 = vunpack.c.l.b16 %v1017
      %v1529 = vpack.c.b16 %v1528, %v1527
      %v1532 = vsel %vm844, %v1014, 0
      %v1535 = vsel %vm844, %v1015, 0
      %1537 = vmatprep.subr.bf16.mxu0 0
      %1538 = vmatpush1.bf16.msra.mxu0 0
      %1539 = vmatprep.subr.bf16.mxu0 0
      %1540 = vmatpush1.bf16.msra.mxu0 0
      %1541 = vmatprep.subr.bf16.mxu0 0
      %1542 = vmatpush1.bf16.msra.mxu0 0
      %1543 = vmatprep.subr.bf16.mxu0 0
      %1544 = vmatpush1.bf16.msra.mxu0 0
      %1545 = vmatprep.subr.bf16.mxu0 0
      %1546 = vmatpush1.bf16.msra.mxu0 0
      %1547 = vmatprep.subr.bf16.mxu0 0
      %1548 = vmatpush1.bf16.msra.mxu0 0
      %1549 = vmatprep.subr.bf16.mxu0 0
      %1550 = vmatpush1.bf16.msra.mxu0 0
      %1551 = vmatprep.subr.bf16.mxu0 0
      %1552 = vmatpush1.bf16.msra.mxu0 %v1529
      %1553 = vmatprep.subr.bf16.mxu0 0
      %1554 = vmatpush2.bf16.msra.mxu0 0
      %1555 = vmatprep.subr.bf16.mxu0 0
      %1556 = vmatpush2.bf16.msra.mxu0 0
      %1557 = vmatprep.subr.bf16.mxu0 0
      %1558 = vmatpush2.bf16.msra.mxu0 0
      %1559 = vmatprep.subr.bf16.mxu0 0
      %1560 = vmatpush2.bf16.msra.mxu0 0
      %1561 = vmatprep.subr.bf16.mxu0 0
      %1562 = vmatpush2.bf16.msra.mxu0 0
      %1563 = vmatprep.subr.bf16.mxu0 0
      %1564 = vmatpush2.bf16.msra.mxu0 0
      %1565 = vmatprep.subr.bf16.mxu0 0
      %1566 = vmatpush2.bf16.msra.mxu0 0
      %1567 = vmatprep.subr.bf16.mxu0 0
      %1568 = vmatpush2.bf16.msra.mxu0 0
      %1569 = vmatprep.mubr.bf16.mxu0 0
      %1570 = vmatmul.mubr.bf16.gmra.mxu0 %v1532
      %v1571 = vpop.f32.mrf.mxu0
      %v1572 = vadd.f32 %v1511, %v1571
      %v1573 = vpop.f32.mrf.mxu0
      %v1574 = vpop.f32.mrf.mxu0
      %v1575 = vadd.f32 %v1514, %v1574
      %v1576 = vpop.f32.mrf.mxu0
      %1577 = vmatprep.mubr.bf16.mxu0 0
      %1578 = vmatmul.mubr.bf16.gmra.mxu0 %v1535
      %v1579 = vpop.f32.mrf.mxu0
      %v1580 = vadd.f32 %v1519, %v1579
      %v1581 = vpop.f32.mrf.mxu0
      %v1582 = vpop.f32.mrf.mxu0
      %v1583 = vadd.f32 %v1522, %v1582
      %v1584 = vpop.f32.mrf.mxu0
      %1585 = vdwg.mxu0
      %v1586 = vld [vmem:[%s11] sm:$0x1]
      %v1588 = vlaneseq
      %v1589 = vshrl.u32 %v1588, 7
      %v1590 = vsub.s32 0, %v1589
      %v1591 = vrot.slane %v1586, %v1590
      %v1593 = vadd.f32 %v1572, %v1591
      %v1594 = vadd.f32 %v1575, %v1591
      %v1595 = vadd.f32 %v1580, %v1591
      %v1596 = vadd.f32 %v1583, %v1591
      %1597 = vst.msk [vmem:[%s514] sm:$0xff] %vm582, %v1593
      %1598 = vst.msk [vmem:[%s514 + $0x8] sm:$0xff] %vm582, %v1594
      %1599 = vst.msk [vmem:[%s514 + $0x10] sm:$0xff] %vm582, %v1595
      %1600 = vst.msk [vmem:[%s514 + $0x18] sm:$0xff] %vm582, %v1596
      %s1601 = smul.u32 4, %s28
      %p1602 = scmp.lt.s32.totalorder %s27, 1
      %s1603 = scalar_select %p1602, %s27, 1
      %p1604 = scmp.lt.s32.totalorder %s1601, 7
      %s1605 = scalar_select %p1604, %s1601, 7
      %s1606 = smul.addr %s1603, 8
      %s1607 = sadd.s32 %s1605, %s1606
      %s1608 = smul.addr %s1607, 8
      %s1609 = scalar_lea.vmem %s12, %s1608
      // Predicated region
      $region69: #{tpu_custom_call.1} parent=67 // pred_check
        %p1610 = pneg %p329
      $region70: #{tpu_custom_call.1} parent=67 // pred_check_branch
        %1612 = sbr.rel (%p1610) target = $region72
      $region71: #{tpu_custom_call.1} parent=67 // pred_region
        %s1613 = smul.u32 4, %s28
      $region72: #{tpu_custom_call.1} parent=67 // pred_fallthru
        _
    $region68: #{tpu_custom_call.1} parent=5 // pred_fallthru
      _
    %p1614 = scmp.le.s32.totalorder 2, %s18
    // Predicated region
    $region73: #{tpu_custom_call.1} parent=5 // pred_check
      %p1615 = pneg %p1614
    $region74: #{tpu_custom_call.1} parent=5 // pred_check_branch
      %1617 = sbr.rel (%p1615) target = $region76
    $region75: #{tpu_custom_call.1} parent=5 // pred_region
      %s1618 = ssub.s32 %s18, 2
      // Predicated region
      $region77: #{tpu_custom_call.1} parent=75 // pred_check
        %p1619 = pneg %p335
      $region78: #{tpu_custom_call.1} parent=75 // pred_check_branch
        %1621 = sbr.rel (%p1619) target = $region80
      $region79: #{tpu_custom_call.1} parent=75 // pred_region
        %s1622 = smul.u32 4, %s30
        %p1623 = scmp.lt.s32.totalorder %s29, 1
        %s1624 = scalar_select %p1623, %s29, 1
        %p1625 = scmp.lt.s32.totalorder %s1622, 7
        %s1626 = scalar_select %p1625, %s1622, 7
        %s1627 = smul.addr %s1624, 8
        %s1628 = sadd.s32 %s1626, %s1627
        %s1629 = smul.addr %s1628, 8
        %s1630 = scalar_lea.vmem %s12, %s1629
      $region80: #{tpu_custom_call.1} parent=75 // pred_fallthru
        _
    $region76: #{tpu_custom_call.1} parent=5 // pred_fallthru
      _
  $region6: #{tpu_custom_call.1} parent=0 // loop_footer
    %s22 = sadd.s32 1, %s18
  $region7: #{tpu_custom_call.1} parent=0 // loop_footer_branch
    %17 = sbr.rel target = $region3
  $region8: #{tpu_custom_call.1} parent=0 // loop_exit
    _

// kernel: tpu_custom_call.1
$region0: #{tpu_custom_call.1}
  #allocation0 [shape = 'u32[]', space=smem, size = 0x4, offset = 0x4, fixed_abs, tag = 'smem constant byte address 0x4 - core index']
  #allocation1 [shape = 'u32[144,128]{1,0:T(1,128)}', space=vmem, size = 0x12000, scoped, tag = 'internal scratch']
  %s0 = inlined_call_operand.vmem [shape: bf16[2,64,32], index: 0, kind: input, shape index: {}]
  %s1 = inlined_call_operand.vmem [shape: bf16[2,64,32], index: 1, kind: input, shape index: {}]
  %s2 = inlined_call_operand.vmem [shape: bf16[2,64,32], index: 2, kind: input, shape index: {}]
  %s3 = inlined_call_operand.vmem [shape: bf16[2,2,32,64], index: 3, kind: input, shape index: {}]
  %s4 = inlined_call_operand.vmem [shape: bf16[2,32,16], index: 4, kind: input, shape index: {}]
  %s5 = inlined_call_operand.vmem [shape: f32[2,1,16], index: 5, kind: input, shape index: {}]
  %s6 = inlined_call_operand.vmem [shape: bf16[2,32,16], index: 6, kind: input, shape index: {}]
  %s7 = inlined_call_operand.vmem [shape: f32[2,1,16], index: 7, kind: input, shape index: {}]
  %s8 = inlined_call_operand.vmem [shape: bf16[2,32,16], index: 8, kind: input, shape index: {}]
  %s9 = inlined_call_operand.vmem [shape: f32[2,1,16], index: 9, kind: input, shape index: {}]
  %s10 = inlined_call_operand.vmem [shape: bf16[2,16,32], index: 10, kind: input, shape index: {}]
  %s11 = inlined_call_operand.vmem [shape: f32[1,32], index: 11, kind: input, shape index: {}]
  %s12 = inlined_call_operand.vmem [shape: f32[2,64,32], index: 12, kind: output, shape index: {}]
  %s13 = sld [smem:[#allocation0]]
  $region81: #{tpu_custom_call.1} parent=0
    _
  %s15 = ssub.s32 1, %s13
  %s16 = scalar_select 0, %s15, %s13
  loop: start=0, step=1, limit=6
  $region2: #{tpu_custom_call.1} parent=0 // loop_pre_header
    _
  $region3: #{tpu_custom_call.1} parent=0 // loop_header
    %s18 = sphi 0, %s22
    %p19 = scmp.ge.s32.totalorder %s18, 6
    %s25 = sphi 0, %s37
    %s26 = sphi 0, %s33
    %s27 = sphi 0, %s25
    %s28 = sphi 0, %s26
    %s29 = sphi 0, %s27
    %s30 = sphi 0, %s28
    %s42 = sphi 0, %s44
    %s45 = sphi 0, %s42
    %s46 = sphi 0, %s45
    %s62 = sphi 0, %s46
    %s68 = sphi 0, %s70
    %s71 = sphi 0, %s68
    %s72 = sphi 0, %s71
    %s88 = sphi 0, %s72
    %s94 = sphi 0, %s96
    %s97 = sphi 0, %s94
    %s98 = sphi 0, %s97
    %s114 = sphi 0, %s98
    %s120 = sphi 0, %s122
    %s123 = sphi 0, %s120
    %s124 = sphi 0, %s123
    %s140 = sphi 0, %s124
    %s144 = sphi 0, %s144
    %s146 = sphi 0, %s144
    %s147 = sphi 0, %s146
    %s161 = sphi 0, %s147
    %s165 = sphi 0, %s165
    %s167 = sphi 0, %s165
    %s168 = sphi 0, %s167
    %s182 = sphi 0, %s168
    %s186 = sphi 0, %s186
    %s188 = sphi 0, %s186
    %s189 = sphi 0, %s188
    %s203 = sphi 0, %s189
    %s207 = sphi 0, %s207
    %s209 = sphi 0, %s207
    %s210 = sphi 0, %s209
    %s224 = sphi 0, %s210
    %s228 = sphi 0, %s228
    %s230 = sphi 0, %s228
    %s231 = sphi 0, %s230
    %s245 = sphi 0, %s231
    %s249 = sphi 0, %s249
    %s251 = sphi 0, %s249
    %s252 = sphi 0, %s251
    %s266 = sphi 0, %s252
    %s270 = sphi 0, %s270
    %s272 = sphi 0, %s270
    %s273 = sphi 0, %s272
    %s287 = sphi 0, %s273
    %s291 = sphi 0, %s291
    %s293 = sphi 0, %s291
    %s294 = sphi 0, %s293
    %s308 = sphi 0, %s294
    %s316 = sphi 0, %s318
    %s319 = sphi 0, %s316
    %s320 = sphi 0, %s319
    %s336 = sphi 0, %s320
  $region4: #{tpu_custom_call.1} parent=0 // loop_header_branch
    %21 = sbr.rel (%p19) target = $region8
  $region5: #{tpu_custom_call.1} parent=0 // loop_body
    %s23 = ssub.s32 %s18, 1
    %s24 = ssub.s32 %s18, 2
    %s31 = sadd.s32 1, %s26
    %p32 = scmp.ge.s32.totalorder %s31, 2
    %s33 = scalar_select %p32, 0, %s31
    %s34 = sadd.s32 1, %s25
    %s35 = scalar_select %p32, %s34, %s25
    %p36 = scmp.ge.s32.totalorder %s35, 2
    %s37 = scalar_select %p36, 0, %s35
    %s38 = ssub.s32 %s25, %s37
    %s39 = ssub.s32 %s26, %s33
    %s40 = sor.u32 %s38, %s39
    %p41 = scmp.eq.s32.totalorder %s40, 0
    %s43 = sadd.s32 %s42, 1
    %s44 = scalar_select %p41, %s42, %s43
    %p47 = pneg %p41
    %p48 = scmp.eq.s32.totalorder %s18, 3
    %p49 = por %p47, %p48
    %p50 = scmp.ne.s32.totalorder %s42, %s45
    %p51 = scmp.eq.s32.totalorder %s18, 0
    %p52 = por %p50, %p51
    %p53 = scmp.ne.s32.totalorder %s42, %s45
    %p54 = scmp.eq.s32.totalorder %s23, 3
    %p55 = por %p53, %p54
    %p56 = scmp.ne.s32.totalorder %s45, %s46
    %p57 = scmp.eq.s32.totalorder %s23, 0
    %p58 = por %p56, %p57
    %p59 = scmp.ne.s32.totalorder %s45, %s46
    %p60 = scmp.eq.s32.totalorder %s24, 3
    %p61 = por %p59, %p60
    %p63 = scmp.ne.s32.totalorder %s46, %s62
    %p64 = scmp.eq.s32.totalorder %s24, 0
    %p65 = por %p63, %p64
    %s66 = ssub.s32 %s25, %s37
    %p67 = scmp.eq.s32.totalorder %s66, 0
    %s69 = sadd.s32 %s68, 1
    %s70 = scalar_select %p67, %s68, %s69
    %p73 = pneg %p67
    %p74 = scmp.eq.s32.totalorder %s18, 3
    %p75 = por %p73, %p74
    %p76 = scmp.ne.s32.totalorder %s68, %s71
    %p77 = scmp.eq.s32.totalorder %s18, 0
    %p78 = por %p76, %p77
    %p79 = scmp.ne.s32.totalorder %s68, %s71
    %p80 = scmp.eq.s32.totalorder %s23, 3
    %p81 = por %p79, %p80
    %p82 = scmp.ne.s32.totalorder %s71, %s72
    %p83 = scmp.eq.s32.totalorder %s23, 0
    %p84 = por %p82, %p83
    %p85 = scmp.ne.s32.totalorder %s71, %s72
    %p86 = scmp.eq.s32.totalorder %s24, 3
    %p87 = por %p85, %p86
    %p89 = scmp.ne.s32.totalorder %s72, %s88
    %p90 = scmp.eq.s32.totalorder %s24, 0
    %p91 = por %p89, %p90
    %s92 = ssub.s32 %s25, %s37
    %p93 = scmp.eq.s32.totalorder %s92, 0
    %s95 = sadd.s32 %s94, 1
    %s96 = scalar_select %p93, %s94, %s95
    %p99 = pneg %p93
    %p100 = scmp.eq.s32.totalorder %s18, 3
    %p101 = por %p99, %p100
    %p102 = scmp.ne.s32.totalorder %s94, %s97
    %p103 = scmp.eq.s32.totalorder %s18, 0
    %p104 = por %p102, %p103
    %p105 = scmp.ne.s32.totalorder %s94, %s97
    %p106 = scmp.eq.s32.totalorder %s23, 3
    %p107 = por %p105, %p106
    %p108 = scmp.ne.s32.totalorder %s97, %s98
    %p109 = scmp.eq.s32.totalorder %s23, 0
    %p110 = por %p108, %p109
    %p111 = scmp.ne.s32.totalorder %s97, %s98
    %p112 = scmp.eq.s32.totalorder %s24, 3
    %p113 = por %p111, %p112
    %p115 = scmp.ne.s32.totalorder %s98, %s114
    %p116 = scmp.eq.s32.totalorder %s24, 0
    %p117 = por %p115, %p116
    %s118 = ssub.s32 %s26, %s33
    %p119 = scmp.eq.s32.totalorder %s118, 0
    %s121 = sadd.s32 %s120, 1
    %s122 = scalar_select %p119, %s120, %s121
    %p125 = pneg %p119
    %p126 = scmp.eq.s32.totalorder %s18, 3
    %p127 = por %p125, %p126
    %p128 = scmp.ne.s32.totalorder %s120, %s123
    %p129 = scmp.eq.s32.totalorder %s18, 0
    %p130 = por %p128, %p129
    %p131 = scmp.ne.s32.totalorder %s120, %s123
    %p132 = scmp.eq.s32.totalorder %s23, 3
    %p133 = por %p131, %p132
    %p134 = scmp.ne.s32.totalorder %s123, %s124
    %p135 = scmp.eq.s32.totalorder %s23, 0
    %p136 = por %p134, %p135
    %p137 = scmp.ne.s32.totalorder %s123, %s124
    %p138 = scmp.eq.s32.totalorder %s24, 3
    %p139 = por %p137, %p138
    %p141 = scmp.ne.s32.totalorder %s124, %s140
    %p142 = scmp.eq.s32.totalorder %s24, 0
    %p143 = por %p141, %p142
    %s145 = sadd.s32 %s144, 1
    %p148 = scmp.eq.s32.totalorder %s18, 3
    %p149 = scmp.ne.s32.totalorder %s144, %s146
    %p150 = scmp.eq.s32.totalorder %s18, 0
    %p151 = por %p149, %p150
    %p152 = scmp.ne.s32.totalorder %s144, %s146
    %p153 = scmp.eq.s32.totalorder %s23, 3
    %p154 = por %p152, %p153
    %p155 = scmp.ne.s32.totalorder %s146, %s147
    %p156 = scmp.eq.s32.totalorder %s23, 0
    %p157 = por %p155, %p156
    %p158 = scmp.ne.s32.totalorder %s146, %s147
    %p159 = scmp.eq.s32.totalorder %s24, 3
    %p160 = por %p158, %p159
    %p162 = scmp.ne.s32.totalorder %s147, %s161
    %p163 = scmp.eq.s32.totalorder %s24, 0
    %p164 = por %p162, %p163
    %s166 = sadd.s32 %s165, 1
    %p169 = scmp.eq.s32.totalorder %s18, 3
    %p170 = scmp.ne.s32.totalorder %s165, %s167
    %p171 = scmp.eq.s32.totalorder %s18, 0
    %p172 = por %p170, %p171
    %p173 = scmp.ne.s32.totalorder %s165, %s167
    %p174 = scmp.eq.s32.totalorder %s23, 3
    %p175 = por %p173, %p174
    %p176 = scmp.ne.s32.totalorder %s167, %s168
    %p177 = scmp.eq.s32.totalorder %s23, 0
    %p178 = por %p176, %p177
    %p179 = scmp.ne.s32.totalorder %s167, %s168
    %p180 = scmp.eq.s32.totalorder %s24, 3
    %p181 = por %p179, %p180
    %p183 = scmp.ne.s32.totalorder %s168, %s182
    %p184 = scmp.eq.s32.totalorder %s24, 0
    %p185 = por %p183, %p184
    %s187 = sadd.s32 %s186, 1
    %p190 = scmp.eq.s32.totalorder %s18, 3
    %p191 = scmp.ne.s32.totalorder %s186, %s188
    %p192 = scmp.eq.s32.totalorder %s18, 0
    %p193 = por %p191, %p192
    %p194 = scmp.ne.s32.totalorder %s186, %s188
    %p195 = scmp.eq.s32.totalorder %s23, 3
    %p196 = por %p194, %p195
    %p197 = scmp.ne.s32.totalorder %s188, %s189
    %p198 = scmp.eq.s32.totalorder %s23, 0
    %p199 = por %p197, %p198
    %p200 = scmp.ne.s32.totalorder %s188, %s189
    %p201 = scmp.eq.s32.totalorder %s24, 3
    %p202 = por %p200, %p201
    %p204 = scmp.ne.s32.totalorder %s189, %s203
    %p205 = scmp.eq.s32.totalorder %s24, 0
    %p206 = por %p204, %p205
    %s208 = sadd.s32 %s207, 1
    %p211 = scmp.eq.s32.totalorder %s18, 3
    %p212 = scmp.ne.s32.totalorder %s207, %s209
    %p213 = scmp.eq.s32.totalorder %s18, 0
    %p214 = por %p212, %p213
    %p215 = scmp.ne.s32.totalorder %s207, %s209
    %p216 = scmp.eq.s32.totalorder %s23, 3
    %p217 = por %p215, %p216
    %p218 = scmp.ne.s32.totalorder %s209, %s210
    %p219 = scmp.eq.s32.totalorder %s23, 0
    %p220 = por %p218, %p219
    %p221 = scmp.ne.s32.totalorder %s209, %s210
    %p222 = scmp.eq.s32.totalorder %s24, 3
    %p223 = por %p221, %p222
    %p225 = scmp.ne.s32.totalorder %s210, %s224
    %p226 = scmp.eq.s32.totalorder %s24, 0
    %p227 = por %p225, %p226
    %s229 = sadd.s32 %s228, 1
    %p232 = scmp.eq.s32.totalorder %s18, 3
    %p233 = scmp.ne.s32.totalorder %s228, %s230
    %p234 = scmp.eq.s32.totalorder %s18, 0
    %p235 = por %p233, %p234
    %p236 = scmp.ne.s32.totalorder %s228, %s230
    %p237 = scmp.eq.s32.totalorder %s23, 3
    %p238 = por %p236, %p237
    %p239 = scmp.ne.s32.totalorder %s230, %s231
    %p240 = scmp.eq.s32.totalorder %s23, 0
    %p241 = por %p239, %p240
    %p242 = scmp.ne.s32.totalorder %s230, %s231
    %p243 = scmp.eq.s32.totalorder %s24, 3
    %p244 = por %p242, %p243
    %p246 = scmp.ne.s32.totalorder %s231, %s245
    %p247 = scmp.eq.s32.totalorder %s24, 0
    %p248 = por %p246, %p247
    %s250 = sadd.s32 %s249, 1
    %p253 = scmp.eq.s32.totalorder %s18, 3
    %p254 = scmp.ne.s32.totalorder %s249, %s251
    %p255 = scmp.eq.s32.totalorder %s18, 0
    %p256 = por %p254, %p255
    %p257 = scmp.ne.s32.totalorder %s249, %s251
    %p258 = scmp.eq.s32.totalorder %s23, 3
    %p259 = por %p257, %p258
    %p260 = scmp.ne.s32.totalorder %s251, %s252
    %p261 = scmp.eq.s32.totalorder %s23, 0
    %p262 = por %p260, %p261
    %p263 = scmp.ne.s32.totalorder %s251, %s252
    %p264 = scmp.eq.s32.totalorder %s24, 3
    %p265 = por %p263, %p264
    %p267 = scmp.ne.s32.totalorder %s252, %s266
    %p268 = scmp.eq.s32.totalorder %s24, 0
    %p269 = por %p267, %p268
    %s271 = sadd.s32 %s270, 1
    %p274 = scmp.eq.s32.totalorder %s18, 3
    %p275 = scmp.ne.s32.totalorder %s270, %s272
    %p276 = scmp.eq.s32.totalorder %s18, 0
    %p277 = por %p275, %p276
    %p278 = scmp.ne.s32.totalorder %s270, %s272
    %p279 = scmp.eq.s32.totalorder %s23, 3
    %p280 = por %p278, %p279
    %p281 = scmp.ne.s32.totalorder %s272, %s273
    %p282 = scmp.eq.s32.totalorder %s23, 0
    %p283 = por %p281, %p282
    %p284 = scmp.ne.s32.totalorder %s272, %s273
    %p285 = scmp.eq.s32.totalorder %s24, 3
    %p286 = por %p284, %p285
    %p288 = scmp.ne.s32.totalorder %s273, %s287
    %p289 = scmp.eq.s32.totalorder %s24, 0
    %p290 = por %p288, %p289
    %s292 = sadd.s32 %s291, 1
    %p295 = scmp.eq.s32.totalorder %s18, 3
    %p296 = scmp.ne.s32.totalorder %s291, %s293
    %p297 = scmp.eq.s32.totalorder %s18, 0
    %p298 = por %p296, %p297
    %p299 = scmp.ne.s32.totalorder %s291, %s293
    %p300 = scmp.eq.s32.totalorder %s23, 3
    %p301 = por %p299, %p300
    %p302 = scmp.ne.s32.totalorder %s293, %s294
    %p303 = scmp.eq.s32.totalorder %s23, 0
    %p304 = por %p302, %p303
    %p305 = scmp.ne.s32.totalorder %s293, %s294
    %p306 = scmp.eq.s32.totalorder %s24, 3
    %p307 = por %p305, %p306
    %p309 = scmp.ne.s32.totalorder %s294, %s308
    %p310 = scmp.eq.s32.totalorder %s24, 0
    %p311 = por %p309, %p310
    %s312 = ssub.s32 %s25, %s37
    %s313 = ssub.s32 %s26, %s33
    %s314 = sor.u32 %s312, %s313
    %p315 = scmp.eq.s32.totalorder %s314, 0
    %s317 = sadd.s32 %s316, 1
    %s318 = scalar_select %p315, %s316, %s317
    %p321 = pneg %p315
    %p322 = scmp.eq.s32.totalorder %s18, 3
    %p323 = por %p321, %p322
    %p324 = scmp.ne.s32.totalorder %s316, %s319
    %p325 = scmp.eq.s32.totalorder %s18, 0
    %p326 = por %p324, %p325
    %p327 = scmp.ne.s32.totalorder %s316, %s319
    %p328 = scmp.eq.s32.totalorder %s23, 3
    %p329 = por %p327, %p328
    %p330 = scmp.ne.s32.totalorder %s319, %s320
    %p331 = scmp.eq.s32.totalorder %s23, 0
    %p332 = por %p330, %p331
    %p333 = scmp.ne.s32.totalorder %s319, %s320
    %p334 = scmp.eq.s32.totalorder %s24, 3
    %p335 = por %p333, %p334
    %p337 = scmp.ne.s32.totalorder %s320, %s336
    %p338 = scmp.eq.s32.totalorder %s24, 0
    %p339 = por %p337, %p338
    %p340 = scmp.le.s32.totalorder 1, %s18
    %p341 = scmp.lt.s32.totalorder %s18, 5
    %p342 = pnand %p340, %p341
    %p343 = pneg %p342
    // Predicated region
    $region9: #{tpu_custom_call.1} parent=5 // pred_check
      _
    $region10: #{tpu_custom_call.1} parent=5 // pred_check_branch
      %345 = sbr.rel (%p342) target = $region12
    $region11: #{tpu_custom_call.1} parent=5 // pred_region
      %s346 = ssub.s32 %s18, 1
      // Predicated region
      $region13: #{tpu_custom_call.1} parent=11 // pred_check
        %p347 = pneg %p157
      $region14: #{tpu_custom_call.1} parent=11 // pred_check_branch
        %349 = sbr.rel (%p347) target = $region16
      $region15: #{tpu_custom_call.1} parent=11 // pred_region
        _
      $region16: #{tpu_custom_call.1} parent=11 // pred_fallthru
        _
      // Predicated region
      $region17: #{tpu_custom_call.1} parent=11 // pred_check
        %p350 = pneg %p178
      $region18: #{tpu_custom_call.1} parent=11 // pred_check_branch
        %352 = sbr.rel (%p350) target = $region20
      $region19: #{tpu_custom_call.1} parent=11 // pred_region
        _
      $region20: #{tpu_custom_call.1} parent=11 // pred_fallthru
        _
      // Predicated region
      $region21: #{tpu_custom_call.1} parent=11 // pred_check
        %p353 = pneg %p199
      $region22: #{tpu_custom_call.1} parent=11 // pred_check_branch
        %355 = sbr.rel (%p353) target = $region24
      $region23: #{tpu_custom_call.1} parent=11 // pred_region
        _
      $region24: #{tpu_custom_call.1} parent=11 // pred_fallthru
        _
      // Predicated region
      $region25: #{tpu_custom_call.1} parent=11 // pred_check
        %p356 = pneg %p220
      $region26: #{tpu_custom_call.1} parent=11 // pred_check_branch
        %358 = sbr.rel (%p356) target = $region28
      $region27: #{tpu_custom_call.1} parent=11 // pred_region
        _
      $region28: #{tpu_custom_call.1} parent=11 // pred_fallthru
        _
      // Predicated region
      $region29: #{tpu_custom_call.1} parent=11 // pred_check
        %p359 = pneg %p241
      $region30: #{tpu_custom_call.1} parent=11 // pred_check_branch
        %361 = sbr.rel (%p359) target = $region32
      $region31: #{tpu_custom_call.1} parent=11 // pred_region
        _
      $region32: #{tpu_custom_call.1} parent=11 // pred_fallthru
        _
      // Predicated region
      $region33: #{tpu_custom_call.1} parent=11 // pred_check
        %p362 = pneg %p262
      $region34: #{tpu_custom_call.1} parent=11 // pred_check_branch
        %364 = sbr.rel (%p362) target = $region36
      $region35: #{tpu_custom_call.1} parent=11 // pred_region
        _
      $region36: #{tpu_custom_call.1} parent=11 // pred_fallthru
        _
      // Predicated region
      $region37: #{tpu_custom_call.1} parent=11 // pred_check
        %p365 = pneg %p283
      $region38: #{tpu_custom_call.1} parent=11 // pred_check_branch
        %367 = sbr.rel (%p365) target = $region40
      $region39: #{tpu_custom_call.1} parent=11 // pred_region
        _
      $region40: #{tpu_custom_call.1} parent=11 // pred_fallthru
        _
      // Predicated region
      $region41: #{tpu_custom_call.1} parent=11 // pred_check
        %p368 = pneg %p304
      $region42: #{tpu_custom_call.1} parent=11 // pred_check_branch
        %370 = sbr.rel (%p368) target = $region44
      $region43: #{tpu_custom_call.1} parent=11 // pred_region
        _
      $region44: #{tpu_custom_call.1} parent=11 // pred_fallthru
        _
    $region12: #{tpu_custom_call.1} parent=5 // pred_fallthru
      _
    %p371 = scmp.lt.s32.totalorder %s18, 4
    // Predicated region
    $region45: #{tpu_custom_call.1} parent=5 // pred_check
      %p372 = pneg %p371
    $region46: #{tpu_custom_call.1} parent=5 // pred_check_branch
      %374 = sbr.rel (%p372) target = $region48
    $region47: #{tpu_custom_call.1} parent=5 // pred_region
      // Predicated region
      $region49: #{tpu_custom_call.1} parent=47 // pred_check
        %p375 = pneg %p52
      $region50: #{tpu_custom_call.1} parent=47 // pred_check_branch
        %377 = sbr.rel (%p375) target = $region52
      $region51: #{tpu_custom_call.1} parent=47 // pred_region
        %s378 = smul.u32 4, %s26
        %p379 = scmp.lt.s32.totalorder %s25, 1
        %s380 = scalar_select %p379, %s25, 1
        %p381 = scmp.lt.s32.totalorder %s378, 7
        %s382 = scalar_select %p381, %s378, 7
        %s383 = smul.addr %s380, 8
        %s384 = sadd.s32 %s382, %s383
        %s385 = smul.addr %s384, 4
        %s386 = scalar_lea.vmem %s0, %s385
        %s387 = smul.u32 4, %s26
      $region52: #{tpu_custom_call.1} parent=47 // pred_fallthru
        _
      // Predicated region
      $region53: #{tpu_custom_call.1} parent=47 // pred_check
        %p388 = pneg %p78
      $region54: #{tpu_custom_call.1} parent=47 // pred_check_branch
        %390 = sbr.rel (%p388) target = $region56
      $region55: #{tpu_custom_call.1} parent=47 // pred_region
        %p391 = scmp.lt.s32.totalorder %s25, 1
        %s392 = scalar_select %p391, %s25, 1
        %s393 = smul.addr %s392, 8
        %s394 = smul.addr %s393, 4
        %s395 = scalar_lea.vmem %s1, %s394
      $region56: #{tpu_custom_call.1} parent=47 // pred_fallthru
        _
      // Predicated region
      $region57: #{tpu_custom_call.1} parent=47 // pred_check
        %p396 = pneg %p104
      $region58: #{tpu_custom_call.1} parent=47 // pred_check_branch
        %398 = sbr.rel (%p396) target = $region60
      $region59: #{tpu_custom_call.1} parent=47 // pred_region
        %p399 = scmp.lt.s32.totalorder %s25, 1
        %s400 = scalar_select %p399, %s25, 1
        %s401 = smul.addr %s400, 8
        %s402 = sadd.s32 4, %s401
        %s403 = smul.addr %s402, 4
        %s404 = scalar_lea.vmem %s2, %s403
      $region60: #{tpu_custom_call.1} parent=47 // pred_fallthru
        _
      // Predicated region
      $region61: #{tpu_custom_call.1} parent=47 // pred_check
        %p405 = pneg %p130
      $region62: #{tpu_custom_call.1} parent=47 // pred_check_branch
        %407 = sbr.rel (%p405) target = $region64
      $region63: #{tpu_custom_call.1} parent=47 // pred_region
        %p408 = scmp.lt.s32.totalorder %s26, 1
        %s409 = scalar_select %p408, %s26, 1
        %s410 = smul.addr %s409, 8
        %s411 = smul.addr %s410, 4
        %s412 = scalar_lea.vmem %s3, %s411
      $region64: #{tpu_custom_call.1} parent=47 // pred_fallthru
        _
    $region48: #{tpu_custom_call.1} parent=5 // pred_fallthru
      _
    %p413 = scmp.le.s32.totalorder 1, %s18
    %p414 = scmp.lt.s32.totalorder %s18, 5
    %p415 = pnand %p413, %p414
    %p416 = pneg %p415
    // Predicated region
    $region65: #{tpu_custom_call.1} parent=5 // pred_check
      _
    $region66: #{tpu_custom_call.1} parent=5 // pred_check_branch
      %418 = sbr.rel (%p415) target = $region68
    $region67: #{tpu_custom_call.1} parent=5 // pred_region
      %s419 = ssub.s32 %s18, 1
      %s420 = smul.u32 4, %s28
      %p421 = scmp.lt.s32.totalorder %s27, 1
      %s422 = scalar_select %p421, %s27, 1
      %p423 = scmp.lt.s32.totalorder %s420, 7
      %s424 = scalar_select %p423, %s420, 7
      %s425 = smul.addr %s422, 8
      %s426 = sadd.s32 %s424, %s425
      %s427 = smul.addr %s426, 4
      %s428 = scalar_lea.vmem %s0, %s427
      %p429 = pneg %p58
      %p430 = pneg %p55
      %p431 = scmp.lt.s32.totalorder %s27, 1
      %s432 = scalar_select %p431, %s27, 1
      %s433 = smul.addr %s432, 8
      %s434 = smul.addr %s433, 4
      %s435 = scalar_lea.vmem %s1, %s434
      %p436 = pneg %p84
      %p437 = pneg %p81
      %p438 = scmp.lt.s32.totalorder %s27, 1
      %s439 = scalar_select %p438, %s27, 1
      %s440 = smul.addr %s439, 8
      %s441 = sadd.s32 4, %s440
      %s442 = smul.addr %s441, 4
      %s443 = scalar_lea.vmem %s2, %s442
      %p444 = pneg %p110
      %p445 = pneg %p107
      %p446 = scmp.lt.s32.totalorder %s28, 1
      %s447 = scalar_select %p446, %s28, 1
      %s448 = smul.addr %s447, 8
      %s449 = smul.addr %s448, 4
      %s450 = scalar_lea.vmem %s3, %s449
      %p451 = pneg %p136
      %p452 = pneg %p133
      %p453 = pneg %p157
      %p454 = pneg %p154
      %p455 = pneg %p178
      %p456 = pneg %p175
      %p457 = pneg %p199
      %p458 = pneg %p196
      %p459 = pneg %p220
      %p460 = pneg %p217
      %p461 = pneg %p241
      %p462 = pneg %p238
      %p463 = pneg %p262
      %p464 = pneg %p259
      %p465 = pneg %p283
      %p466 = pneg %p280
      %p467 = pneg %p304
      %p468 = pneg %p301
      %p469 = pneg %p332
      %p470 = pneg %p329
      %s471 = smul.u32 4, %s28
      %p472 = scmp.lt.s32.totalorder %s27, 1
      %s473 = scalar_select %p472, %s27, 1
      %p474 = scmp.lt.s32.totalorder %s471, 7
      %s475 = scalar_select %p474, %s471, 7
      %s476 = smul.addr %s473, 8
      %s477 = sadd.s32 %s475, %s476
      %s478 = smul.addr %s477, 8
      %s479 = scalar_lea.vmem %s12, %s478
      %s480 = smul.u32 4, %s28
      %p481 = scmp.lt.s32.totalorder %s27, 1
      %s482 = scalar_select %p481, %s27, 1
      %p483 = scmp.lt.s32.totalorder %s480, 7
      %s484 = scalar_select %p483, %s480, 7
      %s485 = smul.addr %s482, 8
      %s486 = sadd.s32 %s484, %s485
      %s487 = smul.addr %s486, 4
      %s488 = scalar_lea.vmem %s0, %s487
      %s489 = smul.u32 4, %s28
      %p490 = scmp.lt.s32.totalorder %s27, 1
      %s491 = scalar_select %p490, %s27, 1
      %s492 = smul.addr %s491, 8
      %s493 = smul.addr %s492, 4
      %s494 = scalar_lea.vmem %s1, %s493
      %p495 = scmp.lt.s32.totalorder %s27, 1
      %s496 = scalar_select %p495, %s27, 1
      %s497 = smul.addr %s496, 8
      %s498 = sadd.s32 4, %s497
      %s499 = smul.addr %s498, 4
      %s500 = scalar_lea.vmem %s2, %s499
      %p501 = scmp.lt.s32.totalorder %s28, 1
      %s502 = scalar_select %p501, %s28, 1
      %s503 = smul.addr %s502, 8
      %s504 = smul.addr %s503, 4
      %s505 = scalar_lea.vmem %s3, %s504
      %s506 = smul.u32 4, %s28
      %p507 = scmp.lt.s32.totalorder %s27, 1
      %s508 = scalar_select %p507, %s27, 1
      %p509 = scmp.lt.s32.totalorder %s506, 7
      %s510 = scalar_select %p509, %s506, 7
      %s511 = smul.addr %s508, 8
      %s512 = sadd.s32 %s510, %s511
      %s513 = smul.addr %s512, 8
      %s514 = scalar_lea.vmem %s12, %s513
      %s515 = smul.u32 4, %s28
      %v517 = vld [vmem:[%s488] sm:$0xf]
      %v518 = vld [vmem:[%s488 + $0x4] sm:$0xf]
      %v519 = vld [vmem:[%s488 + $0x8] sm:$0xf]
      %v520 = vld [vmem:[%s488 + $0xc] sm:$0xf]
      %v521 = vld [vmem:[%s494] sm:$0xf]
      %v522 = vld [vmem:[%s494 + $0x4] sm:$0xf]
      %v523 = vld [vmem:[%s494 + $0x8] sm:$0xf]
      %v524 = vld [vmem:[%s494 + $0xc] sm:$0xf]
      %v525 = vld [vmem:[%s500] sm:$0xf]
      %v526 = vld [vmem:[%s500 + $0x4] sm:$0xf]
      %v527 = vld [vmem:[%s500 + $0x8] sm:$0xf]
      %v528 = vld [vmem:[%s500 + $0xc] sm:$0xf]
      %v533 = vunpack.c.l.b16 %v521
      %v534 = vunpack.c.l.b16 %v522
      %v535 = vunpack.c.l.b16 %v523
      %v536 = vunpack.c.l.b16 %v524
      %v537 = vpack.c.b16 %v534, %v533
      %v538 = vpack.c.b16 %v536, %v535
      %v543 = vunpack.c.l.b16 %v525
      %v544 = vunpack.c.l.b16 %v526
      %v545 = vunpack.c.l.b16 %v527
      %v546 = vunpack.c.l.b16 %v528
      %v547 = vpack.c.b16 %v544, %v543
      %v548 = vpack.c.b16 %v546, %v545
      %v549 = vld [vmem:[%s4] sm:$0xf]
      %v550 = vld [vmem:[%s4 + $0x4] sm:$0xf]
      %v551 = vld [vmem:[%s4 + $0x8] sm:$0xf]
      %v552 = vld [vmem:[%s4 + $0xc] sm:$0xf]
      %v553 = vld [vmem:[%s5] sm:$0x1]
      %v555 = vlaneseq
      %v556 = vshrl.u32 %v555, 7
      %v557 = vsub.s32 0, %v556
      %v558 = vrot.slane %v553, %v557
      %v564 = vunpack.c.l.b16 %v517
      %v565 = vunpack.c.l.b16 %v518
      %v566 = vunpack.c.l.b16 %v519
      %v567 = vunpack.c.l.b16 %v520
      %v568 = vpack.c.b16 %v565, %v564
      %v569 = vpack.c.b16 %v567, %v566
      %v574 = vunpack.c.l.b16 %v549
      %v575 = vunpack.c.l.b16 %v550
      %v576 = vunpack.c.l.b16 %v551
      %v577 = vunpack.c.l.b16 %v552
      %v578 = vpack.c.b16 %v575, %v574
      %v579 = vpack.c.b16 %v577, %v576
      %vm582 = vcmask 261120
      %v584 = vsel %vm582, %v568, 0
      %v587 = vsel %vm582, %v569, 0
      %589 = vmatprep.subr.bf16.mxu0 0
      %590 = vmatpush1.bf16.msra.mxu0 0
      %591 = vmatprep.subr.bf16.mxu0 0
      %592 = vmatpush1.bf16.msra.mxu0 0
      %593 = vmatprep.subr.bf16.mxu0 0
      %594 = vmatpush1.bf16.msra.mxu0 0
      %595 = vmatprep.subr.bf16.mxu0 0
      %596 = vmatpush1.bf16.msra.mxu0 0
      %597 = vmatprep.subr.bf16.mxu0 0
      %598 = vmatpush1.bf16.msra.mxu0 0
      %599 = vmatprep.subr.bf16.mxu0 0
      %600 = vmatpush1.bf16.msra.mxu0 0
      %601 = vmatprep.subr.bf16.mxu0 0
      %602 = vmatpush1.bf16.msra.mxu0 %v579
      %603 = vmatprep.subr.bf16.mxu0 0
      %604 = vmatpush1.bf16.msra.mxu0 %v578
      %605 = vmatprep.subr.bf16.mxu0 0
      %606 = vmatpush2.bf16.msra.mxu0 0
      %607 = vmatprep.subr.bf16.mxu0 0
      %608 = vmatpush2.bf16.msra.mxu0 0
      %609 = vmatprep.subr.bf16.mxu0 0
      %610 = vmatpush2.bf16.msra.mxu0 0
      %611 = vmatprep.subr.bf16.mxu0 0
      %612 = vmatpush2.bf16.msra.mxu0 0
      %613 = vmatprep.subr.bf16.mxu0 0
      %614 = vmatpush2.bf16.msra.mxu0 0
      %615 = vmatprep.subr.bf16.mxu0 0
      %616 = vmatpush2.bf16.msra.mxu0 0
      %617 = vmatprep.subr.bf16.mxu0 0
      %618 = vmatpush2.bf16.msra.mxu0 0
      %619 = vmatprep.subr.bf16.mxu0 0
      %620 = vmatpush2.bf16.msra.mxu0 0
      %621 = vmatprep.mubr.bf16.mxu0 0
      %622 = vmatmul.mubr.bf16.gmra.mxu0 %v584
      %v623 = vpop.f32.mrf.mxu0
      %v624 = vadd.f32 %v558, %v623
      %v625 = vpop.f32.mrf.mxu0
      %v626 = vpop.f32.mrf.mxu0
      %v627 = vadd.f32 %v558, %v626
      %v628 = vpop.f32.mrf.mxu0
      %629 = vmatprep.mubr.bf16.mxu0 0
      %630 = vmatmul.mubr.bf16.gmra.mxu0 %v587
      %v631 = vpop.f32.mrf.mxu0
      %v632 = vadd.f32 %v558, %v631
      %v633 = vpop.f32.mrf.mxu0
      %v634 = vpop.f32.mrf.mxu0
      %v635 = vadd.f32 %v558, %v634
      %v636 = vpop.f32.mrf.mxu0
      %637 = vdwg.mxu0
      %v638 = vpack.c.bf16 %v627, %v624
      %v639 = vpack.c.bf16 %v635, %v632
      %v640 = vld [vmem:[%s6] sm:$0xf]
      %v641 = vld [vmem:[%s6 + $0x4] sm:$0xf]
      %v642 = vld [vmem:[%s6 + $0x8] sm:$0xf]
      %v643 = vld [vmem:[%s6 + $0xc] sm:$0xf]
      %v644 = vld [vmem:[%s7] sm:$0x1]
      %v646 = vlaneseq
      %v647 = vshrl.u32 %v646, 7
      %v648 = vsub.s32 0, %v647
      %v649 = vrot.slane %v644, %v648
      %v655 = vunpack.c.l.b16 %v640
      %v656 = vunpack.c.l.b16 %v641
      %v657 = vunpack.c.l.b16 %v642
      %v658 = vunpack.c.l.b16 %v643
      %v659 = vpack.c.b16 %v656, %v655
      %v660 = vpack.c.b16 %v658, %v657
      %v664 = vsel %vm582, %v537, 0
      %v667 = vsel %vm582, %v538, 0
      %v670 = vsel %vm582, %v547, 0
      %v673 = vsel %vm582, %v548, 0
      %675 = vmatprep.subr.bf16.mxu0 0
      %676 = vmatpush1.bf16.msra.mxu0 0
      %677 = vmatprep.subr.bf16.mxu0 0
      %678 = vmatpush1.bf16.msra.mxu0 0
      %679 = vmatprep.subr.bf16.mxu0 0
      %680 = vmatpush1.bf16.msra.mxu0 0
      %681 = vmatprep.subr.bf16.mxu0 0
      %682 = vmatpush1.bf16.msra.mxu0 0
      %683 = vmatprep.subr.bf16.mxu0 0
      %684 = vmatpush1.bf16.msra.mxu0 0
      %685 = vmatprep.subr.bf16.mxu0 0
      %686 = vmatpush1.bf16.msra.mxu0 0
      %687 = vmatprep.subr.bf16.mxu0 0
      %688 = vmatpush1.bf16.msra.mxu0 %v660
      %689 = vmatprep.subr.bf16.mxu0 0
      %690 = vmatpush1.bf16.msra.mxu0 %v659
      %691 = vmatprep.subr.bf16.mxu0 0
      %692 = vmatpush2.bf16.msra.mxu0 0
      %693 = vmatprep.subr.bf16.mxu0 0
      %694 = vmatpush2.bf16.msra.mxu0 0
      %695 = vmatprep.subr.bf16.mxu0 0
      %696 = vmatpush2.bf16.msra.mxu0 0
      %697 = vmatprep.subr.bf16.mxu0 0
      %698 = vmatpush2.bf16.msra.mxu0 0
      %699 = vmatprep.subr.bf16.mxu0 0
      %700 = vmatpush2.bf16.msra.mxu0 0
      %701 = vmatprep.subr.bf16.mxu0 0
      %702 = vmatpush2.bf16.msra.mxu0 0
      %703 = vmatprep.subr.bf16.mxu0 0
      %704 = vmatpush2.bf16.msra.mxu0 0
      %705 = vmatprep.subr.bf16.mxu0 0
      %706 = vmatpush2.bf16.msra.mxu0 0
      %707 = vmatprep.mubr.bf16.mxu0 0
      %708 = vmatmul.mubr.bf16.gmra.mxu0 %v664
      %v709 = vpop.f32.mrf.mxu0
      %v710 = vadd.f32 %v649, %v709
      %v711 = vpop.f32.mrf.mxu0
      %v712 = vpop.f32.mrf.mxu0
      %v713 = vadd.f32 %v649, %v712
      %v714 = vpop.f32.mrf.mxu0
      %715 = vmatprep.mubr.bf16.mxu0 0
      %716 = vmatmul.mubr.bf16.gmra.mxu0 %v667
      %v717 = vpop.f32.mrf.mxu0
      %v718 = vadd.f32 %v649, %v717
      %v719 = vpop.f32.mrf.mxu0
      %v720 = vpop.f32.mrf.mxu0
      %v721 = vadd.f32 %v649, %v720
      %v722 = vpop.f32.mrf.mxu0
      %723 = vmatprep.mubr.bf16.mxu0 0
      %724 = vmatmul.mubr.bf16.gmra.mxu0 %v670
      %v725 = vpop.f32.mrf.mxu0
      %v726 = vadd.f32 %v649, %v725
      %v727 = vpop.f32.mrf.mxu0
      %v728 = vpop.f32.mrf.mxu0
      %v729 = vadd.f32 %v649, %v728
      %v730 = vpop.f32.mrf.mxu0
      %731 = vmatprep.mubr.bf16.mxu0 0
      %732 = vmatmul.mubr.bf16.gmra.mxu0 %v673
      %v733 = vpop.f32.mrf.mxu0
      %v734 = vadd.f32 %v649, %v733
      %v735 = vpop.f32.mrf.mxu0
      %v736 = vpop.f32.mrf.mxu0
      %v737 = vadd.f32 %v649, %v736
      %v738 = vpop.f32.mrf.mxu0
      %739 = vdwg.mxu0
      %v740 = vpack.c.bf16 %v713, %v710
      %v741 = vpack.c.bf16 %v721, %v718
      %v742 = vpack.c.bf16 %v729, %v726
      %v743 = vpack.c.bf16 %v737, %v734
      %v744 = vld [vmem:[%s8] sm:$0xf]
      %v745 = vld [vmem:[%s8 + $0x4] sm:$0xf]
      %v746 = vld [vmem:[%s8 + $0x8] sm:$0xf]
      %v747 = vld [vmem:[%s8 + $0xc] sm:$0xf]
      %v748 = vld [vmem:[%s9] sm:$0x1]
      %v750 = vlaneseq
      %v751 = vshrl.u32 %v750, 7
      %v752 = vsub.s32 0, %v751
      %v753 = vrot.slane %v748, %v752
      %v759 = vunpack.c.l.b16 %v744
      %v760 = vunpack.c.l.b16 %v745
      %v761 = vunpack.c.l.b16 %v746
      %v762 = vunpack.c.l.b16 %v747
      %v763 = vpack.c.b16 %v760, %v759
      %v764 = vpack.c.b16 %v762, %v761
      %767 = vmatprep.subr.bf16.mxu0 0
      %768 = vmatpush1.bf16.msra.mxu0 0
      %769 = vmatprep.subr.bf16.mxu0 0
      %770 = vmatpush1.bf16.msra.mxu0 0
      %771 = vmatprep.subr.bf16.mxu0 0
      %772 = vmatpush1.bf16.msra.mxu0 0
      %773 = vmatprep.subr.bf16.mxu0 0
      %774 = vmatpush1.bf16.msra.mxu0 0
      %775 = vmatprep.subr.bf16.mxu0 0
      %776 = vmatpush1.bf16.msra.mxu0 0
      %777 = vmatprep.subr.bf16.mxu0 0
      %778 = vmatpush1.bf16.msra.mxu0 0
      %779 = vmatprep.subr.bf16.mxu0 0
      %780 = vmatpush1.bf16.msra.mxu0 %v764
      %781 = vmatprep.subr.bf16.mxu0 0
      %782 = vmatpush1.bf16.msra.mxu0 %v763
      %783 = vmatprep.subr.bf16.mxu0 0
      %784 = vmatpush2.bf16.msra.mxu0 0
      %785 = vmatprep.subr.bf16.mxu0 0
      %786 = vmatpush2.bf16.msra.mxu0 0
      %787 = vmatprep.subr.bf16.mxu0 0
      %788 = vmatpush2.bf16.msra.mxu0 0
      %789 = vmatprep.subr.bf16.mxu0 0
      %790 = vmatpush2.bf16.msra.mxu0 0
      %791 = vmatprep.subr.bf16.mxu0 0
      %792 = vmatpush2.bf16.msra.mxu0 0
      %793 = vmatprep.subr.bf16.mxu0 0
      %794 = vmatpush2.bf16.msra.mxu0 0
      %795 = vmatprep.subr.bf16.mxu0 0
      %796 = vmatpush2.bf16.msra.mxu0 0
      %797 = vmatprep.subr.bf16.mxu0 0
      %798 = vmatpush2.bf16.msra.mxu0 0
      %799 = vmatprep.mubr.bf16.mxu0 0
      %800 = vmatmul.mubr.bf16.gmra.mxu0 %v664
      %v801 = vpop.f32.mrf.mxu0
      %v802 = vadd.f32 %v753, %v801
      %v803 = vpop.f32.mrf.mxu0
      %v804 = vpop.f32.mrf.mxu0
      %v805 = vadd.f32 %v753, %v804
      %v806 = vpop.f32.mrf.mxu0
      %807 = vmatprep.mubr.bf16.mxu0 0
      %808 = vmatmul.mubr.bf16.gmra.mxu0 %v667
      %v809 = vpop.f32.mrf.mxu0
      %v810 = vadd.f32 %v753, %v809
      %v811 = vpop.f32.mrf.mxu0
      %v812 = vpop.f32.mrf.mxu0
      %v813 = vadd.f32 %v753, %v812
      %v814 = vpop.f32.mrf.mxu0
      %815 = vmatprep.mubr.bf16.mxu0 0
      %816 = vmatmul.mubr.bf16.gmra.mxu0 %v670
      %v817 = vpop.f32.mrf.mxu0
      %v818 = vadd.f32 %v753, %v817
      %v819 = vpop.f32.mrf.mxu0
      %v820 = vpop.f32.mrf.mxu0
      %v821 = vadd.f32 %v753, %v820
      %v822 = vpop.f32.mrf.mxu0
      %823 = vmatprep.mubr.bf16.mxu0 0
      %824 = vmatmul.mubr.bf16.gmra.mxu0 %v673
      %v825 = vpop.f32.mrf.mxu0
      %v826 = vadd.f32 %v753, %v825
      %v827 = vpop.f32.mrf.mxu0
      %v828 = vpop.f32.mrf.mxu0
      %v829 = vadd.f32 %v753, %v828
      %v830 = vpop.f32.mrf.mxu0
      %831 = vdwg.mxu0
      %v832 = vpack.c.bf16 %v805, %v802
      %v833 = vpack.c.bf16 %v813, %v810
      %v834 = vpack.c.bf16 %v821, %v818
      %v835 = vpack.c.bf16 %v829, %v826
      %v836 = vld [vmem:[%s505] sm:$0xf]
      %v837 = vld [vmem:[%s505 + $0x4] sm:$0xf]
      %v838 = vld [vmem:[%s505 + $0x8] sm:$0xf]
      %v839 = vld [vmem:[%s505 + $0xc] sm:$0xf]
      %v840 = vunpack.c.l.bf16 %v836
      %v841 = vunpack.c.l.bf16 %v837
      %v842 = vunpack.c.l.bf16 %v838
      %v843 = vunpack.c.l.bf16 %v839
      %vm844 = vcmask 130048
      %v846 = vsel %vm844, %v638, 0
      %v849 = vsel %vm844, %v639, 0
      %v852 = vsel %vm844, %v740, 0
      %v855 = vsel %vm844, %v741, 0
      %v858 = vsel %vm844, %v742, 0
      %v861 = vsel %vm844, %v743, 0
      %863 = vmatprep.subr.bf16.mxu0 0
      %864 = vmatpush1.bf16.xpose.msra.mxu0 0
      %865 = vmatprep.subr.bf16.mxu0 0
      %866 = vmatpush1.bf16.xpose.msra.mxu0 0
      %867 = vmatprep.subr.bf16.mxu0 0
      %868 = vmatpush1.bf16.xpose.msra.mxu0 0
      %869 = vmatprep.subr.bf16.mxu0 0
      %870 = vmatpush1.bf16.xpose.msra.mxu0 0
      %871 = vmatprep.subr.bf16.mxu0 0
      %872 = vmatpush1.bf16.xpose.msra.mxu0 %v861
      %873 = vmatprep.subr.bf16.mxu0 0
      %874 = vmatpush1.bf16.xpose.msra.mxu0 %v858
      %875 = vmatprep.subr.bf16.mxu0 0
      %876 = vmatpush1.bf16.xpose.msra.mxu0 %v855
      %877 = vmatprep.subr.bf16.mxu0 0
      %878 = vmatpush1.bf16.xpose.msra.mxu0 %v852
      %879 = vmatprep.subr.bf16.mxu0 0
      %880 = vmatpush2.bf16.xpose.msra.mxu0 0
      %881 = vmatprep.subr.bf16.mxu0 0
      %882 = vmatpush2.bf16.xpose.msra.mxu0 0
      %883 = vmatprep.subr.bf16.mxu0 0
      %884 = vmatpush2.bf16.xpose.msra.mxu0 0
      %885 = vmatprep.subr.bf16.mxu0 0
      %886 = vmatpush2.bf16.xpose.msra.mxu0 0
      %887 = vmatprep.subr.bf16.mxu0 0
      %888 = vmatpush2.bf16.xpose.msra.mxu0 0
      %889 = vmatprep.subr.bf16.mxu0 0
      %890 = vmatpush2.bf16.xpose.msra.mxu0 0
      %891 = vmatprep.subr.bf16.mxu0 0
      %892 = vmatpush2.bf16.xpose.msra.mxu0 0
      %893 = vmatprep.subr.bf16.mxu0 0
      %894 = vmatpush2.bf16.xpose.msra.mxu0 0
      %895 = vmatprep.mubr.bf16.mxu0 0
      %896 = vmatmul.mubr.bf16.gmra.mxu0 %v846
      %v897 = vpop.f32.mrf.mxu0
      %v898 = vadd.f32 %v840, %v897
      %v899 = vpop.f32.mrf.mxu0
      %v900 = vpop.f32.mrf.mxu0
      %v901 = vadd.f32 %v841, %v900
      %v902 = vpop.f32.mrf.mxu0
      %903 = vmatprep.mubr.bf16.mxu0 0
      %904 = vmatmul.mubr.bf16.gmra.mxu0 %v849
      %v905 = vpop.f32.mrf.mxu0
      %v906 = vadd.f32 %v842, %v905
      %v907 = vpop.f32.mrf.mxu0
      %v908 = vpop.f32.mrf.mxu0
      %v909 = vadd.f32 %v843, %v908
      %v910 = vpop.f32.mrf.mxu0
      %911 = vdwg.mxu0
      %vm912 = vcmask 523264
      %v913 = vsel %vm912, %v898, -inf
      %914 = vmax.xlane.f32.xlu0 %v913
      %v915 = vpop.xlane.xlu0 %914
      %v916 = vsel %vm912, %v901, -inf
      %917 = vmax.xlane.f32.xlu0 %v916
      %v918 = vpop.xlane.xlu0 %917
      %v919 = vsel %vm912, %v906, -inf
      %920 = vmax.xlane.f32.xlu0 %v919
      %v921 = vpop.xlane.xlu0 %920
      %v922 = vsel %vm912, %v909, -inf
      %923 = vmax.xlane.f32.xlu0 %v922
      %v924 = vpop.xlane.xlu0 %923
      %v925 = vsub.f32 %v898, %v915
      %v926 = vsub.f32 %v901, %v918
      %v927 = vsub.f32 %v906, %v921
      %v928 = vsub.f32 %v909, %v924
      %v929 = vmul.f32 %v925, 1.442695
      %v930 = vpow.pop %v929
      %v931 = vmul.f32 %v926, 1.442695
      %v932 = vpow.pop %v931
      %v933 = vmul.f32 %v927, 1.442695
      %v934 = vpow.pop %v933
      %v935 = vmul.f32 %v928, 1.442695
      %v936 = vpow.pop %v935
      %v937 = vsel %vm912, %v930, 0.0
      %938 = vadd.xlane.f32.xlu0 %v937
      %v939 = vpop.xlane.xlu0 %938
      %v940 = vsel %vm912, %v932, 0.0
      %941 = vadd.xlane.f32.xlu0 %v940
      %v942 = vpop.xlane.xlu0 %941
      %v943 = vsel %vm912, %v934, 0.0
      %944 = vadd.xlane.f32.xlu0 %v943
      %v945 = vpop.xlane.xlu0 %944
      %v946 = vsel %vm912, %v936, 0.0
      %947 = vadd.xlane.f32.xlu0 %v946
      %v948 = vpop.xlane.xlu0 %947
      %v949 = vrcp.pop %v939
      %v950 = vrcp.pop %v942
      %v951 = vrcp.pop %v945
      %v952 = vrcp.pop %v948
      %v953 = vmul.f32 %v930, %v949
      %v954 = vmul.f32 %v932, %v950
      %v955 = vmul.f32 %v934, %v951
      %v956 = vmul.f32 %v936, %v952
      %v957 = vpack.c.bf16 %v954, %v953
      %v958 = vpack.c.bf16 %v956, %v955
      %v960 = vsel %vm912, %v957, 0
      %v963 = vsel %vm912, %v958, 0
      %965 = vmatprep.subr.bf16.mxu0 0
      %966 = vmatpush1.bf16.msra.mxu0 0
      %967 = vmatprep.subr.bf16.mxu0 0
      %968 = vmatpush1.bf16.msra.mxu0 0
      %969 = vmatprep.subr.bf16.mxu0 0
      %970 = vmatpush1.bf16.msra.mxu0 0
      %971 = vmatprep.subr.bf16.mxu0 0
      %972 = vmatpush1.bf16.msra.mxu0 0
      %973 = vmatprep.subr.bf16.mxu0 0
      %974 = vmatpush1.bf16.msra.mxu0 %v835
      %975 = vmatprep.subr.bf16.mxu0 0
      %976 = vmatpush1.bf16.msra.mxu0 %v834
      %977 = vmatprep.subr.bf16.mxu0 0
      %978 = vmatpush1.bf16.msra.mxu0 %v833
      %979 = vmatprep.subr.bf16.mxu0 0
      %980 = vmatpush1.bf16.msra.mxu0 %v832
      %981 = vmatprep.subr.bf16.mxu0 0
      %982 = vmatpush2.bf16.msra.mxu0 0
      %983 = vmatprep.subr.bf16.mxu0 0
      %984 = vmatpush2.bf16.msra.mxu0 0
      %985 = vmatprep.subr.bf16.mxu0 0
      %986 = vmatpush2.bf16.msra.mxu0 0
      %987 = vmatprep.subr.bf16.mxu0 0
      %988 = vmatpush2.bf16.msra.mxu0 0
      %989 = vmatprep.subr.bf16.mxu0 0
      %990 = vmatpush2.bf16.msra.mxu0 0
      %991 = vmatprep.subr.bf16.mxu0 0
      %992 = vmatpush2.bf16.msra.mxu0 0
      %993 = vmatprep.subr.bf16.mxu0 0
      %994 = vmatpush2.bf16.msra.mxu0 0
      %995 = vmatprep.subr.bf16.mxu0 0
      %996 = vmatpush2.bf16.msra.mxu0 0
      %997 = vmatprep.mubr.bf16.mxu0 0
      %998 = vmatmul.mubr.bf16.gmra.mxu0 %v960
      %v999 = vpop.f32.mrf.mxu0
      %v1000 = vadd.f32 0.0, %v999
      %v1001 = vpop.f32.mrf.mxu0
      %v1002 = vpop.f32.mrf.mxu0
      %v1003 = vadd.f32 0.0, %v1002
      %v1004 = vpop.f32.mrf.mxu0
      %1005 = vmatprep.mubr.bf16.mxu0 0
      %1006 = vmatmul.mubr.bf16.gmra.mxu0 %v963
      %v1007 = vpop.f32.mrf.mxu0
      %v1008 = vadd.f32 0.0, %v1007
      %v1009 = vpop.f32.mrf.mxu0
      %v1010 = vpop.f32.mrf.mxu0
      %v1011 = vadd.f32 0.0, %v1010
      %v1012 = vpop.f32.mrf.mxu0
      %1013 = vdwg.mxu0
      %v1014 = vpack.c.bf16 %v1003, %v1000
      %v1015 = vpack.c.bf16 %v1011, %v1008
      %v1016 = vld [vmem:[%s10] sm:$0xf]
      %v1017 = vld [vmem:[%s10 + $0x4] sm:$0xf]
      %s1018 = scalar_lea.vmem %s4, 16
      %v1019 = vld [vmem:[%s1018] sm:$0xf]
      %v1020 = vld [vmem:[%s1018 + $0x4] sm:$0xf]
      %v1021 = vld [vmem:[%s1018 + $0x8] sm:$0xf]
      %v1022 = vld [vmem:[%s1018 + $0xc] sm:$0xf]
      %s1023 = scalar_lea.vmem %s5, 1
      %v1024 = vld [vmem:[%s1023] sm:$0x1]
      %v1026 = vlaneseq
      %v1027 = vshrl.u32 %v1026, 7
      %v1028 = vsub.s32 0, %v1027
      %v1029 = vrot.slane %v1024, %v1028
      %v1035 = vunpack.c.l.b16 %v1019
      %v1036 = vunpack.c.l.b16 %v1020
      %v1037 = vunpack.c.l.b16 %v1021
      %v1038 = vunpack.c.l.b16 %v1022
      %v1039 = vpack.c.b16 %v1036, %v1035
      %v1040 = vpack.c.b16 %v1038, %v1037
      %1043 = vmatprep.subr.bf16.mxu0 0
      %1044 = vmatpush1.bf16.msra.mxu0 0
      %1045 = vmatprep.subr.bf16.mxu0 0
      %1046 = vmatpush1.bf16.msra.mxu0 0
      %1047 = vmatprep.subr.bf16.mxu0 0
      %1048 = vmatpush1.bf16.msra.mxu0 0
      %1049 = vmatprep.subr.bf16.mxu0 0
      %1050 = vmatpush1.bf16.msra.mxu0 0
      %1051 = vmatprep.subr.bf16.mxu0 0
      %1052 = vmatpush1.bf16.msra.mxu0 0
      %1053 = vmatprep.subr.bf16.mxu0 0
      %1054 = vmatpush1.bf16.msra.mxu0 0
      %1055 = vmatprep.subr.bf16.mxu0 0
      %1056 = vmatpush1.bf16.msra.mxu0 %v1040
      %1057 = vmatprep.subr.bf16.mxu0 0
      %1058 = vmatpush1.bf16.msra.mxu0 %v1039
      %1059 = vmatprep.subr.bf16.mxu0 0
      %1060 = vmatpush2.bf16.msra.mxu0 0
      %1061 = vmatprep.subr.bf16.mxu0 0
      %1062 = vmatpush2.bf16.msra.mxu0 0
      %1063 = vmatprep.subr.bf16.mxu0 0
      %1064 = vmatpush2.bf16.msra.mxu0 0
      %1065 = vmatprep.subr.bf16.mxu0 0
      %1066 = vmatpush2.bf16.msra.mxu0 0
      %1067 = vmatprep.subr.bf16.mxu0 0
      %1068 = vmatpush2.bf16.msra.mxu0 0
      %1069 = vmatprep.subr.bf16.mxu0 0
      %1070 = vmatpush2.bf16.msra.mxu0 0
      %1071 = vmatprep.subr.bf16.mxu0 0
      %1072 = vmatpush2.bf16.msra.mxu0 0
      %1073 = vmatprep.subr.bf16.mxu0 0
      %1074 = vmatpush2.bf16.msra.mxu0 0
      %1075 = vmatprep.mubr.bf16.mxu0 0
      %1076 = vmatmul.mubr.bf16.gmra.mxu0 %v584
      %v1077 = vpop.f32.mrf.mxu0
      %v1078 = vadd.f32 %v1029, %v1077
      %v1079 = vpop.f32.mrf.mxu0
      %v1080 = vpop.f32.mrf.mxu0
      %v1081 = vadd.f32 %v1029, %v1080
      %v1082 = vpop.f32.mrf.mxu0
      %1083 = vmatprep.mubr.bf16.mxu0 0
      %1084 = vmatmul.mubr.bf16.gmra.mxu0 %v587
      %v1085 = vpop.f32.mrf.mxu0
      %v1086 = vadd.f32 %v1029, %v1085
      %v1087 = vpop.f32.mrf.mxu0
      %v1088 = vpop.f32.mrf.mxu0
      %v1089 = vadd.f32 %v1029, %v1088
      %v1090 = vpop.f32.mrf.mxu0
      %1091 = vdwg.mxu0
      %v1092 = vpack.c.bf16 %v1081, %v1078
      %v1093 = vpack.c.bf16 %v1089, %v1086
      %s1094 = scalar_lea.vmem %s6, 16
      %v1095 = vld [vmem:[%s1094] sm:$0xf]
      %v1096 = vld [vmem:[%s1094 + $0x4] sm:$0xf]
      %v1097 = vld [vmem:[%s1094 + $0x8] sm:$0xf]
      %v1098 = vld [vmem:[%s1094 + $0xc] sm:$0xf]
      %s1099 = scalar_lea.vmem %s7, 1
      %v1100 = vld [vmem:[%s1099] sm:$0x1]
      %v1102 = vlaneseq
      %v1103 = vshrl.u32 %v1102, 7
      %v1104 = vsub.s32 0, %v1103
      %v1105 = vrot.slane %v1100, %v1104
      %v1111 = vunpack.c.l.b16 %v1095
      %v1112 = vunpack.c.l.b16 %v1096
      %v1113 = vunpack.c.l.b16 %v1097
      %v1114 = vunpack.c.l.b16 %v1098
      %v1115 = vpack.c.b16 %v1112, %v1111
      %v1116 = vpack.c.b16 %v1114, %v1113
      %1119 = vmatprep.subr.bf16.mxu0 0
      %1120 = vmatpush1.bf16.msra.mxu0 0
      %1121 = vmatprep.subr.bf16.mxu0 0
      %1122 = vmatpush1.bf16.msra.mxu0 0
      %1123 = vmatprep.subr.bf16.mxu0 0
      %1124 = vmatpush1.bf16.msra.mxu0 0
      %1125 = vmatprep.subr.bf16.mxu0 0
      %1126 = vmatpush1.bf16.msra.mxu0 0
      %1127 = vmatprep.subr.bf16.mxu0 0
      %1128 = vmatpush1.bf16.msra.mxu0 0
      %1129 = vmatprep.subr.bf16.mxu0 0
      %1130 = vmatpush1.bf16.msra.mxu0 0
      %1131 = vmatprep.subr.bf16.mxu0 0
      %1132 = vmatpush1.bf16.msra.mxu0 %v1116
      %1133 = vmatprep.subr.bf16.mxu0 0
      %1134 = vmatpush1.bf16.msra.mxu0 %v1115
      %1135 = vmatprep.subr.bf16.mxu0 0
      %1136 = vmatpush2.bf16.msra.mxu0 0
      %1137 = vmatprep.subr.bf16.mxu0 0
      %1138 = vmatpush2.bf16.msra.mxu0 0
      %1139 = vmatprep.subr.bf16.mxu0 0
      %1140 = vmatpush2.bf16.msra.mxu0 0
      %1141 = vmatprep.subr.bf16.mxu0 0
      %1142 = vmatpush2.bf16.msra.mxu0 0
      %1143 = vmatprep.subr.bf16.mxu0 0
      %1144 = vmatpush2.bf16.msra.mxu0 0
      %1145 = vmatprep.subr.bf16.mxu0 0
      %1146 = vmatpush2.bf16.msra.mxu0 0
      %1147 = vmatprep.subr.bf16.mxu0 0
      %1148 = vmatpush2.bf16.msra.mxu0 0
      %1149 = vmatprep.subr.bf16.mxu0 0
      %1150 = vmatpush2.bf16.msra.mxu0 0
      %1151 = vmatprep.mubr.bf16.mxu0 0
      %1152 = vmatmul.mubr.bf16.gmra.mxu0 %v664
      %v1153 = vpop.f32.mrf.mxu0
      %v1154 = vadd.f32 %v1105, %v1153
      %v1155 = vpop.f32.mrf.mxu0
      %v1156 = vpop.f32.mrf.mxu0
      %v1157 = vadd.f32 %v1105, %v1156
      %v1158 = vpop.f32.mrf.mxu0
      %1159 = vmatprep.mubr.bf16.mxu0 0
      %1160 = vmatmul.mubr.bf16.gmra.mxu0 %v667
      %v1161 = vpop.f32.mrf.mxu0
      %v1162 = vadd.f32 %v1105, %v1161
      %v1163 = vpop.f32.mrf.mxu0
      %v1164 = vpop.f32.mrf.mxu0
      %v1165 = vadd.f32 %v1105, %v1164
      %v1166 = vpop.f32.mrf.mxu0
      %1167 = vmatprep.mubr.bf16.mxu0 0
      %1168 = vmatmul.mubr.bf16.gmra.mxu0 %v670
      %v1169 = vpop.f32.mrf.mxu0
      %v1170 = vadd.f32 %v1105, %v1169
      %v1171 = vpop.f32.mrf.mxu0
      %v1172 = vpop.f32.mrf.mxu0
      %v1173 = vadd.f32 %v1105, %v1172
      %v1174 = vpop.f32.mrf.mxu0
      %1175 = vmatprep.mubr.bf16.mxu0 0
      %1176 = vmatmul.mubr.bf16.gmra.mxu0 %v673
      %v1177 = vpop.f32.mrf.mxu0
      %v1178 = vadd.f32 %v1105, %v1177
      %v1179 = vpop.f32.mrf.mxu0
      %v1180 = vpop.f32.mrf.mxu0
      %v1181 = vadd.f32 %v1105, %v1180
      %v1182 = vpop.f32.mrf.mxu0
      %1183 = vdwg.mxu0
      %v1184 = vpack.c.bf16 %v1157, %v1154
      %v1185 = vpack.c.bf16 %v1165, %v1162
      %v1186 = vpack.c.bf16 %v1173, %v1170
      %v1187 = vpack.c.bf16 %v1181, %v1178
      %s1188 = scalar_lea.vmem %s8, 16
      %v1189 = vld [vmem:[%s1188] sm:$0xf]
      %v1190 = vld [vmem:[%s1188 + $0x4] sm:$0xf]
      %v1191 = vld [vmem:[%s1188 + $0x8] sm:$0xf]
      %v1192 = vld [vmem:[%s1188 + $0xc] sm:$0xf]
      %s1193 = scalar_lea.vmem %s9, 1
      %v1194 = vld [vmem:[%s1193] sm:$0x1]
      %v1196 = vlaneseq
      %v1197 = vshrl.u32 %v1196, 7
      %v1198 = vsub.s32 0, %v1197
      %v1199 = vrot.slane %v1194, %v1198
      %v1205 = vunpack.c.l.b16 %v1189
      %v1206 = vunpack.c.l.b16 %v1190
      %v1207 = vunpack.c.l.b16 %v1191
      %v1208 = vunpack.c.l.b16 %v1192
      %v1209 = vpack.c.b16 %v1206, %v1205
      %v1210 = vpack.c.b16 %v1208, %v1207
      %1213 = vmatprep.subr.bf16.mxu0 0
      %1214 = vmatpush1.bf16.msra.mxu0 0
      %1215 = vmatprep.subr.bf16.mxu0 0
      %1216 = vmatpush1.bf16.msra.mxu0 0
      %1217 = vmatprep.subr.bf16.mxu0 0
      %1218 = vmatpush1.bf16.msra.mxu0 0
      %1219 = vmatprep.subr.bf16.mxu0 0
      %1220 = vmatpush1.bf16.msra.mxu0 0
      %1221 = vmatprep.subr.bf16.mxu0 0
      %1222 = vmatpush1.bf16.msra.mxu0 0
      %1223 = vmatprep.subr.bf16.mxu0 0
      %1224 = vmatpush1.bf16.msra.mxu0 0
      %1225 = vmatprep.subr.bf16.mxu0 0
      %1226 = vmatpush1.bf16.msra.mxu0 %v1210
      %1227 = vmatprep.subr.bf16.mxu0 0
      %1228 = vmatpush1.bf16.msra.mxu0 %v1209
      %1229 = vmatprep.subr.bf16.mxu0 0
      %1230 = vmatpush2.bf16.msra.mxu0 0
      %1231 = vmatprep.subr.bf16.mxu0 0
      %1232 = vmatpush2.bf16.msra.mxu0 0
      %1233 = vmatprep.subr.bf16.mxu0 0
      %1234 = vmatpush2.bf16.msra.mxu0 0
      %1235 = vmatprep.subr.bf16.mxu0 0
      %1236 = vmatpush2.bf16.msra.mxu0 0
      %1237 = vmatprep.subr.bf16.mxu0 0
      %1238 = vmatpush2.bf16.msra.mxu0 0
      %1239 = vmatprep.subr.bf16.mxu0 0
      %1240 = vmatpush2.bf16.msra.mxu0 0
      %1241 = vmatprep.subr.bf16.mxu0 0
      %1242 = vmatpush2.bf16.msra.mxu0 0
      %1243 = vmatprep.subr.bf16.mxu0 0
      %1244 = vmatpush2.bf16.msra.mxu0 0
      %1245 = vmatprep.mubr.bf16.mxu0 0
      %1246 = vmatmul.mubr.bf16.gmra.mxu0 %v664
      %v1247 = vpop.f32.mrf.mxu0
      %v1248 = vadd.f32 %v1199, %v1247
      %v1249 = vpop.f32.mrf.mxu0
      %v1250 = vpop.f32.mrf.mxu0
      %v1251 = vadd.f32 %v1199, %v1250
      %v1252 = vpop.f32.mrf.mxu0
      %1253 = vmatprep.mubr.bf16.mxu0 0
      %1254 = vmatmul.mubr.bf16.gmra.mxu0 %v667
      %v1255 = vpop.f32.mrf.mxu0
      %v1256 = vadd.f32 %v1199, %v1255
      %v1257 = vpop.f32.mrf.mxu0
      %v1258 = vpop.f32.mrf.mxu0
      %v1259 = vadd.f32 %v1199, %v1258
      %v1260 = vpop.f32.mrf.mxu0
      %1261 = vmatprep.mubr.bf16.mxu0 0
      %1262 = vmatmul.mubr.bf16.gmra.mxu0 %v670
      %v1263 = vpop.f32.mrf.mxu0
      %v1264 = vadd.f32 %v1199, %v1263
      %v1265 = vpop.f32.mrf.mxu0
      %v1266 = vpop.f32.mrf.mxu0
      %v1267 = vadd.f32 %v1199, %v1266
      %v1268 = vpop.f32.mrf.mxu0
      %1269 = vmatprep.mubr.bf16.mxu0 0
      %1270 = vmatmul.mubr.bf16.gmra.mxu0 %v673
      %v1271 = vpop.f32.mrf.mxu0
      %v1272 = vadd.f32 %v1199, %v1271
      %v1273 = vpop.f32.mrf.mxu0
      %v1274 = vpop.f32.mrf.mxu0
      %v1275 = vadd.f32 %v1199, %v1274
      %v1276 = vpop.f32.mrf.mxu0
      %1277 = vdwg.mxu0
      %v1278 = vpack.c.bf16 %v1251, %v1248
      %v1279 = vpack.c.bf16 %v1259, %v1256
      %v1280 = vpack.c.bf16 %v1267, %v1264
      %v1281 = vpack.c.bf16 %v1275, %v1272
      %s1282 = scalar_lea.vmem %s505, 16
      %v1283 = vld [vmem:[%s1282] sm:$0xf]
      %v1284 = vld [vmem:[%s1282 + $0x4] sm:$0xf]
      %v1285 = vld [vmem:[%s1282 + $0x8] sm:$0xf]
      %v1286 = vld [vmem:[%s1282 + $0xc] sm:$0xf]
      %v1287 = vunpack.c.l.bf16 %v1283
      %v1288 = vunpack.c.l.bf16 %v1284
      %v1289 = vunpack.c.l.bf16 %v1285
      %v1290 = vunpack.c.l.bf16 %v1286
      %v1292 = vsel %vm844, %v1092, 0
      %v1295 = vsel %vm844, %v1093, 0
      %v1298 = vsel %vm844, %v1184, 0
      %v1301 = vsel %vm844, %v1185, 0
      %v1304 = vsel %vm844, %v1186, 0
      %v1307 = vsel %vm844, %v1187, 0
      %1309 = vmatprep.subr.bf16.mxu0 0
      %1310 = vmatpush1.bf16.xpose.msra.mxu0 0
      %1311 = vmatprep.subr.bf16.mxu0 0
      %1312 = vmatpush1.bf16.xpose.msra.mxu0 0
      %1313 = vmatprep.subr.bf16.mxu0 0
      %1314 = vmatpush1.bf16.xpose.msra.mxu0 0
      %1315 = vmatprep.subr.bf16.mxu0 0
      %1316 = vmatpush1.bf16.xpose.msra.mxu0 0
      %1317 = vmatprep.subr.bf16.mxu0 0
      %1318 = vmatpush1.bf16.xpose.msra.mxu0 %v1307
      %1319 = vmatprep.subr.bf16.mxu0 0
      %1320 = vmatpush1.bf16.xpose.msra.mxu0 %v1304
      %1321 = vmatprep.subr.bf16.mxu0 0
      %1322 = vmatpush1.bf16.xpose.msra.mxu0 %v1301
      %1323 = vmatprep.subr.bf16.mxu0 0
      %1324 = vmatpush1.bf16.xpose.msra.mxu0 %v1298
      %1325 = vmatprep.subr.bf16.mxu0 0
      %1326 = vmatpush2.bf16.xpose.msra.mxu0 0
      %1327 = vmatprep.subr.bf16.mxu0 0
      %1328 = vmatpush2.bf16.xpose.msra.mxu0 0
      %1329 = vmatprep.subr.bf16.mxu0 0
      %1330 = vmatpush2.bf16.xpose.msra.mxu0 0
      %1331 = vmatprep.subr.bf16.mxu0 0
      %1332 = vmatpush2.bf16.xpose.msra.mxu0 0
      %1333 = vmatprep.subr.bf16.mxu0 0
      %1334 = vmatpush2.bf16.xpose.msra.mxu0 0
      %1335 = vmatprep.subr.bf16.mxu0 0
      %1336 = vmatpush2.bf16.xpose.msra.mxu0 0
      %1337 = vmatprep.subr.bf16.mxu0 0
      %1338 = vmatpush2.bf16.xpose.msra.mxu0 0
      %1339 = vmatprep.subr.bf16.mxu0 0
      %1340 = vmatpush2.bf16.xpose.msra.mxu0 0
      %1341 = vmatprep.mubr.bf16.mxu0 0
      %1342 = vmatmul.mubr.bf16.gmra.mxu0 %v1292
      %v1343 = vpop.f32.mrf.mxu0
      %v1344 = vadd.f32 %v1287, %v1343
      %v1345 = vpop.f32.mrf.mxu0
      %v1346 = vpop.f32.mrf.mxu0
      %v1347 = vadd.f32 %v1288, %v1346
      %v1348 = vpop.f32.mrf.mxu0
      %1349 = vmatprep.mubr.bf16.mxu0 0
      %1350 = vmatmul.mubr.bf16.gmra.mxu0 %v1295
      %v1351 = vpop.f32.mrf.mxu0
      %v1352 = vadd.f32 %v1289, %v1351
      %v1353 = vpop.f32.mrf.mxu0
      %v1354 = vpop.f32.mrf.mxu0
      %v1355 = vadd.f32 %v1290, %v1354
      %v1356 = vpop.f32.mrf.mxu0
      %1357 = vdwg.mxu0
      %v1358 = vsel %vm912, %v1344, -inf
      %1359 = vmax.xlane.f32.xlu0 %v1358
      %v1360 = vpop.xlane.xlu0 %1359
      %v1361 = vsel %vm912, %v1347, -inf
      %1362 = vmax.xlane.f32.xlu0 %v1361
      %v1363 = vpop.xlane.xlu0 %1362
      %v1364 = vsel %vm912, %v1352, -inf
      %1365 = vmax.xlane.f32.xlu0 %v1364
      %v1366 = vpop.xlane.xlu0 %1365
      %v1367 = vsel %vm912, %v1355, -inf
      %1368 = vmax.xlane.f32.xlu0 %v1367
      %v1369 = vpop.xlane.xlu0 %1368
      %v1370 = vsub.f32 %v1344, %v1360
      %v1371 = vsub.f32 %v1347, %v1363
      %v1372 = vsub.f32 %v1352, %v1366
      %v1373 = vsub.f32 %v1355, %v1369
      %v1374 = vmul.f32 %v1370, 1.442695
      %v1375 = vpow.pop %v1374
      %v1376 = vmul.f32 %v1371, 1.442695
      %v1377 = vpow.pop %v1376
      %v1378 = vmul.f32 %v1372, 1.442695
      %v1379 = vpow.pop %v1378
      %v1380 = vmul.f32 %v1373, 1.442695
      %v1381 = vpow.pop %v1380
      %v1382 = vsel %vm912, %v1375, 0.0
      %1383 = vadd.xlane.f32.xlu0 %v1382
      %v1384 = vpop.xlane.xlu0 %1383
      %v1385 = vsel %vm912, %v1377, 0.0
      %1386 = vadd.xlane.f32.xlu0 %v1385
      %v1387 = vpop.xlane.xlu0 %1386
      %v1388 = vsel %vm912, %v1379, 0.0
      %1389 = vadd.xlane.f32.xlu0 %v1388
      %v1390 = vpop.xlane.xlu0 %1389
      %v1391 = vsel %vm912, %v1381, 0.0
      %1392 = vadd.xlane.f32.xlu0 %v1391
      %v1393 = vpop.xlane.xlu0 %1392
      %v1394 = vrcp.pop %v1384
      %v1395 = vrcp.pop %v1387
      %v1396 = vrcp.pop %v1390
      %v1397 = vrcp.pop %v1393
      %v1398 = vmul.f32 %v1375, %v1394
      %v1399 = vmul.f32 %v1377, %v1395
      %v1400 = vmul.f32 %v1379, %v1396
      %v1401 = vmul.f32 %v1381, %v1397
      %v1402 = vpack.c.bf16 %v1399, %v1398
      %v1403 = vpack.c.bf16 %v1401, %v1400
      %v1405 = vsel %vm912, %v1402, 0
      %v1408 = vsel %vm912, %v1403, 0
      %1410 = vmatprep.subr.bf16.mxu0 0
      %1411 = vmatpush1.bf16.msra.mxu0 0
      %1412 = vmatprep.subr.bf16.mxu0 0
      %1413 = vmatpush1.bf16.msra.mxu0 0
      %1414 = vmatprep.subr.bf16.mxu0 0
      %1415 = vmatpush1.bf16.msra.mxu0 0
      %1416 = vmatprep.subr.bf16.mxu0 0
      %1417 = vmatpush1.bf16.msra.mxu0 0
      %1418 = vmatprep.subr.bf16.mxu0 0
      %1419 = vmatpush1.bf16.msra.mxu0 %v1281
      %1420 = vmatprep.subr.bf16.mxu0 0
      %1421 = vmatpush1.bf16.msra.mxu0 %v1280
      %1422 = vmatprep.subr.bf16.mxu0 0
      %1423 = vmatpush1.bf16.msra.mxu0 %v1279
      %1424 = vmatprep.subr.bf16.mxu0 0
      %1425 = vmatpush1.bf16.msra.mxu0 %v1278
      %1426 = vmatprep.subr.bf16.mxu0 0
      %1427 = vmatpush2.bf16.msra.mxu0 0
      %1428 = vmatprep.subr.bf16.mxu0 0
      %1429 = vmatpush2.bf16.msra.mxu0 0
      %1430 = vmatprep.subr.bf16.mxu0 0
      %1431 = vmatpush2.bf16.msra.mxu0 0
      %1432 = vmatprep.subr.bf16.mxu0 0
      %1433 = vmatpush2.bf16.msra.mxu0 0
      %1434 = vmatprep.subr.bf16.mxu0 0
      %1435 = vmatpush2.bf16.msra.mxu0 0
      %1436 = vmatprep.subr.bf16.mxu0 0
      %1437 = vmatpush2.bf16.msra.mxu0 0
      %1438 = vmatprep.subr.bf16.mxu0 0
      %1439 = vmatpush2.bf16.msra.mxu0 0
      %1440 = vmatprep.subr.bf16.mxu0 0
      %1441 = vmatpush2.bf16.msra.mxu0 0
      %1442 = vmatprep.mubr.bf16.mxu0 0
      %1443 = vmatmul.mubr.bf16.gmra.mxu0 %v1405
      %v1444 = vpop.f32.mrf.mxu0
      %v1445 = vadd.f32 0.0, %v1444
      %v1446 = vpop.f32.mrf.mxu0
      %v1447 = vpop.f32.mrf.mxu0
      %v1448 = vadd.f32 0.0, %v1447
      %v1449 = vpop.f32.mrf.mxu0
      %1450 = vmatprep.mubr.bf16.mxu0 0
      %1451 = vmatmul.mubr.bf16.gmra.mxu0 %v1408
      %v1452 = vpop.f32.mrf.mxu0
      %v1453 = vadd.f32 0.0, %v1452
      %v1454 = vpop.f32.mrf.mxu0
      %v1455 = vpop.f32.mrf.mxu0
      %v1456 = vadd.f32 0.0, %v1455
      %v1457 = vpop.f32.mrf.mxu0
      %1458 = vdwg.mxu0
      %v1459 = vpack.c.bf16 %v1448, %v1445
      %v1460 = vpack.c.bf16 %v1456, %v1453
      %s1461 = scalar_lea.vmem %s10, 8
      %v1462 = vld [vmem:[%s1461] sm:$0xf]
      %v1463 = vld [vmem:[%s1461 + $0x4] sm:$0xf]
      %v1466 = vunpack.c.l.b16 %v1462
      %v1467 = vunpack.c.l.b16 %v1463
      %v1468 = vpack.c.b16 %v1467, %v1466
      %v1471 = vsel %vm844, %v1459, 0
      %v1474 = vsel %vm844, %v1460, 0
      %1476 = vmatprep.subr.bf16.mxu0 0
      %1477 = vmatpush1.bf16.msra.mxu0 0
      %1478 = vmatprep.subr.bf16.mxu0 0
      %1479 = vmatpush1.bf16.msra.mxu0 0
      %1480 = vmatprep.subr.bf16.mxu0 0
      %1481 = vmatpush1.bf16.msra.mxu0 0
      %1482 = vmatprep.subr.bf16.mxu0 0
      %1483 = vmatpush1.bf16.msra.mxu0 0
      %1484 = vmatprep.subr.bf16.mxu0 0
      %1485 = vmatpush1.bf16.msra.mxu0 0
      %1486 = vmatprep.subr.bf16.mxu0 0
      %1487 = vmatpush1.bf16.msra.mxu0 0
      %1488 = vmatprep.subr.bf16.mxu0 0
      %1489 = vmatpush1.bf16.msra.mxu0 0
      %1490 = vmatprep.subr.bf16.mxu0 0
      %1491 = vmatpush1.bf16.msra.mxu0 %v1468
      %1492 = vmatprep.subr.bf16.mxu0 0
      %1493 = vmatpush2.bf16.msra.mxu0 0
      %1494 = vmatprep.subr.bf16.mxu0 0
      %1495 = vmatpush2.bf16.msra.mxu0 0
      %1496 = vmatprep.subr.bf16.mxu0 0
      %1497 = vmatpush2.bf16.msra.mxu0 0
      %1498 = vmatprep.subr.bf16.mxu0 0
      %1499 = vmatpush2.bf16.msra.mxu0 0
      %1500 = vmatprep.subr.bf16.mxu0 0
      %1501 = vmatpush2.bf16.msra.mxu0 0
      %1502 = vmatprep.subr.bf16.mxu0 0
      %1503 = vmatpush2.bf16.msra.mxu0 0
      %1504 = vmatprep.subr.bf16.mxu0 0
      %1505 = vmatpush2.bf16.msra.mxu0 0
      %1506 = vmatprep.subr.bf16.mxu0 0
      %1507 = vmatpush2.bf16.msra.mxu0 0
      %1508 = vmatprep.mubr.bf16.mxu0 0
      %1509 = vmatmul.mubr.bf16.gmra.mxu0 %v1471
      %v1510 = vpop.f32.mrf.mxu0
      %v1511 = vadd.f32 0.0, %v1510
      %v1512 = vpop.f32.mrf.mxu0
      %v1513 = vpop.f32.mrf.mxu0
      %v1514 = vadd.f32 0.0, %v1513
      %v1515 = vpop.f32.mrf.mxu0
      %1516 = vmatprep.mubr.bf16.mxu0 0
      %1517 = vmatmul.mubr.bf16.gmra.mxu0 %v1474
      %v1518 = vpop.f32.mrf.mxu0
      %v1519 = vadd.f32 0.0, %v1518
      %v1520 = vpop.f32.mrf.mxu0
      %v1521 = vpop.f32.mrf.mxu0
      %v1522 = vadd.f32 0.0, %v1521
      %v1523 = vpop.f32.mrf.mxu0
      %1524 = vdwg.mxu0
      %v1527 = vunpack.c.l.b16 %v1016
      %v1528 = vunpack.c.l.b16 %v1017
      %v1529 = vpack.c.b16 %v1528, %v1527
      %v1532 = vsel %vm844, %v1014, 0
      %v1535 = vsel %vm844, %v1015, 0
      %1537 = vmatprep.subr.bf16.mxu0 0
      %1538 = vmatpush1.bf16.msra.mxu0 0
      %1539 = vmatprep.subr.bf16.mxu0 0
      %1540 = vmatpush1.bf16.msra.mxu0 0
      %1541 = vmatprep.subr.bf16.mxu0 0
      %1542 = vmatpush1.bf16.msra.mxu0 0
      %1543 = vmatprep.subr.bf16.mxu0 0
      %1544 = vmatpush1.bf16.msra.mxu0 0
      %1545 = vmatprep.subr.bf16.mxu0 0
      %1546 = vmatpush1.bf16.msra.mxu0 0
      %1547 = vmatprep.subr.bf16.mxu0 0
      %1548 = vmatpush1.bf16.msra.mxu0 0
      %1549 = vmatprep.subr.bf16.mxu0 0
      %1550 = vmatpush1.bf16.msra.mxu0 0
      %1551 = vmatprep.subr.bf16.mxu0 0
      %1552 = vmatpush1.bf16.msra.mxu0 %v1529
      %1553 = vmatprep.subr.bf16.mxu0 0
      %1554 = vmatpush2.bf16.msra.mxu0 0
      %1555 = vmatprep.subr.bf16.mxu0 0
      %1556 = vmatpush2.bf16.msra.mxu0 0
      %1557 = vmatprep.subr.bf16.mxu0 0
      %1558 = vmatpush2.bf16.msra.mxu0 0
      %1559 = vmatprep.subr.bf16.mxu0 0
      %1560 = vmatpush2.bf16.msra.mxu0 0
      %1561 = vmatprep.subr.bf16.mxu0 0
      %1562 = vmatpush2.bf16.msra.mxu0 0
      %1563 = vmatprep.subr.bf16.mxu0 0
      %1564 = vmatpush2.bf16.msra.mxu0 0
      %1565 = vmatprep.subr.bf16.mxu0 0
      %1566 = vmatpush2.bf16.msra.mxu0 0
      %1567 = vmatprep.subr.bf16.mxu0 0
      %1568 = vmatpush2.bf16.msra.mxu0 0
      %1569 = vmatprep.mubr.bf16.mxu0 0
      %1570 = vmatmul.mubr.bf16.gmra.mxu0 %v1532
      %v1571 = vpop.f32.mrf.mxu0
      %v1572 = vadd.f32 %v1511, %v1571
      %v1573 = vpop.f32.mrf.mxu0
      %v1574 = vpop.f32.mrf.mxu0
      %v1575 = vadd.f32 %v1514, %v1574
      %v1576 = vpop.f32.mrf.mxu0
      %1577 = vmatprep.mubr.bf16.mxu0 0
      %1578 = vmatmul.mubr.bf16.gmra.mxu0 %v1535
      %v1579 = vpop.f32.mrf.mxu0
      %v1580 = vadd.f32 %v1519, %v1579
      %v1581 = vpop.f32.mrf.mxu0
      %v1582 = vpop.f32.mrf.mxu0
      %v1583 = vadd.f32 %v1522, %v1582
      %v1584 = vpop.f32.mrf.mxu0
      %1585 = vdwg.mxu0
      %v1586 = vld [vmem:[%s11] sm:$0x1]
      %v1588 = vlaneseq
      %v1589 = vshrl.u32 %v1588, 7
      %v1590 = vsub.s32 0, %v1589
      %v1591 = vrot.slane %v1586, %v1590
      %v1593 = vadd.f32 %v1572, %v1591
      %v1594 = vadd.f32 %v1575, %v1591
      %v1595 = vadd.f32 %v1580, %v1591
      %v1596 = vadd.f32 %v1583, %v1591
      %1597 = vst.msk [vmem:[%s514] sm:$0xff] %vm582, %v1593
      %1598 = vst.msk [vmem:[%s514 + $0x8] sm:$0xff] %vm582, %v1594
      %1599 = vst.msk [vmem:[%s514 + $0x10] sm:$0xff] %vm582, %v1595
      %1600 = vst.msk [vmem:[%s514 + $0x18] sm:$0xff] %vm582, %v1596
      %s1601 = smul.u32 4, %s28
      %p1602 = scmp.lt.s32.totalorder %s27, 1
      %s1603 = scalar_select %p1602, %s27, 1
      %p1604 = scmp.lt.s32.totalorder %s1601, 7
      %s1605 = scalar_select %p1604, %s1601, 7
      %s1606 = smul.addr %s1603, 8
      %s1607 = sadd.s32 %s1605, %s1606
      %s1608 = smul.addr %s1607, 8
      %s1609 = scalar_lea.vmem %s12, %s1608
      // Predicated region
      $region69: #{tpu_custom_call.1} parent=67 // pred_check
        %p1610 = pneg %p329
      $region70: #{tpu_custom_call.1} parent=67 // pred_check_branch
        %1612 = sbr.rel (%p1610) target = $region72
      $region71: #{tpu_custom_call.1} parent=67 // pred_region
        %s1613 = smul.u32 4, %s28
      $region72: #{tpu_custom_call.1} parent=67 // pred_fallthru
        _
    $region68: #{tpu_custom_call.1} parent=5 // pred_fallthru
      _
    %p1614 = scmp.le.s32.totalorder 2, %s18
    // Predicated region
    $region73: #{tpu_custom_call.1} parent=5 // pred_check
      %p1615 = pneg %p1614
    $region74: #{tpu_custom_call.1} parent=5 // pred_check_branch
      %1617 = sbr.rel (%p1615) target = $region76
    $region75: #{tpu_custom_call.1} parent=5 // pred_region
      %s1618 = ssub.s32 %s18, 2
      // Predicated region
      $region77: #{tpu_custom_call.1} parent=75 // pred_check
        %p1619 = pneg %p335
      $region78: #{tpu_custom_call.1} parent=75 // pred_check_branch
        %1621 = sbr.rel (%p1619) target = $region80
      $region79: #{tpu_custom_call.1} parent=75 // pred_region
        %s1622 = smul.u32 4, %s30
        %p1623 = scmp.lt.s32.totalorder %s29, 1
        %s1624 = scalar_select %p1623, %s29, 1
        %p1625 = scmp.lt.s32.totalorder %s1622, 7
        %s1626 = scalar_select %p1625, %s1622, 7
        %s1627 = smul.addr %s1624, 8
        %s1628 = sadd.s32 %s1626, %s1627
        %s1629 = smul.addr %s1628, 8
        %s1630 = scalar_lea.vmem %s12, %s1629
      $region80: #{tpu_custom_call.1} parent=75 // pred_fallthru
        _
    $region76: #{tpu_custom_call.1} parent=5 // pred_fallthru
      _
  $region6: #{tpu_custom_call.1} parent=0 // loop_footer
    %s22 = sadd.s32 1, %s18
  $region7: #{tpu_custom_call.1} parent=0 // loop_footer_branch
    %17 = sbr.rel target = $region3
  $region8: #{tpu_custom_call.1} parent=0 // loop_exit
    _

</llo_original>
